<compile_context>
chip_gen: v6e
topology: v6e:2x2x1
jax: 0.10.0
libtpu: 0.0.40
codegen_flags: <defaults>
</compile_context>

<pallas_src>
import functools
import math

import jax
import jax.numpy as jnp
from jax.experimental import pallas as pl
from jax.experimental.pallas import tpu as pltpu


# ----------------------------- kernel ----------------------------------------

def _reflect_pad_hw(t):
    """1-pixel reflection pad on the trailing (H, W) axes of a (C, H, W) tile."""
    t = jnp.concatenate([t[:, 1:2], t, t[:, -2:-1]], axis=1)          # H pad
    t = jnp.concatenate([t[:, :, 1:2], t, t[:, :, -2:-1]], axis=2)    # W pad
    return t


def _conv3x3_T(xpad_bf16, wT_bf16, H, W):
    """3x3 VALID conv on a padded (Cin, H+2, W+2) bf16 tile, transposed form.

    wT_bf16: (Cout, 9*Cin).  Returns (Cout, H*W) float32 (f32 MXU accumulation)
    so the output tile is lane-dense (H*W on the lane axis).
    """
    Cin = xpad_bf16.shape[0]
    Cout = wT_bf16.shape[0]
    HW = H * W

    if Cin < 64:
        # Tiny-Cin path (this test): one im2col matmul, K = 9*Cin.
        taps = [xpad_bf16[:, kh:kh + H, kw:kw + W].reshape(Cin, HW)
                for kh in range(3) for kw in range(3)]
        patches = jnp.concatenate(taps, axis=0)                 # (9*Cin, HW)
        return jnp.dot(wT_bf16, patches, preferred_element_type=jnp.float32)

    # Large-Cin path: 9 accumulated dots (K = Cin each); avoids the 9x-size
    # im2col patch buffer that would blow VMEM at e.g. H=W=64, C=256.
    acc = jnp.zeros((Cout, HW), jnp.float32)
    k = 0
    for kh in range(3):
        for kw in range(3):
            tap = xpad_bf16[:, kh:kh + H, kw:kw + W].reshape(Cin, HW)
            wk = wT_bf16[:, k * Cin:(k + 1) * Cin]
            acc = acc + jnp.dot(wk, tap, preferred_element_type=jnp.float32)
            k += 1
    return acc


def resnet_block_kernel(x_ref, w1t_ref, s1_ref, b1_ref, w2t_ref, s2_ref, b2_ref,
                        out_ref, *, slope):
    # x_ref: (Cin, H, W) f32 (batch dim squeezed); w*t_ref: (Cout, 9*C) bf16;
    # s*/b*: (Cout, 1) f32; out_ref: (Cout, H*W) f32.
    Cin, H, W = x_ref.shape
    HW = H * W

    x = x_ref[...]                                              # (Cin, H, W) f32
    xb = x.astype(jnp.bfloat16)                                 # cast once, pad bf16

    # --- stage 1: reflect-pad -> conv3x3 -> folded BN -> LeakyReLU(0.2) ------
    h = _conv3x3_T(_reflect_pad_hw(xb), w1t_ref[...], H, W)     # (Cout, HW) f32
    h = h * s1_ref[...] + b1_ref[...]
    h = jnp.where(h > 0, h, slope * h)
    # Dropout(0.5): identity in eval mode.

    # --- stage 2: reflect-pad -> conv3x3 -> folded BN ------------------------
    hb = h.astype(jnp.bfloat16).reshape(h.shape[0], H, W)
    y = _conv3x3_T(_reflect_pad_hw(hb), w2t_ref[...], H, W)     # (Cout, HW) f32
    y = y * s2_ref[...] + b2_ref[...]

    # --- residual add (Cin == Cout), lane-dense (C, HW) store ----------------
    out_ref[...] = (y + x.reshape(Cin, HW)).astype(out_ref.dtype)


# ----------------------------- wrapper ----------------------------------------

def _vmem_limit_bytes():
    """~75% of physical VMEM, capped at 100 MiB (v5e/v6e ~96 MiB, v7x 48 MiB)."""
    try:
        cap = pltpu.get_tpu_info().vmem_capacity_bytes
    except Exception:  # conservative fallback
        cap = 64 * 1024 * 1024
    return min(100 * 1024 * 1024, (cap * 3) // 4)


def resnet_block_nchw(x_nchw, params):
    N, Cin, H, W = x_nchw.shape
    Cout = params["scale1"].shape[0]
    assert Cin == Cout, "residual add requires in_c == out_c"
    assert H >= 2 and W >= 2, "1-pixel reflection pad requires H, W >= 2"
    HW = H * W

    kernel = functools.partial(resnet_block_kernel, slope=0.2)
    out_flat = pl.pallas_call(
        kernel,
        out_shape=jax.ShapeDtypeStruct((N, Cout, HW), x_nchw.dtype),
        grid=(N,),
        in_specs=[
            pl.BlockSpec((pl.Squeezed(), Cin, H, W), lambda n: (n, 0, 0, 0)),
            pl.BlockSpec((Cout, 9 * Cin), lambda n: (0, 0)),
            pl.BlockSpec((Cout, 1), lambda n: (0, 0)),
            pl.BlockSpec((Cout, 1), lambda n: (0, 0)),
            pl.BlockSpec((Cout, 9 * Cout), lambda n: (0, 0)),
            pl.BlockSpec((Cout, 1), lambda n: (0, 0)),
            pl.BlockSpec((Cout, 1), lambda n: (0, 0)),
        ],
        out_specs=pl.BlockSpec((pl.Squeezed(), Cout, HW), lambda n: (n, 0, 0)),
        compiler_params=pltpu.CompilerParams(
            dimension_semantics=("parallel",),
            vmem_limit_bytes=_vmem_limit_bytes(),
        ),
    )(x_nchw, params["w1t"], params["scale1"], params["shift1"],
      params["w2t"], params["scale2"], params["shift2"])

    # Free metadata reshape (contiguous trailing-dim split) -- no HBM traffic.
    return out_flat.reshape(N, Cout, H, W)


resnet_block_forward = jax.jit(resnet_block_nchw)


# ----------------------------- params & reference -----------------------------

def init_params(key, in_c, out_c, eps=1e-5):
    ks = jax.random.split(key, 10)
    # Conv weights built directly in HWIO = (kh, kw, Cin, Cout).
    bound1 = 1.0 / math.sqrt(in_c * 9)
    w1 = jax.random.uniform(ks[0], (3, 3, in_c, out_c), jnp.float32, -bound1, bound1)
    bound2 = 1.0 / math.sqrt(out_c * 9)
    w2 = jax.random.uniform(ks[1], (3, 3, out_c, out_c), jnp.float32, -bound2, bound2)

    def bn(kg, kb, km, kv):
        gamma = jax.random.uniform(kg, (out_c,), jnp.float32, 0.5, 1.5)
        beta = 0.1 * jax.random.normal(kb, (out_c,), jnp.float32)
        mean = 0.1 * jax.random.normal(km, (out_c,), jnp.float32)
        var = jax.random.uniform(kv, (out_c,), jnp.float32, 0.5, 1.5)
        scale = gamma / jnp.sqrt(var + eps)
        shift = beta - mean * scale
        return scale.reshape(out_c, 1), shift.reshape(out_c, 1)

    scale1, shift1 = bn(ks[2], ks[3], ks[4], ks[5])
    scale2, shift2 = bn(ks[6], ks[7], ks[8], ks[9])
    return {
        "w1_hwio": w1, "w2_hwio": w2,
        # Transposed flat weights for the lane-dense formulation
        # y^T = W^T @ patches^T; pre-cast once to bf16 (f32 MXU accumulation).
        "w1t": w1.reshape(9 * in_c, out_c).T.astype(jnp.bfloat16),
        "w2t": w2.reshape(9 * out_c, out_c).T.astype(jnp.bfloat16),
        "scale1": scale1, "shift1": shift1,
        "scale2": scale2, "shift2": shift2,
    }


def ref_forward(x_nchw, params):
    """Plain-JAX f32 reference (same eval semantics) for correctness checking."""
    x = jnp.transpose(x_nchw, (0, 2, 3, 1))  # reference only

    def conv(inp, w_hwio):
        xp = jnp.pad(inp, ((0, 0), (1, 1), (1, 1), (0, 0)), mode="reflect")
        return jax.lax.conv_general_dilated(
            xp, w_hwio, window_strides=(1, 1), padding="VALID",
            dimension_numbers=("NHWC", "HWIO", "NHWC"))

    s1 = params["scale1"].reshape(-1); b1 = params["shift1"].reshape(-1)
    s2 = params["scale2"].reshape(-1); b2 = params["shift2"].reshape(-1)
    h = conv(x, params["w1_hwio"]) * s1 + b1
    h = jnp.where(h > 0, h, 0.2 * h)
    y = conv(h, params["w2_hwio"]) * s2 + b2 + x
    return jnp.transpose(y, (0, 3, 1, 2))


# ----------------------------- main -------------------------------------------

if __name__ == "__main__":
    key = jax.random.PRNGKey(0)
    kx, kp = jax.random.split(key)

    # Residual requires in_c == out_c.
    N, C, H, W = 2, 4, 16, 16
    x = jax.random.normal(kx, (N, C, H, W), jnp.float32)
    params = init_params(kp, C, C)

    out = jax.block_until_ready(resnet_block_forward(x, params))
    ref = jax.block_until_ready(ref_forward(x, params))

    assert out.shape == (N, C, H, W), out.shape
    max_err = float(jnp.max(jnp.abs(out - ref)))
    # Kernel uses bf16 matmul operands with f32 accumulation; reference is pure
    # f32, so allow a small bf16 rounding tolerance (errors here are ~1e-2).
    assert max_err < 5e-2, f"mismatch vs reference: {max_err}"
    print("KERNEL_OK")
</pallas_src>

<mosaic_0001>
module attributes {stable_mosaic.version = 11 : i64} {
  func.func @resnet_block_kernel(%arg0: i32, %arg1: memref<1x4x16x16xf32, #tpu.memory_space<vmem>>, %arg2: memref<4x36xbf16, #tpu.memory_space<vmem>>, %arg3: memref<4x1xf32, #tpu.memory_space<vmem>>, %arg4: memref<4x1xf32, #tpu.memory_space<vmem>>, %arg5: memref<4x36xbf16, #tpu.memory_space<vmem>>, %arg6: memref<4x1xf32, #tpu.memory_space<vmem>>, %arg7: memref<4x1xf32, #tpu.memory_space<vmem>>, %arg8: memref<1x4x256xf32, #tpu.memory_space<vmem>>) attributes {dimension_semantics = [#tpu.dimension_semantics<parallel>], iteration_bounds = array<i64: 2>, scalar_prefetch = 0 : i64, scratch_operands = 0 : i64, tpu.core_type = #tpu.core_type<tc>, window_params = [{transform_indices = @transform_0, window_bounds = array<i64: 1, 4, 16, 16>}, {pipeline_mode = #tpu.pipeline_mode<synchronous>, transform_indices = @transform_1, window_bounds = array<i64: 4, 36>}, {pipeline_mode = #tpu.pipeline_mode<synchronous>, transform_indices = @transform_2, window_bounds = array<i64: 4, 1>}, {pipeline_mode = #tpu.pipeline_mode<synchronous>, transform_indices = @transform_3, window_bounds = array<i64: 4, 1>}, {pipeline_mode = #tpu.pipeline_mode<synchronous>, transform_indices = @transform_4, window_bounds = array<i64: 4, 36>}, {pipeline_mode = #tpu.pipeline_mode<synchronous>, transform_indices = @transform_5, window_bounds = array<i64: 4, 1>}, {pipeline_mode = #tpu.pipeline_mode<synchronous>, transform_indices = @transform_6, window_bounds = array<i64: 4, 1>}, {transform_indices = @transform_7, window_bounds = array<i64: 1, 4, 256>}]} {
    %c0 = arith.constant 0 : index
    %c0_0 = arith.constant 0 : index
    %c0_1 = arith.constant 0 : index
    %c0_2 = arith.constant 0 : index
    %0 = vector.load %arg1[%c0, %c0_0, %c0_1, %c0_2] : memref<1x4x16x16xf32, #tpu.memory_space<vmem>>, vector<1x4x16x16xf32>
    %1 = vector.shape_cast %0 : vector<1x4x16x16xf32> to vector<4x16x16xf32>
    %2 = arith.truncf %1 : vector<4x16x16xf32> to vector<4x16x16xbf16>
    %3 = vector.extract_strided_slice %2 {offsets = [0, 1, 0], sizes = [4, 1, 16], strides = [1, 1, 1]} : vector<4x16x16xbf16> to vector<4x1x16xbf16>
    %4 = vector.extract_strided_slice %2 {offsets = [0, 14, 0], sizes = [4, 1, 16], strides = [1, 1, 1]} : vector<4x16x16xbf16> to vector<4x1x16xbf16>
    %5 = tpu.concatenate %3, %2, %4 in 1 : vector<4x1x16xbf16>, vector<4x16x16xbf16>, vector<4x1x16xbf16> -> vector<4x18x16xbf16>
    %6 = vector.extract_strided_slice %5 {offsets = [0, 0, 1], sizes = [4, 18, 1], strides = [1, 1, 1]} : vector<4x18x16xbf16> to vector<4x18x1xbf16>
    %7 = vector.extract_strided_slice %5 {offsets = [0, 0, 14], sizes = [4, 18, 1], strides = [1, 1, 1]} : vector<4x18x16xbf16> to vector<4x18x1xbf16>
    %8 = tpu.concatenate %6, %5, %7 in 2 : vector<4x18x1xbf16>, vector<4x18x16xbf16>, vector<4x18x1xbf16> -> vector<4x18x18xbf16>
    %c0_3 = arith.constant 0 : index
    %c0_4 = arith.constant 0 : index
    %9 = vector.load %arg2[%c0_3, %c0_4] : memref<4x36xbf16, #tpu.memory_space<vmem>>, vector<4x36xbf16>
    %10 = vector.extract_strided_slice %8 {offsets = [0, 0, 0], sizes = [4, 16, 16], strides = [1, 1, 1]} : vector<4x18x18xbf16> to vector<4x16x16xbf16>
    %11 = vector.shape_cast %10 : vector<4x16x16xbf16> to vector<4x256xbf16>
    %12 = vector.extract_strided_slice %8 {offsets = [0, 0, 1], sizes = [4, 16, 16], strides = [1, 1, 1]} : vector<4x18x18xbf16> to vector<4x16x16xbf16>
    %13 = vector.shape_cast %12 : vector<4x16x16xbf16> to vector<4x256xbf16>
    %14 = vector.extract_strided_slice %8 {offsets = [0, 0, 2], sizes = [4, 16, 16], strides = [1, 1, 1]} : vector<4x18x18xbf16> to vector<4x16x16xbf16>
    %15 = vector.shape_cast %14 : vector<4x16x16xbf16> to vector<4x256xbf16>
    %16 = vector.extract_strided_slice %8 {offsets = [0, 1, 0], sizes = [4, 16, 16], strides = [1, 1, 1]} : vector<4x18x18xbf16> to vector<4x16x16xbf16>
    %17 = vector.shape_cast %16 : vector<4x16x16xbf16> to vector<4x256xbf16>
    %18 = vector.extract_strided_slice %8 {offsets = [0, 1, 1], sizes = [4, 16, 16], strides = [1, 1, 1]} : vector<4x18x18xbf16> to vector<4x16x16xbf16>
    %19 = vector.shape_cast %18 : vector<4x16x16xbf16> to vector<4x256xbf16>
    %20 = vector.extract_strided_slice %8 {offsets = [0, 1, 2], sizes = [4, 16, 16], strides = [1, 1, 1]} : vector<4x18x18xbf16> to vector<4x16x16xbf16>
    %21 = vector.shape_cast %20 : vector<4x16x16xbf16> to vector<4x256xbf16>
    %22 = vector.extract_strided_slice %8 {offsets = [0, 2, 0], sizes = [4, 16, 16], strides = [1, 1, 1]} : vector<4x18x18xbf16> to vector<4x16x16xbf16>
    %23 = vector.shape_cast %22 : vector<4x16x16xbf16> to vector<4x256xbf16>
    %24 = vector.extract_strided_slice %8 {offsets = [0, 2, 1], sizes = [4, 16, 16], strides = [1, 1, 1]} : vector<4x18x18xbf16> to vector<4x16x16xbf16>
    %25 = vector.shape_cast %24 : vector<4x16x16xbf16> to vector<4x256xbf16>
    %26 = vector.extract_strided_slice %8 {offsets = [0, 2, 2], sizes = [4, 16, 16], strides = [1, 1, 1]} : vector<4x18x18xbf16> to vector<4x16x16xbf16>
    %27 = vector.shape_cast %26 : vector<4x16x16xbf16> to vector<4x256xbf16>
    %28 = tpu.concatenate %11, %13, %15, %17, %19, %21, %23, %25, %27 in 0 : vector<4x256xbf16>, vector<4x256xbf16>, vector<4x256xbf16>, vector<4x256xbf16>, vector<4x256xbf16>, vector<4x256xbf16>, vector<4x256xbf16>, vector<4x256xbf16>, vector<4x256xbf16> -> vector<36x256xbf16>
    %cst = arith.constant dense<0.000000e+00> : vector<4x256xf32>
    %29 = tpu.matmul %9, %28, %cst {dimension_numbers = #tpu.dot_dimension_numbers<[1], [0], [0], [1], [0, 0, 1, 1], [], []>} : vector<4x36xbf16>, vector<36x256xbf16>, vector<4x256xf32> -> vector<4x256xf32>
    %c0_5 = arith.constant 0 : index
    %c0_6 = arith.constant 0 : index
    %30 = vector.load %arg3[%c0_5, %c0_6] : memref<4x1xf32, #tpu.memory_space<vmem>>, vector<4x1xf32>
    %31 = vector.broadcast %30 : vector<4x1xf32> to vector<4x256xf32>
    %32 = arith.mulf %29, %31 : vector<4x256xf32>
    %c0_7 = arith.constant 0 : index
    %c0_8 = arith.constant 0 : index
    %33 = vector.load %arg4[%c0_7, %c0_8] : memref<4x1xf32, #tpu.memory_space<vmem>>, vector<4x1xf32>
    %34 = vector.broadcast %33 : vector<4x1xf32> to vector<4x256xf32>
    %35 = arith.addf %32, %34 : vector<4x256xf32>
    %cst_9 = arith.constant 0.000000e+00 : f32
    %36 = vector.broadcast %cst_9 : f32 to vector<4x256xf32>
    %37 = arith.cmpf ogt, %35, %36 : vector<4x256xf32>
    %cst_10 = arith.constant 2.000000e-01 : f32
    %38 = vector.broadcast %cst_10 : f32 to vector<4x256xf32>
    %39 = arith.mulf %38, %35 : vector<4x256xf32>
    %40 = arith.select %37, %35, %39 : vector<4x256xi1>, vector<4x256xf32>
    %41 = arith.truncf %40 : vector<4x256xf32> to vector<4x256xbf16>
    %42 = vector.shape_cast %41 : vector<4x256xbf16> to vector<4x16x16xbf16>
    %43 = vector.extract_strided_slice %42 {offsets = [0, 1, 0], sizes = [4, 1, 16], strides = [1, 1, 1]} : vector<4x16x16xbf16> to vector<4x1x16xbf16>
    %44 = vector.extract_strided_slice %42 {offsets = [0, 14, 0], sizes = [4, 1, 16], strides = [1, 1, 1]} : vector<4x16x16xbf16> to vector<4x1x16xbf16>
    %45 = tpu.concatenate %43, %42, %44 in 1 : vector<4x1x16xbf16>, vector<4x16x16xbf16>, vector<4x1x16xbf16> -> vector<4x18x16xbf16>
    %46 = vector.extract_strided_slice %45 {offsets = [0, 0, 1], sizes = [4, 18, 1], strides = [1, 1, 1]} : vector<4x18x16xbf16> to vector<4x18x1xbf16>
    %47 = vector.extract_strided_slice %45 {offsets = [0, 0, 14], sizes = [4, 18, 1], strides = [1, 1, 1]} : vector<4x18x16xbf16> to vector<4x18x1xbf16>
    %48 = tpu.concatenate %46, %45, %47 in 2 : vector<4x18x1xbf16>, vector<4x18x16xbf16>, vector<4x18x1xbf16> -> vector<4x18x18xbf16>
    %c0_11 = arith.constant 0 : index
    %c0_12 = arith.constant 0 : index
    %49 = vector.load %arg5[%c0_11, %c0_12] : memref<4x36xbf16, #tpu.memory_space<vmem>>, vector<4x36xbf16>
    %50 = vector.extract_strided_slice %48 {offsets = [0, 0, 0], sizes = [4, 16, 16], strides = [1, 1, 1]} : vector<4x18x18xbf16> to vector<4x16x16xbf16>
    %51 = vector.shape_cast %50 : vector<4x16x16xbf16> to vector<4x256xbf16>
    %52 = vector.extract_strided_slice %48 {offsets = [0, 0, 1], sizes = [4, 16, 16], strides = [1, 1, 1]} : vector<4x18x18xbf16> to vector<4x16x16xbf16>
    %53 = vector.shape_cast %52 : vector<4x16x16xbf16> to vector<4x256xbf16>
    %54 = vector.extract_strided_slice %48 {offsets = [0, 0, 2], sizes = [4, 16, 16], strides = [1, 1, 1]} : vector<4x18x18xbf16> to vector<4x16x16xbf16>
    %55 = vector.shape_cast %54 : vector<4x16x16xbf16> to vector<4x256xbf16>
    %56 = vector.extract_strided_slice %48 {offsets = [0, 1, 0], sizes = [4, 16, 16], strides = [1, 1, 1]} : vector<4x18x18xbf16> to vector<4x16x16xbf16>
    %57 = vector.shape_cast %56 : vector<4x16x16xbf16> to vector<4x256xbf16>
    %58 = vector.extract_strided_slice %48 {offsets = [0, 1, 1], sizes = [4, 16, 16], strides = [1, 1, 1]} : vector<4x18x18xbf16> to vector<4x16x16xbf16>
    %59 = vector.shape_cast %58 : vector<4x16x16xbf16> to vector<4x256xbf16>
    %60 = vector.extract_strided_slice %48 {offsets = [0, 1, 2], sizes = [4, 16, 16], strides = [1, 1, 1]} : vector<4x18x18xbf16> to vector<4x16x16xbf16>
    %61 = vector.shape_cast %60 : vector<4x16x16xbf16> to vector<4x256xbf16>
    %62 = vector.extract_strided_slice %48 {offsets = [0, 2, 0], sizes = [4, 16, 16], strides = [1, 1, 1]} : vector<4x18x18xbf16> to vector<4x16x16xbf16>
    %63 = vector.shape_cast %62 : vector<4x16x16xbf16> to vector<4x256xbf16>
    %64 = vector.extract_strided_slice %48 {offsets = [0, 2, 1], sizes = [4, 16, 16], strides = [1, 1, 1]} : vector<4x18x18xbf16> to vector<4x16x16xbf16>
    %65 = vector.shape_cast %64 : vector<4x16x16xbf16> to vector<4x256xbf16>
    %66 = vector.extract_strided_slice %48 {offsets = [0, 2, 2], sizes = [4, 16, 16], strides = [1, 1, 1]} : vector<4x18x18xbf16> to vector<4x16x16xbf16>
    %67 = vector.shape_cast %66 : vector<4x16x16xbf16> to vector<4x256xbf16>
    %68 = tpu.concatenate %51, %53, %55, %57, %59, %61, %63, %65, %67 in 0 : vector<4x256xbf16>, vector<4x256xbf16>, vector<4x256xbf16>, vector<4x256xbf16>, vector<4x256xbf16>, vector<4x256xbf16>, vector<4x256xbf16>, vector<4x256xbf16>, vector<4x256xbf16> -> vector<36x256xbf16>
    %cst_13 = arith.constant dense<0.000000e+00> : vector<4x256xf32>
    %69 = tpu.matmul %49, %68, %cst_13 {dimension_numbers = #tpu.dot_dimension_numbers<[1], [0], [0], [1], [0, 0, 1, 1], [], []>} : vector<4x36xbf16>, vector<36x256xbf16>, vector<4x256xf32> -> vector<4x256xf32>
    %c0_14 = arith.constant 0 : index
    %c0_15 = arith.constant 0 : index
    %70 = vector.load %arg6[%c0_14, %c0_15] : memref<4x1xf32, #tpu.memory_space<vmem>>, vector<4x1xf32>
    %71 = vector.broadcast %70 : vector<4x1xf32> to vector<4x256xf32>
    %72 = arith.mulf %69, %71 : vector<4x256xf32>
    %c0_16 = arith.constant 0 : index
    %c0_17 = arith.constant 0 : index
    %73 = vector.load %arg7[%c0_16, %c0_17] : memref<4x1xf32, #tpu.memory_space<vmem>>, vector<4x1xf32>
    %74 = vector.broadcast %73 : vector<4x1xf32> to vector<4x256xf32>
    %75 = arith.addf %72, %74 : vector<4x256xf32>
    %76 = vector.shape_cast %1 : vector<4x16x16xf32> to vector<4x256xf32>
    %77 = arith.addf %75, %76 : vector<4x256xf32>
    %c0_18 = arith.constant 0 : index
    %c0_19 = arith.constant 0 : index
    %c0_20 = arith.constant 0 : index
    %78 = vector.load %arg8[%c0_18, %c0_19, %c0_20] : memref<1x4x256xf32, #tpu.memory_space<vmem>>, vector<1x4x256xf32>
    %79 = vector.shape_cast %78 : vector<1x4x256xf32> to vector<4x256xf32>
    %80 = vector.shape_cast %77 : vector<4x256xf32> to vector<1x4x256xf32>
    tpu.vector_store %arg8[%c0_18, %c0_19, %c0_20], %80 {strides = array<i32>} : memref<1x4x256xf32, #tpu.memory_space<vmem>>, vector<1x4x256xf32>,
    return
  }
  func.func @transform_0(%arg0: i32) -> (i32, i32, i32, i32) {
    %c0_i32 = arith.constant 0 : i32
    %c0_i32_0 = arith.constant 0 : i32
    %c0_i32_1 = arith.constant 0 : i32
    %c0_i32_2 = arith.constant 0 : i32
    return %arg0, %c0_i32, %c0_i32_0, %c0_i32_1 : i32, i32, i32, i32
  }
  func.func @transform_1(%arg0: i32) -> (i32, i32) {
    %c0_i32 = arith.constant 0 : i32
    %c0_i32_0 = arith.constant 0 : i32
    %c0_i32_1 = arith.constant 0 : i32
    return %c0_i32, %c0_i32_0 : i32, i32
  }
  func.func @transform_2(%arg0: i32) -> (i32, i32) {
    %c0_i32 = arith.constant 0 : i32
    %c0_i32_0 = arith.constant 0 : i32
    %c0_i32_1 = arith.constant 0 : i32
    return %c0_i32, %c0_i32_0 : i32, i32
  }
  func.func @transform_3(%arg0: i32) -> (i32, i32) {
    %c0_i32 = arith.constant 0 : i32
    %c0_i32_0 = arith.constant 0 : i32
    %c0_i32_1 = arith.constant 0 : i32
    return %c0_i32, %c0_i32_0 : i32, i32
  }
  func.func @transform_4(%arg0: i32) -> (i32, i32) {
    %c0_i32 = arith.constant 0 : i32
    %c0_i32_0 = arith.constant 0 : i32
    %c0_i32_1 = arith.constant 0 : i32
    return %c0_i32, %c0_i32_0 : i32, i32
  }
  func.func @transform_5(%arg0: i32) -> (i32, i32) {
    %c0_i32 = arith.constant 0 : i32
    %c0_i32_0 = arith.constant 0 : i32
    %c0_i32_1 = arith.constant 0 : i32
    return %c0_i32, %c0_i32_0 : i32, i32
  }
  func.func @transform_6(%arg0: i32) -> (i32, i32) {
    %c0_i32 = arith.constant 0 : i32
    %c0_i32_0 = arith.constant 0 : i32
    %c0_i32_1 = arith.constant 0 : i32
    return %c0_i32, %c0_i32_0 : i32, i32
  }
  func.func @transform_7(%arg0: i32) -> (i32, i32, i32) {
    %c0_i32 = arith.constant 0 : i32
    %c0_i32_0 = arith.constant 0 : i32
    %c0_i32_1 = arith.constant 0 : i32
    return %arg0, %c0_i32, %c0_i32_0 : i32, i32, i32
  }
}

</mosaic_0001>

<llo_original>
// kernel: resnet_block_nchw.1
$region0: #{resnet_block_nchw.1}
  #allocation0 [shape = 'u32[]', space=smem, size = 0x4, offset = 0x4, fixed_abs, tag = 'smem constant byte address 0x4 - core index']
  #allocation1 [shape = 'u32[144,128]{1,0:T(1,128)}', space=vmem, size = 0x12000, scoped, tag = 'internal scratch']
  %s0 = inlined_call_operand.hbm [shape: f32[2,4,16,16], index: 0, kind: input, shape index: {}]
  %s1 = inlined_call_operand.vmem [shape: bf16[4,36], index: 1, kind: input, shape index: {}]
  %s2 = inlined_call_operand.vmem [shape: f32[4,1], index: 2, kind: input, shape index: {}]
  %s3 = inlined_call_operand.vmem [shape: f32[4,1], index: 3, kind: input, shape index: {}]
  %s4 = inlined_call_operand.vmem [shape: bf16[4,36], index: 4, kind: input, shape index: {}]
  %s5 = inlined_call_operand.vmem [shape: f32[4,1], index: 5, kind: input, shape index: {}]
  %s6 = inlined_call_operand.vmem [shape: f32[4,1], index: 6, kind: input, shape index: {}]
  %s7 = inlined_call_operand.vmem [shape: f32[2,4,256], index: 7, kind: output, shape index: {}]
  %s8 = sld [smem:[#allocation0]]
  $region65: #{resnet_block_nchw.1} parent=0
    _
  %s10 = ssub.s32 1, %s8
  %s11 = scalar_select 0, %s10, %s8
  $region1: #{resnet_block_nchw.1} parent=0
    #allocation2 [shape = 'u8[65536]{0}', space=vmem, size = 0x10000, scoped, tag = 'input window, operand 0']
    #allocation3 [shape = 's32[2]{0}', space=sflag, size = 0x8, scoped, tag = 'scoped memory for resnet_block_nchw.1']
    %12 = vsyncpa [#allocation3], 0
    %s13 = scalar_lea.sflag [#allocation3], 1
    %14 = vsyncpa %s13, 0
    loop: start=0, step=1, limit=4
    $region2: #{resnet_block_nchw.1} parent=1 // loop_pre_header
      _
    $region3: #{resnet_block_nchw.1} parent=1 // loop_header
      %s16 = sphi 0, %s20
      %p17 = scmp.ge.s32.totalorder %s16, 4
      %s26 = sphi 0, %s28
      %s29 = sphi 0, %s26
      %s30 = sphi 0, %s29
      %s46 = sphi 0, %s30
      %s50 = sphi 0, %s50
      %s52 = sphi 0, %s50
      %s53 = sphi 0, %s52
      %s67 = sphi 0, %s53
      %s71 = sphi 0, %s71
      %s73 = sphi 0, %s71
      %s74 = sphi 0, %s73
      %s88 = sphi 0, %s74
      %s92 = sphi 0, %s92
      %s94 = sphi 0, %s92
      %s95 = sphi 0, %s94
      %s109 = sphi 0, %s95
      %s113 = sphi 0, %s113
      %s115 = sphi 0, %s113
      %s116 = sphi 0, %s115
      %s130 = sphi 0, %s116
      %s134 = sphi 0, %s134
      %s136 = sphi 0, %s134
      %s137 = sphi 0, %s136
      %s151 = sphi 0, %s137
      %s155 = sphi 0, %s155
      %s157 = sphi 0, %s155
      %s158 = sphi 0, %s157
      %s172 = sphi 0, %s158
      %s178 = sphi 0, %s180
      %s181 = sphi 0, %s178
      %s182 = sphi 0, %s181
      %s198 = sphi 0, %s182
    $region4: #{resnet_block_nchw.1} parent=1 // loop_header_branch
      %19 = sbr.rel (%p17) target = $region8
    $region5: #{resnet_block_nchw.1} parent=1 // loop_body
      %s21 = ssub.s32 %s16, 1
      %s22 = ssub.s32 %s16, 2
      %s23 = sadd.s32 %s16, 1
      %s24 = ssub.s32 %s16, %s23
      %p25 = scmp.eq.s32.totalorder %s24, 0
      %s27 = sadd.s32 %s26, 1
      %s28 = scalar_select %p25, %s26, %s27
      %p31 = pneg %p25
      %p32 = scmp.eq.s32.totalorder %s16, 1
      %p33 = por %p31, %p32
      %p34 = scmp.ne.s32.totalorder %s26, %s29
      %p35 = scmp.eq.s32.totalorder %s16, 0
      %p36 = por %p34, %p35
      %p37 = scmp.ne.s32.totalorder %s26, %s29
      %p38 = scmp.eq.s32.totalorder %s21, 1
      %p39 = por %p37, %p38
      %p40 = scmp.ne.s32.totalorder %s29, %s30
      %p41 = scmp.eq.s32.totalorder %s21, 0
      %p42 = por %p40, %p41
      %p43 = scmp.ne.s32.totalorder %s29, %s30
      %p44 = scmp.eq.s32.totalorder %s22, 1
      %p45 = por %p43, %p44
      %p47 = scmp.ne.s32.totalorder %s30, %s46
      %p48 = scmp.eq.s32.totalorder %s22, 0
      %p49 = por %p47, %p48
      %s51 = sadd.s32 %s50, 1
      %p54 = scmp.eq.s32.totalorder %s16, 1
      %p55 = scmp.ne.s32.totalorder %s50, %s52
      %p56 = scmp.eq.s32.totalorder %s16, 0
      %p57 = por %p55, %p56
      %p58 = scmp.ne.s32.totalorder %s50, %s52
      %p59 = scmp.eq.s32.totalorder %s21, 1
      %p60 = por %p58, %p59
      %p61 = scmp.ne.s32.totalorder %s52, %s53
      %p62 = scmp.eq.s32.totalorder %s21, 0
      %p63 = por %p61, %p62
      %p64 = scmp.ne.s32.totalorder %s52, %s53
      %p65 = scmp.eq.s32.totalorder %s22, 1
      %p66 = por %p64, %p65
      %p68 = scmp.ne.s32.totalorder %s53, %s67
      %p69 = scmp.eq.s32.totalorder %s22, 0
      %p70 = por %p68, %p69
      %s72 = sadd.s32 %s71, 1
      %p75 = scmp.eq.s32.totalorder %s16, 1
      %p76 = scmp.ne.s32.totalorder %s71, %s73
      %p77 = scmp.eq.s32.totalorder %s16, 0
      %p78 = por %p76, %p77
      %p79 = scmp.ne.s32.totalorder %s71, %s73
      %p80 = scmp.eq.s32.totalorder %s21, 1
      %p81 = por %p79, %p80
      %p82 = scmp.ne.s32.totalorder %s73, %s74
      %p83 = scmp.eq.s32.totalorder %s21, 0
      %p84 = por %p82, %p83
      %p85 = scmp.ne.s32.totalorder %s73, %s74
      %p86 = scmp.eq.s32.totalorder %s22, 1
      %p87 = por %p85, %p86
      %p89 = scmp.ne.s32.totalorder %s74, %s88
      %p90 = scmp.eq.s32.totalorder %s22, 0
      %p91 = por %p89, %p90
      %s93 = sadd.s32 %s92, 1
      %p96 = scmp.eq.s32.totalorder %s16, 1
      %p97 = scmp.ne.s32.totalorder %s92, %s94
      %p98 = scmp.eq.s32.totalorder %s16, 0
      %p99 = por %p97, %p98
      %p100 = scmp.ne.s32.totalorder %s92, %s94
      %p101 = scmp.eq.s32.totalorder %s21, 1
      %p102 = por %p100, %p101
      %p103 = scmp.ne.s32.totalorder %s94, %s95
      %p104 = scmp.eq.s32.totalorder %s21, 0
      %p105 = por %p103, %p104
      %p106 = scmp.ne.s32.totalorder %s94, %s95
      %p107 = scmp.eq.s32.totalorder %s22, 1
      %p108 = por %p106, %p107
      %p110 = scmp.ne.s32.totalorder %s95, %s109
      %p111 = scmp.eq.s32.totalorder %s22, 0
      %p112 = por %p110, %p111
      %s114 = sadd.s32 %s113, 1
      %p117 = scmp.eq.s32.totalorder %s16, 1
      %p118 = scmp.ne.s32.totalorder %s113, %s115
      %p119 = scmp.eq.s32.totalorder %s16, 0
      %p120 = por %p118, %p119
      %p121 = scmp.ne.s32.totalorder %s113, %s115
      %p122 = scmp.eq.s32.totalorder %s21, 1
      %p123 = por %p121, %p122
      %p124 = scmp.ne.s32.totalorder %s115, %s116
      %p125 = scmp.eq.s32.totalorder %s21, 0
      %p126 = por %p124, %p125
      %p127 = scmp.ne.s32.totalorder %s115, %s116
      %p128 = scmp.eq.s32.totalorder %s22, 1
      %p129 = por %p127, %p128
      %p131 = scmp.ne.s32.totalorder %s116, %s130
      %p132 = scmp.eq.s32.totalorder %s22, 0
      %p133 = por %p131, %p132
      %s135 = sadd.s32 %s134, 1
      %p138 = scmp.eq.s32.totalorder %s16, 1
      %p139 = scmp.ne.s32.totalorder %s134, %s136
      %p140 = scmp.eq.s32.totalorder %s16, 0
      %p141 = por %p139, %p140
      %p142 = scmp.ne.s32.totalorder %s134, %s136
      %p143 = scmp.eq.s32.totalorder %s21, 1
      %p144 = por %p142, %p143
      %p145 = scmp.ne.s32.totalorder %s136, %s137
      %p146 = scmp.eq.s32.totalorder %s21, 0
      %p147 = por %p145, %p146
      %p148 = scmp.ne.s32.totalorder %s136, %s137
      %p149 = scmp.eq.s32.totalorder %s22, 1
      %p150 = por %p148, %p149
      %p152 = scmp.ne.s32.totalorder %s137, %s151
      %p153 = scmp.eq.s32.totalorder %s22, 0
      %p154 = por %p152, %p153
      %s156 = sadd.s32 %s155, 1
      %p159 = scmp.eq.s32.totalorder %s16, 1
      %p160 = scmp.ne.s32.totalorder %s155, %s157
      %p161 = scmp.eq.s32.totalorder %s16, 0
      %p162 = por %p160, %p161
      %p163 = scmp.ne.s32.totalorder %s155, %s157
      %p164 = scmp.eq.s32.totalorder %s21, 1
      %p165 = por %p163, %p164
      %p166 = scmp.ne.s32.totalorder %s157, %s158
      %p167 = scmp.eq.s32.totalorder %s21, 0
      %p168 = por %p166, %p167
      %p169 = scmp.ne.s32.totalorder %s157, %s158
      %p170 = scmp.eq.s32.totalorder %s22, 1
      %p171 = por %p169, %p170
      %p173 = scmp.ne.s32.totalorder %s158, %s172
      %p174 = scmp.eq.s32.totalorder %s22, 0
      %p175 = por %p173, %p174
      %s176 = ssub.s32 %s16, %s23
      %p177 = scmp.eq.s32.totalorder %s176, 0
      %s179 = sadd.s32 %s178, 1
      %s180 = scalar_select %p177, %s178, %s179
      %p183 = pneg %p177
      %p184 = scmp.eq.s32.totalorder %s16, 1
      %p185 = por %p183, %p184
      %p186 = scmp.ne.s32.totalorder %s178, %s181
      %p187 = scmp.eq.s32.totalorder %s16, 0
      %p188 = por %p186, %p187
      %p189 = scmp.ne.s32.totalorder %s178, %s181
      %p190 = scmp.eq.s32.totalorder %s21, 1
      %p191 = por %p189, %p190
      %p192 = scmp.ne.s32.totalorder %s181, %s182
      %p193 = scmp.eq.s32.totalorder %s21, 0
      %p194 = por %p192, %p193
      %p195 = scmp.ne.s32.totalorder %s181, %s182
      %p196 = scmp.eq.s32.totalorder %s22, 1
      %p197 = por %p195, %p196
      %p199 = scmp.ne.s32.totalorder %s182, %s198
      %p200 = scmp.eq.s32.totalorder %s22, 0
      %p201 = por %p199, %p200
      %p202 = scmp.le.s32.totalorder 1, %s16
      %p203 = scmp.lt.s32.totalorder %s16, 3
      %p204 = pnand %p202, %p203
      %p205 = pneg %p204
      // Predicated region
      $region9: #{resnet_block_nchw.1} parent=5 // pred_check
        _
      $region10: #{resnet_block_nchw.1} parent=5 // pred_check_branch
        %207 = sbr.rel (%p204) target = $region12
      $region11: #{resnet_block_nchw.1} parent=5 // pred_region
        %s208 = ssub.s32 %s16, 1
        // Predicated region
        $region13: #{resnet_block_nchw.1} parent=11 // pred_check
          %p209 = pneg %p63
        $region14: #{resnet_block_nchw.1} parent=11 // pred_check_branch
          %211 = sbr.rel (%p209) target = $region16
        $region15: #{resnet_block_nchw.1} parent=11 // pred_region
          _
        $region16: #{resnet_block_nchw.1} parent=11 // pred_fallthru
          _
        // Predicated region
        $region17: #{resnet_block_nchw.1} parent=11 // pred_check
          %p212 = pneg %p84
        $region18: #{resnet_block_nchw.1} parent=11 // pred_check_branch
          %214 = sbr.rel (%p212) target = $region20
        $region19: #{resnet_block_nchw.1} parent=11 // pred_region
          _
        $region20: #{resnet_block_nchw.1} parent=11 // pred_fallthru
          _
        // Predicated region
        $region21: #{resnet_block_nchw.1} parent=11 // pred_check
          %p215 = pneg %p105
        $region22: #{resnet_block_nchw.1} parent=11 // pred_check_branch
          %217 = sbr.rel (%p215) target = $region24
        $region23: #{resnet_block_nchw.1} parent=11 // pred_region
          _
        $region24: #{resnet_block_nchw.1} parent=11 // pred_fallthru
          _
        // Predicated region
        $region25: #{resnet_block_nchw.1} parent=11 // pred_check
          %p218 = pneg %p126
        $region26: #{resnet_block_nchw.1} parent=11 // pred_check_branch
          %220 = sbr.rel (%p218) target = $region28
        $region27: #{resnet_block_nchw.1} parent=11 // pred_region
          _
        $region28: #{resnet_block_nchw.1} parent=11 // pred_fallthru
          _
        // Predicated region
        $region29: #{resnet_block_nchw.1} parent=11 // pred_check
          %p221 = pneg %p147
        $region30: #{resnet_block_nchw.1} parent=11 // pred_check_branch
          %223 = sbr.rel (%p221) target = $region32
        $region31: #{resnet_block_nchw.1} parent=11 // pred_region
          _
        $region32: #{resnet_block_nchw.1} parent=11 // pred_fallthru
          _
        // Predicated region
        $region33: #{resnet_block_nchw.1} parent=11 // pred_check
          %p224 = pneg %p168
        $region34: #{resnet_block_nchw.1} parent=11 // pred_check_branch
          %226 = sbr.rel (%p224) target = $region36
        $region35: #{resnet_block_nchw.1} parent=11 // pred_region
          _
        $region36: #{resnet_block_nchw.1} parent=11 // pred_fallthru
          _
      $region12: #{resnet_block_nchw.1} parent=5 // pred_fallthru
        _
      %p227 = scmp.lt.s32.totalorder %s16, 2
      // Predicated region
      $region37: #{resnet_block_nchw.1} parent=5 // pred_check
        %p228 = pneg %p227
      $region38: #{resnet_block_nchw.1} parent=5 // pred_check_branch
        %230 = sbr.rel (%p228) target = $region40
      $region39: #{resnet_block_nchw.1} parent=5 // pred_region
        // Predicated region
        $region41: #{resnet_block_nchw.1} parent=39 // pred_check
          %p231 = pneg %p36
        $region42: #{resnet_block_nchw.1} parent=39 // pred_check_branch
          %233 = sbr.rel (%p231) target = $region44
        $region43: #{resnet_block_nchw.1} parent=39 // pred_region
          %s234 = sand.u32 %s26, 1
          %s235 = scalar_lea.sflag [#allocation3], %s234
          %s236 = sand.u32 %s26, 1
          %s237 = smul.addr %s236, 64
          %s238 = scalar_lea.vmem [#allocation2], %s237
          %s240 = ssub.s32 1024, 1024
          %241 = vsyncadd %s235, %s240
          %s242 = smul.addr %s16, 8
          %s243 = smul.addr %s242, 128
          %s244 = scalar_lea.hbm %s0, %s243
          %s245 = sshll.u32 %s238, 4
          %s246 = int_to_ptr.vmem [resolvable:$true] %s245
          %251 = dma.hbm_to_vmem [thread:$0]  %s244, 1024, %s246, %s235, 128, 128, 8
        $region44: #{resnet_block_nchw.1} parent=39 // pred_fallthru
          _
      $region40: #{resnet_block_nchw.1} parent=5 // pred_fallthru
        _
      %p252 = scmp.le.s32.totalorder 1, %s16
      %p253 = scmp.lt.s32.totalorder %s16, 3
      %p254 = pnand %p252, %p253
      %p255 = pneg %p254
      // Predicated region
      $region45: #{resnet_block_nchw.1} parent=5 // pred_check
        _
      $region46: #{resnet_block_nchw.1} parent=5 // pred_check_branch
        %257 = sbr.rel (%p254) target = $region48
      $region47: #{resnet_block_nchw.1} parent=5 // pred_region
        %s258 = ssub.s32 %s16, 1
        %s259 = sand.u32 %s29, 1
        %s260 = scalar_lea.sflag [#allocation3], %s259
        %s261 = sand.u32 %s29, 1
        %s262 = smul.addr %s261, 64
        %s263 = scalar_lea.vmem [#allocation2], %s262
        // Predicated region
        $region49: #{resnet_block_nchw.1} parent=47 // pred_check
          %p264 = pneg %p42
        $region50: #{resnet_block_nchw.1} parent=47 // pred_check_branch
          %266 = sbr.rel (%p264) target = $region52
        $region51: #{resnet_block_nchw.1} parent=47 // pred_region
          %267 = dma.done %s260, 1024
        $region52: #{resnet_block_nchw.1} parent=47 // pred_fallthru
          _
        %s268 = sand.u32 %s29, 1
        %s269 = scalar_lea.sflag [#allocation3], %s268
        %s270 = sand.u32 %s29, 1
        %s271 = smul.addr %s270, 64
        %s272 = scalar_lea.vmem [#allocation2], %s271
        %p273 = pneg %p42
        %p274 = pneg %p39
        %p275 = pneg %p63
        %p276 = pneg %p60
        %p277 = pneg %p84
        %p278 = pneg %p81
        %p279 = pneg %p105
        %p280 = pneg %p102
        %p281 = pneg %p126
        %p282 = pneg %p123
        %p283 = pneg %p147
        %p284 = pneg %p144
        %p285 = pneg %p168
        %p286 = pneg %p165
        %p287 = pneg %p194
        %p288 = pneg %p191
        %p289 = scmp.lt.s32.totalorder %s21, 1
        %s290 = scalar_select %p289, %s21, 1
        %s291 = smul.addr %s290, 2
        %s292 = smul.addr %s291, 4
        %s293 = scalar_lea.vmem %s7, %s292
        %p294 = scmp.lt.s32.totalorder %s21, 1
        %s295 = scalar_select %p294, %s21, 1
        %s296 = smul.addr %s295, 2
        %s297 = smul.addr %s296, 4
        %s298 = scalar_lea.vmem %s7, %s297
        %v300 = vld [vmem:[%s263] sm:$0xff]
        %v301 = vld [vmem:[%s263 + $0x8] sm:$0xff]
        %v302 = vld [vmem:[%s263 + $0x10] sm:$0xff]
        %v303 = vld [vmem:[%s263 + $0x18] sm:$0xff]
        %v304 = vld [vmem:[%s263 + $0x20] sm:$0xff]
        %v305 = vld [vmem:[%s263 + $0x28] sm:$0xff]
        %v306 = vld [vmem:[%s263 + $0x30] sm:$0xff]
        %v307 = vld [vmem:[%s263 + $0x38] sm:$0xff]
        %v308 = vpack.c.bf16 %v301, %v300
        %v309 = vpack.c.bf16 %v303, %v302
        %v310 = vpack.c.bf16 %v305, %v304
        %v311 = vpack.c.bf16 %v307, %v306
        %v313 = vshrl.u32 %v308, 16
        %v316 = vshrl.u32 %v309, 16
        %v319 = vshrl.u32 %v310, 16
        %v322 = vshrl.u32 %v311, 16
        %v328 = vrot.slane %v313, 7
        %v329 = vshll.u32 %v308, 16
        %v331 = vor.u32 %v328, %v329
        %v332 = vrot.slane %v316, 7
        %v333 = vshll.u32 %v309, 16
        %v335 = vor.u32 %v332, %v333
        %v336 = vrot.slane %v319, 7
        %v337 = vshll.u32 %v310, 16
        %v339 = vor.u32 %v336, %v337
        %v340 = vrot.slane %v322, 7
        %v341 = vshll.u32 %v311, 16
        %v343 = vor.u32 %v340, %v341
        %v352 = vrot.slane %v329, 7
        %v353 = vrot.slane %v333, 7
        %v354 = vrot.slane %v337, 7
        %v355 = vrot.slane %v341, 7
        %vm360 = vcmask 1040384
        %vm361 = vsmask.f32 256
        %vm362 = vmand %vm360, %vm361
        %v363 = vsel %vm362, %v313, %v331
        %v364 = vsel %vm362, %v316, %v335
        %v365 = vsel %vm362, %v319, %v339
        %v366 = vsel %vm362, %v322, %v343
        %v367 = vsel %vm362, %v328, %v352
        %v368 = vsel %vm362, %v332, %v353
        %v369 = vsel %vm362, %v336, %v354
        %v370 = vsel %vm362, %v340, %v355
        %379 = vrot.lane.b32.xlu0 %v363, 127
        %v380 = vpop.permute.xlu0 %379
        %381 = vrot.lane.b32.xlu0 %v367, 127
        %v382 = vpop.permute.xlu0 %381
        %383 = vrot.lane.b32.xlu0 %v364, 127
        %v384 = vpop.permute.xlu0 %383
        %385 = vrot.lane.b32.xlu0 %v368, 127
        %v386 = vpop.permute.xlu0 %385
        %387 = vrot.lane.b32.xlu0 %v365, 127
        %v388 = vpop.permute.xlu0 %387
        %389 = vrot.lane.b32.xlu0 %v369, 127
        %v390 = vpop.permute.xlu0 %389
        %391 = vrot.lane.b32.xlu0 %v366, 127
        %v392 = vpop.permute.xlu0 %391
        %393 = vrot.lane.b32.xlu0 %v370, 127
        %v394 = vpop.permute.xlu0 %393
        %395 = vrot.lane.b32.xlu0 %v363, 1
        %v396 = vpop.permute.xlu0 %395
        %397 = vrot.lane.b32.xlu0 %v367, 1
        %v398 = vpop.permute.xlu0 %397
        %399 = vrot.lane.b32.xlu0 %v364, 1
        %v400 = vpop.permute.xlu0 %399
        %401 = vrot.lane.b32.xlu0 %v368, 1
        %v402 = vpop.permute.xlu0 %401
        %403 = vrot.lane.b32.xlu0 %v365, 1
        %v404 = vpop.permute.xlu0 %403
        %405 = vrot.lane.b32.xlu0 %v369, 1
        %v406 = vpop.permute.xlu0 %405
        %407 = vrot.lane.b32.xlu0 %v366, 1
        %v408 = vpop.permute.xlu0 %407
        %409 = vrot.lane.b32.xlu0 %v370, 1
        %v410 = vpop.permute.xlu0 %409
        %411 = vrot.lane.b32.xlu0 %v363, 3
        %v412 = vpop.permute.xlu0 %411
        %413 = vrot.lane.b32.xlu0 %v367, 3
        %v414 = vpop.permute.xlu0 %413
        %415 = vrot.lane.b32.xlu0 %v364, 3
        %v416 = vpop.permute.xlu0 %415
        %417 = vrot.lane.b32.xlu0 %v368, 3
        %v418 = vpop.permute.xlu0 %417
        %419 = vrot.lane.b32.xlu0 %v365, 3
        %v420 = vpop.permute.xlu0 %419
        %421 = vrot.lane.b32.xlu0 %v369, 3
        %v422 = vpop.permute.xlu0 %421
        %423 = vrot.lane.b32.xlu0 %v366, 3
        %v424 = vpop.permute.xlu0 %423
        %425 = vrot.lane.b32.xlu0 %v370, 3
        %v426 = vpop.permute.xlu0 %425
        %vm427 = vcmask 7168
        %v430 = vsel %vm427, %v380, %v396
        %v433 = vsel %vm427, %v382, %v398
        %v436 = vsel %vm427, %v384, %v400
        %v439 = vsel %vm427, %v386, %v402
        %v442 = vsel %vm427, %v388, %v404
        %v445 = vsel %vm427, %v390, %v406
        %v448 = vsel %vm427, %v392, %v408
        %v451 = vsel %vm427, %v394, %v410
        %vm452 = vcmask 138240
        %v454 = vsel %vm452, %v430, %v412
        %v456 = vsel %vm452, %v433, %v414
        %v458 = vsel %vm452, %v436, %v416
        %v460 = vsel %vm452, %v439, %v418
        %v462 = vsel %vm452, %v442, %v420
        %v464 = vsel %vm452, %v445, %v422
        %v466 = vsel %vm452, %v448, %v424
        %v468 = vsel %vm452, %v451, %v426
        %v469 = vld [vmem:[%s1] sm:$0x3]
        %v470 = vpack.i.b16 %v458, %v454
        %v472 = vshrl.u32 %v454, 16
        %v473 = vshrl.u32 %v458, 16
        %v474 = vpack.i.b16 %v473, %v472
        %v476 = vpack.i.b16 %v466, %v462
        %v478 = vshrl.u32 %v462, 16
        %v479 = vshrl.u32 %v466, 16
        %v480 = vpack.i.b16 %v479, %v478
        %v483 = vpack.i.b16 0, 0
        %v485 = vshrl.u32 0, 16
        %v486 = vpack.i.b16 %v485, %v485
        %v488 = vcombine.high %v470, %v483
        %v490 = vunpack.c.l.s4 1983009808
        %v491 = vunpack.c.0.s8 %v490
        %v492 = vlaneseq
        %v493 = vshrl.u32 %v492, 7
        %v494 = vsub.s32 %v491, %v493
        %v495 = vrot.slane %v470, %v494
        %v497 = vunpack.c.l.s4 1983009808
        %v498 = vunpack.c.0.s8 %v497
        %v499 = vlaneseq
        %v500 = vshrl.u32 %v499, 7
        %v501 = vsub.s32 %v498, %v500
        %v502 = vrot.slane %v488, %v501
        %v503 = vcombine.high %v476, %v483
        %v505 = vunpack.c.l.s4 1983009808
        %v506 = vunpack.c.0.s8 %v505
        %v507 = vlaneseq
        %v508 = vshrl.u32 %v507, 7
        %v509 = vsub.s32 %v506, %v508
        %v510 = vrot.slane %v476, %v509
        %v512 = vunpack.c.l.s4 1983009808
        %v513 = vunpack.c.0.s8 %v512
        %v514 = vlaneseq
        %v515 = vshrl.u32 %v514, 7
        %v516 = vsub.s32 %v513, %v515
        %v517 = vrot.slane %v503, %v516
        %v518 = vcombine.low %v495, %v510
        %v519 = vcombine.high %v495, %v510
        %v521 = vunpack.c.l.s4 1934713408
        %v522 = vunpack.c.0.s8 %v521
        %v523 = vlaneseq
        %v524 = vshrl.u32 %v523, 7
        %v525 = vsub.s32 %v522, %v524
        %v526 = vrot.slane %v518, %v525
        %v528 = vunpack.c.l.s4 1934713408
        %v529 = vunpack.c.0.s8 %v528
        %v530 = vlaneseq
        %v531 = vshrl.u32 %v530, 7
        %v532 = vsub.s32 %v529, %v531
        %v533 = vrot.slane %v519, %v532
        %v534 = vcombine.low %v502, %v517
        %v535 = vcombine.high %v502, %v517
        %v537 = vunpack.c.l.s4 1934713408
        %v538 = vunpack.c.0.s8 %v537
        %v539 = vlaneseq
        %v540 = vshrl.u32 %v539, 7
        %v541 = vsub.s32 %v538, %v540
        %v542 = vrot.slane %v534, %v541
        %v544 = vunpack.c.l.s4 1934713408
        %v545 = vunpack.c.0.s8 %v544
        %v546 = vlaneseq
        %v547 = vshrl.u32 %v546, 7
        %v548 = vsub.s32 %v545, %v547
        %v549 = vrot.slane %v535, %v548
        %v550 = vcombine.high %v526, 0
        %v551 = vcombine.high %v533, 0
        %v552 = vcombine.high %v542, 0
        %v553 = vcombine.high %v549, 0
        %v554 = vcombine.high %v474, %v486
        %v556 = vunpack.c.l.s4 1983009808
        %v557 = vunpack.c.0.s8 %v556
        %v558 = vlaneseq
        %v559 = vshrl.u32 %v558, 7
        %v560 = vsub.s32 %v557, %v559
        %v561 = vrot.slane %v474, %v560
        %v563 = vunpack.c.l.s4 1983009808
        %v564 = vunpack.c.0.s8 %v563
        %v565 = vlaneseq
        %v566 = vshrl.u32 %v565, 7
        %v567 = vsub.s32 %v564, %v566
        %v568 = vrot.slane %v554, %v567
        %v569 = vcombine.high %v480, %v486
        %v571 = vunpack.c.l.s4 1983009808
        %v572 = vunpack.c.0.s8 %v571
        %v573 = vlaneseq
        %v574 = vshrl.u32 %v573, 7
        %v575 = vsub.s32 %v572, %v574
        %v576 = vrot.slane %v480, %v575
        %v578 = vunpack.c.l.s4 1983009808
        %v579 = vunpack.c.0.s8 %v578
        %v580 = vlaneseq
        %v581 = vshrl.u32 %v580, 7
        %v582 = vsub.s32 %v579, %v581
        %v583 = vrot.slane %v569, %v582
        %v584 = vcombine.low %v561, %v576
        %v585 = vcombine.high %v561, %v576
        %v587 = vunpack.c.l.s4 1934713408
        %v588 = vunpack.c.0.s8 %v587
        %v589 = vlaneseq
        %v590 = vshrl.u32 %v589, 7
        %v591 = vsub.s32 %v588, %v590
        %v592 = vrot.slane %v584, %v591
        %v594 = vunpack.c.l.s4 1934713408
        %v595 = vunpack.c.0.s8 %v594
        %v596 = vlaneseq
        %v597 = vshrl.u32 %v596, 7
        %v598 = vsub.s32 %v595, %v597
        %v599 = vrot.slane %v585, %v598
        %v600 = vcombine.low %v568, %v583
        %v601 = vcombine.high %v568, %v583
        %v603 = vunpack.c.l.s4 1934713408
        %v604 = vunpack.c.0.s8 %v603
        %v605 = vlaneseq
        %v606 = vshrl.u32 %v605, 7
        %v607 = vsub.s32 %v604, %v606
        %v608 = vrot.slane %v600, %v607
        %v610 = vunpack.c.l.s4 1934713408
        %v611 = vunpack.c.0.s8 %v610
        %v612 = vlaneseq
        %v613 = vshrl.u32 %v612, 7
        %v614 = vsub.s32 %v611, %v613
        %v615 = vrot.slane %v601, %v614
        %v616 = vcombine.high %v592, 0
        %v617 = vcombine.high %v599, 0
        %v618 = vcombine.high %v608, 0
        %v619 = vcombine.high %v615, 0
        %621 = vrot.lane.b32.xlu0 %v592, 16
        %v622 = vpop.permute.xlu0 %621
        %624 = vrot.lane.b32.xlu0 %v550, 32
        %v625 = vpop.permute.xlu0 %624
        %627 = vrot.lane.b32.xlu0 %v616, 48
        %v628 = vpop.permute.xlu0 %627
        %630 = vrot.lane.b32.xlu0 %v533, 64
        %v631 = vpop.permute.xlu0 %630
        %633 = vrot.lane.b32.xlu0 %v599, 80
        %v634 = vpop.permute.xlu0 %633
        %636 = vrot.lane.b32.xlu0 %v551, 96
        %v637 = vpop.permute.xlu0 %636
        %639 = vrot.lane.b32.xlu0 %v617, 112
        %v640 = vpop.permute.xlu0 %639
        %642 = vrot.lane.b32.xlu0 %v608, 16
        %v643 = vpop.permute.xlu0 %642
        %645 = vrot.lane.b32.xlu0 %v552, 32
        %v646 = vpop.permute.xlu0 %645
        %648 = vrot.lane.b32.xlu0 %v618, 48
        %v649 = vpop.permute.xlu0 %648
        %651 = vrot.lane.b32.xlu0 %v549, 64
        %v652 = vpop.permute.xlu0 %651
        %654 = vrot.lane.b32.xlu0 %v615, 80
        %v655 = vpop.permute.xlu0 %654
        %657 = vrot.lane.b32.xlu0 %v553, 96
        %v658 = vpop.permute.xlu0 %657
        %660 = vrot.lane.b32.xlu0 %v619, 112
        %v661 = vpop.permute.xlu0 %660
        %vm662 = vcmask 130048
        %v665 = vsel %vm662, %v526, %v622
        %vm666 = vcmask 261120
        %v668 = vsel %vm666, %v665, %v625
        %vm669 = vcmask 392192
        %v671 = vsel %vm669, %v668, %v628
        %vm672 = vcmask 523264
        %v674 = vsel %vm672, %v671, %v631
        %vm675 = vcmask 654336
        %v677 = vsel %vm675, %v674, %v634
        %vm678 = vcmask 785408
        %v680 = vsel %vm678, %v677, %v637
        %vm681 = vcmask 916480
        %v683 = vsel %vm681, %v680, %v640
        %v686 = vsel %vm662, %v542, %v643
        %v688 = vsel %vm666, %v686, %v646
        %v690 = vsel %vm669, %v688, %v649
        %v692 = vsel %vm672, %v690, %v652
        %v694 = vsel %vm675, %v692, %v655
        %v696 = vsel %vm678, %v694, %v658
        %v698 = vsel %vm681, %v696, %v661
        %703 = vrot.lane.b32.xlu0 %v454, 127
        %v704 = vpop.permute.xlu0 %703
        %705 = vrot.lane.b32.xlu0 %v458, 127
        %v706 = vpop.permute.xlu0 %705
        %707 = vrot.lane.b32.xlu0 %v462, 127
        %v708 = vpop.permute.xlu0 %707
        %709 = vrot.lane.b32.xlu0 %v466, 127
        %v710 = vpop.permute.xlu0 %709
        %v713 = vpack.i.b16 %v706, %v704
        %v715 = vshrl.u32 %v704, 16
        %v716 = vshrl.u32 %v706, 16
        %v717 = vpack.i.b16 %v716, %v715
        %v721 = vpack.i.b16 %v710, %v708
        %v723 = vshrl.u32 %v708, 16
        %v724 = vshrl.u32 %v710, 16
        %v725 = vpack.i.b16 %v724, %v723
        %v727 = vcombine.high %v713, %v483
        %v729 = vunpack.c.l.s4 1983009808
        %v730 = vunpack.c.0.s8 %v729
        %v731 = vlaneseq
        %v732 = vshrl.u32 %v731, 7
        %v733 = vsub.s32 %v730, %v732
        %v734 = vrot.slane %v713, %v733
        %v736 = vunpack.c.l.s4 1983009808
        %v737 = vunpack.c.0.s8 %v736
        %v738 = vlaneseq
        %v739 = vshrl.u32 %v738, 7
        %v740 = vsub.s32 %v737, %v739
        %v741 = vrot.slane %v727, %v740
        %v742 = vcombine.high %v721, %v483
        %v744 = vunpack.c.l.s4 1983009808
        %v745 = vunpack.c.0.s8 %v744
        %v746 = vlaneseq
        %v747 = vshrl.u32 %v746, 7
        %v748 = vsub.s32 %v745, %v747
        %v749 = vrot.slane %v721, %v748
        %v751 = vunpack.c.l.s4 1983009808
        %v752 = vunpack.c.0.s8 %v751
        %v753 = vlaneseq
        %v754 = vshrl.u32 %v753, 7
        %v755 = vsub.s32 %v752, %v754
        %v756 = vrot.slane %v742, %v755
        %v757 = vcombine.low %v734, %v749
        %v758 = vcombine.high %v734, %v749
        %v760 = vunpack.c.l.s4 1934713408
        %v761 = vunpack.c.0.s8 %v760
        %v762 = vlaneseq
        %v763 = vshrl.u32 %v762, 7
        %v764 = vsub.s32 %v761, %v763
        %v765 = vrot.slane %v757, %v764
        %v767 = vunpack.c.l.s4 1934713408
        %v768 = vunpack.c.0.s8 %v767
        %v769 = vlaneseq
        %v770 = vshrl.u32 %v769, 7
        %v771 = vsub.s32 %v768, %v770
        %v772 = vrot.slane %v758, %v771
        %v773 = vcombine.low %v741, %v756
        %v774 = vcombine.high %v741, %v756
        %v776 = vunpack.c.l.s4 1934713408
        %v777 = vunpack.c.0.s8 %v776
        %v778 = vlaneseq
        %v779 = vshrl.u32 %v778, 7
        %v780 = vsub.s32 %v777, %v779
        %v781 = vrot.slane %v773, %v780
        %v783 = vunpack.c.l.s4 1934713408
        %v784 = vunpack.c.0.s8 %v783
        %v785 = vlaneseq
        %v786 = vshrl.u32 %v785, 7
        %v787 = vsub.s32 %v784, %v786
        %v788 = vrot.slane %v774, %v787
        %v789 = vcombine.high %v765, 0
        %v790 = vcombine.high %v772, 0
        %v791 = vcombine.high %v781, 0
        %v792 = vcombine.high %v788, 0
        %v793 = vcombine.high %v717, %v486
        %v795 = vunpack.c.l.s4 1983009808
        %v796 = vunpack.c.0.s8 %v795
        %v797 = vlaneseq
        %v798 = vshrl.u32 %v797, 7
        %v799 = vsub.s32 %v796, %v798
        %v800 = vrot.slane %v717, %v799
        %v802 = vunpack.c.l.s4 1983009808
        %v803 = vunpack.c.0.s8 %v802
        %v804 = vlaneseq
        %v805 = vshrl.u32 %v804, 7
        %v806 = vsub.s32 %v803, %v805
        %v807 = vrot.slane %v793, %v806
        %v808 = vcombine.high %v725, %v486
        %v810 = vunpack.c.l.s4 1983009808
        %v811 = vunpack.c.0.s8 %v810
        %v812 = vlaneseq
        %v813 = vshrl.u32 %v812, 7
        %v814 = vsub.s32 %v811, %v813
        %v815 = vrot.slane %v725, %v814
        %v817 = vunpack.c.l.s4 1983009808
        %v818 = vunpack.c.0.s8 %v817
        %v819 = vlaneseq
        %v820 = vshrl.u32 %v819, 7
        %v821 = vsub.s32 %v818, %v820
        %v822 = vrot.slane %v808, %v821
        %v823 = vcombine.low %v800, %v815
        %v824 = vcombine.high %v800, %v815
        %v826 = vunpack.c.l.s4 1934713408
        %v827 = vunpack.c.0.s8 %v826
        %v828 = vlaneseq
        %v829 = vshrl.u32 %v828, 7
        %v830 = vsub.s32 %v827, %v829
        %v831 = vrot.slane %v823, %v830
        %v833 = vunpack.c.l.s4 1934713408
        %v834 = vunpack.c.0.s8 %v833
        %v835 = vlaneseq
        %v836 = vshrl.u32 %v835, 7
        %v837 = vsub.s32 %v834, %v836
        %v838 = vrot.slane %v824, %v837
        %v839 = vcombine.low %v807, %v822
        %v840 = vcombine.high %v807, %v822
        %v842 = vunpack.c.l.s4 1934713408
        %v843 = vunpack.c.0.s8 %v842
        %v844 = vlaneseq
        %v845 = vshrl.u32 %v844, 7
        %v846 = vsub.s32 %v843, %v845
        %v847 = vrot.slane %v839, %v846
        %v849 = vunpack.c.l.s4 1934713408
        %v850 = vunpack.c.0.s8 %v849
        %v851 = vlaneseq
        %v852 = vshrl.u32 %v851, 7
        %v853 = vsub.s32 %v850, %v852
        %v854 = vrot.slane %v840, %v853
        %v855 = vcombine.high %v831, 0
        %v856 = vcombine.high %v838, 0
        %v857 = vcombine.high %v847, 0
        %v858 = vcombine.high %v854, 0
        %860 = vrot.lane.b32.xlu0 %v831, 16
        %v861 = vpop.permute.xlu0 %860
        %863 = vrot.lane.b32.xlu0 %v789, 32
        %v864 = vpop.permute.xlu0 %863
        %866 = vrot.lane.b32.xlu0 %v855, 48
        %v867 = vpop.permute.xlu0 %866
        %869 = vrot.lane.b32.xlu0 %v772, 64
        %v870 = vpop.permute.xlu0 %869
        %872 = vrot.lane.b32.xlu0 %v838, 80
        %v873 = vpop.permute.xlu0 %872
        %875 = vrot.lane.b32.xlu0 %v790, 96
        %v876 = vpop.permute.xlu0 %875
        %878 = vrot.lane.b32.xlu0 %v856, 112
        %v879 = vpop.permute.xlu0 %878
        %881 = vrot.lane.b32.xlu0 %v847, 16
        %v882 = vpop.permute.xlu0 %881
        %884 = vrot.lane.b32.xlu0 %v791, 32
        %v885 = vpop.permute.xlu0 %884
        %887 = vrot.lane.b32.xlu0 %v857, 48
        %v888 = vpop.permute.xlu0 %887
        %890 = vrot.lane.b32.xlu0 %v788, 64
        %v891 = vpop.permute.xlu0 %890
        %893 = vrot.lane.b32.xlu0 %v854, 80
        %v894 = vpop.permute.xlu0 %893
        %896 = vrot.lane.b32.xlu0 %v792, 96
        %v897 = vpop.permute.xlu0 %896
        %899 = vrot.lane.b32.xlu0 %v858, 112
        %v900 = vpop.permute.xlu0 %899
        %v903 = vsel %vm662, %v765, %v861
        %v905 = vsel %vm666, %v903, %v864
        %v907 = vsel %vm669, %v905, %v867
        %v909 = vsel %vm672, %v907, %v870
        %v911 = vsel %vm675, %v909, %v873
        %v913 = vsel %vm678, %v911, %v876
        %v915 = vsel %vm681, %v913, %v879
        %v918 = vsel %vm662, %v781, %v882
        %v920 = vsel %vm666, %v918, %v885
        %v922 = vsel %vm669, %v920, %v888
        %v924 = vsel %vm672, %v922, %v891
        %v926 = vsel %vm675, %v924, %v894
        %v928 = vsel %vm678, %v926, %v897
        %v930 = vsel %vm681, %v928, %v900
        %931 = vrot.lane.b32.xlu0 %v454, 126
        %v932 = vpop.permute.xlu0 %931
        %933 = vrot.lane.b32.xlu0 %v458, 126
        %v934 = vpop.permute.xlu0 %933
        %935 = vrot.lane.b32.xlu0 %v462, 126
        %v936 = vpop.permute.xlu0 %935
        %937 = vrot.lane.b32.xlu0 %v466, 126
        %v938 = vpop.permute.xlu0 %937
        %v941 = vpack.i.b16 %v934, %v932
        %v943 = vshrl.u32 %v932, 16
        %v944 = vshrl.u32 %v934, 16
        %v945 = vpack.i.b16 %v944, %v943
        %v949 = vpack.i.b16 %v938, %v936
        %v951 = vshrl.u32 %v936, 16
        %v952 = vshrl.u32 %v938, 16
        %v953 = vpack.i.b16 %v952, %v951
        %v955 = vcombine.high %v941, %v483
        %v957 = vunpack.c.l.s4 1983009808
        %v958 = vunpack.c.0.s8 %v957
        %v959 = vlaneseq
        %v960 = vshrl.u32 %v959, 7
        %v961 = vsub.s32 %v958, %v960
        %v962 = vrot.slane %v941, %v961
        %v964 = vunpack.c.l.s4 1983009808
        %v965 = vunpack.c.0.s8 %v964
        %v966 = vlaneseq
        %v967 = vshrl.u32 %v966, 7
        %v968 = vsub.s32 %v965, %v967
        %v969 = vrot.slane %v955, %v968
        %v970 = vcombine.high %v949, %v483
        %v972 = vunpack.c.l.s4 1983009808
        %v973 = vunpack.c.0.s8 %v972
        %v974 = vlaneseq
        %v975 = vshrl.u32 %v974, 7
        %v976 = vsub.s32 %v973, %v975
        %v977 = vrot.slane %v949, %v976
        %v979 = vunpack.c.l.s4 1983009808
        %v980 = vunpack.c.0.s8 %v979
        %v981 = vlaneseq
        %v982 = vshrl.u32 %v981, 7
        %v983 = vsub.s32 %v980, %v982
        %v984 = vrot.slane %v970, %v983
        %v985 = vcombine.low %v962, %v977
        %v986 = vcombine.high %v962, %v977
        %v988 = vunpack.c.l.s4 1934713408
        %v989 = vunpack.c.0.s8 %v988
        %v990 = vlaneseq
        %v991 = vshrl.u32 %v990, 7
        %v992 = vsub.s32 %v989, %v991
        %v993 = vrot.slane %v985, %v992
        %v995 = vunpack.c.l.s4 1934713408
        %v996 = vunpack.c.0.s8 %v995
        %v997 = vlaneseq
        %v998 = vshrl.u32 %v997, 7
        %v999 = vsub.s32 %v996, %v998
        %v1000 = vrot.slane %v986, %v999
        %v1001 = vcombine.low %v969, %v984
        %v1002 = vcombine.high %v969, %v984
        %v1004 = vunpack.c.l.s4 1934713408
        %v1005 = vunpack.c.0.s8 %v1004
        %v1006 = vlaneseq
        %v1007 = vshrl.u32 %v1006, 7
        %v1008 = vsub.s32 %v1005, %v1007
        %v1009 = vrot.slane %v1001, %v1008
        %v1011 = vunpack.c.l.s4 1934713408
        %v1012 = vunpack.c.0.s8 %v1011
        %v1013 = vlaneseq
        %v1014 = vshrl.u32 %v1013, 7
        %v1015 = vsub.s32 %v1012, %v1014
        %v1016 = vrot.slane %v1002, %v1015
        %v1017 = vcombine.high %v993, 0
        %v1018 = vcombine.high %v1000, 0
        %v1019 = vcombine.high %v1009, 0
        %v1020 = vcombine.high %v1016, 0
        %v1021 = vcombine.high %v945, %v486
        %v1023 = vunpack.c.l.s4 1983009808
        %v1024 = vunpack.c.0.s8 %v1023
        %v1025 = vlaneseq
        %v1026 = vshrl.u32 %v1025, 7
        %v1027 = vsub.s32 %v1024, %v1026
        %v1028 = vrot.slane %v945, %v1027
        %v1030 = vunpack.c.l.s4 1983009808
        %v1031 = vunpack.c.0.s8 %v1030
        %v1032 = vlaneseq
        %v1033 = vshrl.u32 %v1032, 7
        %v1034 = vsub.s32 %v1031, %v1033
        %v1035 = vrot.slane %v1021, %v1034
        %v1036 = vcombine.high %v953, %v486
        %v1038 = vunpack.c.l.s4 1983009808
        %v1039 = vunpack.c.0.s8 %v1038
        %v1040 = vlaneseq
        %v1041 = vshrl.u32 %v1040, 7
        %v1042 = vsub.s32 %v1039, %v1041
        %v1043 = vrot.slane %v953, %v1042
        %v1045 = vunpack.c.l.s4 1983009808
        %v1046 = vunpack.c.0.s8 %v1045
        %v1047 = vlaneseq
        %v1048 = vshrl.u32 %v1047, 7
        %v1049 = vsub.s32 %v1046, %v1048
        %v1050 = vrot.slane %v1036, %v1049
        %v1051 = vcombine.low %v1028, %v1043
        %v1052 = vcombine.high %v1028, %v1043
        %v1054 = vunpack.c.l.s4 1934713408
        %v1055 = vunpack.c.0.s8 %v1054
        %v1056 = vlaneseq
        %v1057 = vshrl.u32 %v1056, 7
        %v1058 = vsub.s32 %v1055, %v1057
        %v1059 = vrot.slane %v1051, %v1058
        %v1061 = vunpack.c.l.s4 1934713408
        %v1062 = vunpack.c.0.s8 %v1061
        %v1063 = vlaneseq
        %v1064 = vshrl.u32 %v1063, 7
        %v1065 = vsub.s32 %v1062, %v1064
        %v1066 = vrot.slane %v1052, %v1065
        %v1067 = vcombine.low %v1035, %v1050
        %v1068 = vcombine.high %v1035, %v1050
        %v1070 = vunpack.c.l.s4 1934713408
        %v1071 = vunpack.c.0.s8 %v1070
        %v1072 = vlaneseq
        %v1073 = vshrl.u32 %v1072, 7
        %v1074 = vsub.s32 %v1071, %v1073
        %v1075 = vrot.slane %v1067, %v1074
        %v1077 = vunpack.c.l.s4 1934713408
        %v1078 = vunpack.c.0.s8 %v1077
        %v1079 = vlaneseq
        %v1080 = vshrl.u32 %v1079, 7
        %v1081 = vsub.s32 %v1078, %v1080
        %v1082 = vrot.slane %v1068, %v1081
        %v1083 = vcombine.high %v1059, 0
        %v1084 = vcombine.high %v1066, 0
        %v1085 = vcombine.high %v1075, 0
        %v1086 = vcombine.high %v1082, 0
        %1088 = vrot.lane.b32.xlu0 %v1059, 16
        %v1089 = vpop.permute.xlu0 %1088
        %1091 = vrot.lane.b32.xlu0 %v1017, 32
        %v1092 = vpop.permute.xlu0 %1091
        %1094 = vrot.lane.b32.xlu0 %v1083, 48
        %v1095 = vpop.permute.xlu0 %1094
        %1097 = vrot.lane.b32.xlu0 %v1000, 64
        %v1098 = vpop.permute.xlu0 %1097
        %1100 = vrot.lane.b32.xlu0 %v1066, 80
        %v1101 = vpop.permute.xlu0 %1100
        %1103 = vrot.lane.b32.xlu0 %v1018, 96
        %v1104 = vpop.permute.xlu0 %1103
        %1106 = vrot.lane.b32.xlu0 %v1084, 112
        %v1107 = vpop.permute.xlu0 %1106
        %1109 = vrot.lane.b32.xlu0 %v1075, 16
        %v1110 = vpop.permute.xlu0 %1109
        %1112 = vrot.lane.b32.xlu0 %v1019, 32
        %v1113 = vpop.permute.xlu0 %1112
        %1115 = vrot.lane.b32.xlu0 %v1085, 48
        %v1116 = vpop.permute.xlu0 %1115
        %1118 = vrot.lane.b32.xlu0 %v1016, 64
        %v1119 = vpop.permute.xlu0 %1118
        %1121 = vrot.lane.b32.xlu0 %v1082, 80
        %v1122 = vpop.permute.xlu0 %1121
        %1124 = vrot.lane.b32.xlu0 %v1020, 96
        %v1125 = vpop.permute.xlu0 %1124
        %1127 = vrot.lane.b32.xlu0 %v1086, 112
        %v1128 = vpop.permute.xlu0 %1127
        %v1131 = vsel %vm662, %v993, %v1089
        %v1133 = vsel %vm666, %v1131, %v1092
        %v1135 = vsel %vm669, %v1133, %v1095
        %v1137 = vsel %vm672, %v1135, %v1098
        %v1139 = vsel %vm675, %v1137, %v1101
        %v1141 = vsel %vm678, %v1139, %v1104
        %v1143 = vsel %vm681, %v1141, %v1107
        %v1146 = vsel %vm662, %v1009, %v1110
        %v1148 = vsel %vm666, %v1146, %v1113
        %v1150 = vsel %vm669, %v1148, %v1116
        %v1152 = vsel %vm672, %v1150, %v1119
        %v1154 = vsel %vm675, %v1152, %v1122
        %v1156 = vsel %vm678, %v1154, %v1125
        %v1158 = vsel %vm681, %v1156, %v1128
        %vm1159 = vsmask.f32 7424
        %v1161 = vshll.u32 %v454, 16
        %v1163 = vrot.slane %v1161, 1
        %v1164 = vor.u32 %v472, %v1163
        %v1165 = vshll.u32 %v456, 16
        %v1167 = vrot.slane %v1165, 1
        %v1168 = vsel %vm1159, %v1164, %v1167
        %v1170 = vshll.u32 %v458, 16
        %v1172 = vrot.slane %v1170, 1
        %v1173 = vor.u32 %v473, %v1172
        %v1174 = vshll.u32 %v460, 16
        %v1176 = vrot.slane %v1174, 1
        %v1177 = vsel %vm1159, %v1173, %v1176
        %v1179 = vshll.u32 %v462, 16
        %v1181 = vrot.slane %v1179, 1
        %v1182 = vor.u32 %v478, %v1181
        %v1183 = vshll.u32 %v464, 16
        %v1185 = vrot.slane %v1183, 1
        %v1186 = vsel %vm1159, %v1182, %v1185
        %v1188 = vshll.u32 %v466, 16
        %v1190 = vrot.slane %v1188, 1
        %v1191 = vor.u32 %v479, %v1190
        %v1192 = vshll.u32 %v468, 16
        %v1194 = vrot.slane %v1192, 1
        %v1195 = vsel %vm1159, %v1191, %v1194
        %v1198 = vpack.i.b16 %v1177, %v1168
        %v1200 = vshrl.u32 %v1168, 16
        %v1201 = vshrl.u32 %v1177, 16
        %v1202 = vpack.i.b16 %v1201, %v1200
        %v1206 = vpack.i.b16 %v1195, %v1186
        %v1208 = vshrl.u32 %v1186, 16
        %v1209 = vshrl.u32 %v1195, 16
        %v1210 = vpack.i.b16 %v1209, %v1208
        %v1212 = vcombine.high %v1198, %v483
        %v1214 = vunpack.c.l.s4 1983009808
        %v1215 = vunpack.c.0.s8 %v1214
        %v1216 = vlaneseq
        %v1217 = vshrl.u32 %v1216, 7
        %v1218 = vsub.s32 %v1215, %v1217
        %v1219 = vrot.slane %v1198, %v1218
        %v1221 = vunpack.c.l.s4 1983009808
        %v1222 = vunpack.c.0.s8 %v1221
        %v1223 = vlaneseq
        %v1224 = vshrl.u32 %v1223, 7
        %v1225 = vsub.s32 %v1222, %v1224
        %v1226 = vrot.slane %v1212, %v1225
        %v1227 = vcombine.high %v1206, %v483
        %v1229 = vunpack.c.l.s4 1983009808
        %v1230 = vunpack.c.0.s8 %v1229
        %v1231 = vlaneseq
        %v1232 = vshrl.u32 %v1231, 7
        %v1233 = vsub.s32 %v1230, %v1232
        %v1234 = vrot.slane %v1206, %v1233
        %v1236 = vunpack.c.l.s4 1983009808
        %v1237 = vunpack.c.0.s8 %v1236
        %v1238 = vlaneseq
        %v1239 = vshrl.u32 %v1238, 7
        %v1240 = vsub.s32 %v1237, %v1239
        %v1241 = vrot.slane %v1227, %v1240
        %v1242 = vcombine.low %v1219, %v1234
        %v1243 = vcombine.high %v1219, %v1234
        %v1245 = vunpack.c.l.s4 1934713408
        %v1246 = vunpack.c.0.s8 %v1245
        %v1247 = vlaneseq
        %v1248 = vshrl.u32 %v1247, 7
        %v1249 = vsub.s32 %v1246, %v1248
        %v1250 = vrot.slane %v1242, %v1249
        %v1252 = vunpack.c.l.s4 1934713408
        %v1253 = vunpack.c.0.s8 %v1252
        %v1254 = vlaneseq
        %v1255 = vshrl.u32 %v1254, 7
        %v1256 = vsub.s32 %v1253, %v1255
        %v1257 = vrot.slane %v1243, %v1256
        %v1258 = vcombine.low %v1226, %v1241
        %v1259 = vcombine.high %v1226, %v1241
        %v1261 = vunpack.c.l.s4 1934713408
        %v1262 = vunpack.c.0.s8 %v1261
        %v1263 = vlaneseq
        %v1264 = vshrl.u32 %v1263, 7
        %v1265 = vsub.s32 %v1262, %v1264
        %v1266 = vrot.slane %v1258, %v1265
        %v1268 = vunpack.c.l.s4 1934713408
        %v1269 = vunpack.c.0.s8 %v1268
        %v1270 = vlaneseq
        %v1271 = vshrl.u32 %v1270, 7
        %v1272 = vsub.s32 %v1269, %v1271
        %v1273 = vrot.slane %v1259, %v1272
        %v1274 = vcombine.high %v1250, 0
        %v1275 = vcombine.high %v1257, 0
        %v1276 = vcombine.high %v1266, 0
        %v1277 = vcombine.high %v1273, 0
        %v1278 = vcombine.high %v1202, %v486
        %v1280 = vunpack.c.l.s4 1983009808
        %v1281 = vunpack.c.0.s8 %v1280
        %v1282 = vlaneseq
        %v1283 = vshrl.u32 %v1282, 7
        %v1284 = vsub.s32 %v1281, %v1283
        %v1285 = vrot.slane %v1202, %v1284
        %v1287 = vunpack.c.l.s4 1983009808
        %v1288 = vunpack.c.0.s8 %v1287
        %v1289 = vlaneseq
        %v1290 = vshrl.u32 %v1289, 7
        %v1291 = vsub.s32 %v1288, %v1290
        %v1292 = vrot.slane %v1278, %v1291
        %v1293 = vcombine.high %v1210, %v486
        %v1295 = vunpack.c.l.s4 1983009808
        %v1296 = vunpack.c.0.s8 %v1295
        %v1297 = vlaneseq
        %v1298 = vshrl.u32 %v1297, 7
        %v1299 = vsub.s32 %v1296, %v1298
        %v1300 = vrot.slane %v1210, %v1299
        %v1302 = vunpack.c.l.s4 1983009808
        %v1303 = vunpack.c.0.s8 %v1302
        %v1304 = vlaneseq
        %v1305 = vshrl.u32 %v1304, 7
        %v1306 = vsub.s32 %v1303, %v1305
        %v1307 = vrot.slane %v1293, %v1306
        %v1308 = vcombine.low %v1285, %v1300
        %v1309 = vcombine.high %v1285, %v1300
        %v1311 = vunpack.c.l.s4 1934713408
        %v1312 = vunpack.c.0.s8 %v1311
        %v1313 = vlaneseq
        %v1314 = vshrl.u32 %v1313, 7
        %v1315 = vsub.s32 %v1312, %v1314
        %v1316 = vrot.slane %v1308, %v1315
        %v1318 = vunpack.c.l.s4 1934713408
        %v1319 = vunpack.c.0.s8 %v1318
        %v1320 = vlaneseq
        %v1321 = vshrl.u32 %v1320, 7
        %v1322 = vsub.s32 %v1319, %v1321
        %v1323 = vrot.slane %v1309, %v1322
        %v1324 = vcombine.low %v1292, %v1307
        %v1325 = vcombine.high %v1292, %v1307
        %v1327 = vunpack.c.l.s4 1934713408
        %v1328 = vunpack.c.0.s8 %v1327
        %v1329 = vlaneseq
        %v1330 = vshrl.u32 %v1329, 7
        %v1331 = vsub.s32 %v1328, %v1330
        %v1332 = vrot.slane %v1324, %v1331
        %v1334 = vunpack.c.l.s4 1934713408
        %v1335 = vunpack.c.0.s8 %v1334
        %v1336 = vlaneseq
        %v1337 = vshrl.u32 %v1336, 7
        %v1338 = vsub.s32 %v1335, %v1337
        %v1339 = vrot.slane %v1325, %v1338
        %v1340 = vcombine.high %v1316, 0
        %v1341 = vcombine.high %v1323, 0
        %v1342 = vcombine.high %v1332, 0
        %v1343 = vcombine.high %v1339, 0
        %1345 = vrot.lane.b32.xlu0 %v1316, 16
        %v1346 = vpop.permute.xlu0 %1345
        %1348 = vrot.lane.b32.xlu0 %v1274, 32
        %v1349 = vpop.permute.xlu0 %1348
        %1351 = vrot.lane.b32.xlu0 %v1340, 48
        %v1352 = vpop.permute.xlu0 %1351
        %1354 = vrot.lane.b32.xlu0 %v1257, 64
        %v1355 = vpop.permute.xlu0 %1354
        %1357 = vrot.lane.b32.xlu0 %v1323, 80
        %v1358 = vpop.permute.xlu0 %1357
        %1360 = vrot.lane.b32.xlu0 %v1275, 96
        %v1361 = vpop.permute.xlu0 %1360
        %1363 = vrot.lane.b32.xlu0 %v1341, 112
        %v1364 = vpop.permute.xlu0 %1363
        %1366 = vrot.lane.b32.xlu0 %v1332, 16
        %v1367 = vpop.permute.xlu0 %1366
        %1369 = vrot.lane.b32.xlu0 %v1276, 32
        %v1370 = vpop.permute.xlu0 %1369
        %1372 = vrot.lane.b32.xlu0 %v1342, 48
        %v1373 = vpop.permute.xlu0 %1372
        %1375 = vrot.lane.b32.xlu0 %v1273, 64
        %v1376 = vpop.permute.xlu0 %1375
        %1378 = vrot.lane.b32.xlu0 %v1339, 80
        %v1379 = vpop.permute.xlu0 %1378
        %1381 = vrot.lane.b32.xlu0 %v1277, 96
        %v1382 = vpop.permute.xlu0 %1381
        %1384 = vrot.lane.b32.xlu0 %v1343, 112
        %v1385 = vpop.permute.xlu0 %1384
        %v1388 = vsel %vm662, %v1250, %v1346
        %v1390 = vsel %vm666, %v1388, %v1349
        %v1392 = vsel %vm669, %v1390, %v1352
        %v1394 = vsel %vm672, %v1392, %v1355
        %v1396 = vsel %vm675, %v1394, %v1358
        %v1398 = vsel %vm678, %v1396, %v1361
        %v1400 = vsel %vm681, %v1398, %v1364
        %v1403 = vsel %vm662, %v1266, %v1367
        %v1405 = vsel %vm666, %v1403, %v1370
        %v1407 = vsel %vm669, %v1405, %v1373
        %v1409 = vsel %vm672, %v1407, %v1376
        %v1411 = vsel %vm675, %v1409, %v1379
        %v1413 = vsel %vm678, %v1411, %v1382
        %v1415 = vsel %vm681, %v1413, %v1385
        %1416 = vrot.lane.b32.xlu0 %v1168, 127
        %v1417 = vpop.permute.xlu0 %1416
        %1418 = vrot.lane.b32.xlu0 %v1177, 127
        %v1419 = vpop.permute.xlu0 %1418
        %1420 = vrot.lane.b32.xlu0 %v1186, 127
        %v1421 = vpop.permute.xlu0 %1420
        %1422 = vrot.lane.b32.xlu0 %v1195, 127
        %v1423 = vpop.permute.xlu0 %1422
        %v1426 = vpack.i.b16 %v1419, %v1417
        %v1428 = vshrl.u32 %v1417, 16
        %v1429 = vshrl.u32 %v1419, 16
        %v1430 = vpack.i.b16 %v1429, %v1428
        %v1434 = vpack.i.b16 %v1423, %v1421
        %v1436 = vshrl.u32 %v1421, 16
        %v1437 = vshrl.u32 %v1423, 16
        %v1438 = vpack.i.b16 %v1437, %v1436
        %v1440 = vcombine.high %v1426, %v483
        %v1442 = vunpack.c.l.s4 1983009808
        %v1443 = vunpack.c.0.s8 %v1442
        %v1444 = vlaneseq
        %v1445 = vshrl.u32 %v1444, 7
        %v1446 = vsub.s32 %v1443, %v1445
        %v1447 = vrot.slane %v1426, %v1446
        %v1449 = vunpack.c.l.s4 1983009808
        %v1450 = vunpack.c.0.s8 %v1449
        %v1451 = vlaneseq
        %v1452 = vshrl.u32 %v1451, 7
        %v1453 = vsub.s32 %v1450, %v1452
        %v1454 = vrot.slane %v1440, %v1453
        %v1455 = vcombine.high %v1434, %v483
        %v1457 = vunpack.c.l.s4 1983009808
        %v1458 = vunpack.c.0.s8 %v1457
        %v1459 = vlaneseq
        %v1460 = vshrl.u32 %v1459, 7
        %v1461 = vsub.s32 %v1458, %v1460
        %v1462 = vrot.slane %v1434, %v1461
        %v1464 = vunpack.c.l.s4 1983009808
        %v1465 = vunpack.c.0.s8 %v1464
        %v1466 = vlaneseq
        %v1467 = vshrl.u32 %v1466, 7
        %v1468 = vsub.s32 %v1465, %v1467
        %v1469 = vrot.slane %v1455, %v1468
        %v1470 = vcombine.low %v1447, %v1462
        %v1471 = vcombine.high %v1447, %v1462
        %v1473 = vunpack.c.l.s4 1934713408
        %v1474 = vunpack.c.0.s8 %v1473
        %v1475 = vlaneseq
        %v1476 = vshrl.u32 %v1475, 7
        %v1477 = vsub.s32 %v1474, %v1476
        %v1478 = vrot.slane %v1470, %v1477
        %v1480 = vunpack.c.l.s4 1934713408
        %v1481 = vunpack.c.0.s8 %v1480
        %v1482 = vlaneseq
        %v1483 = vshrl.u32 %v1482, 7
        %v1484 = vsub.s32 %v1481, %v1483
        %v1485 = vrot.slane %v1471, %v1484
        %v1486 = vcombine.low %v1454, %v1469
        %v1487 = vcombine.high %v1454, %v1469
        %v1489 = vunpack.c.l.s4 1934713408
        %v1490 = vunpack.c.0.s8 %v1489
        %v1491 = vlaneseq
        %v1492 = vshrl.u32 %v1491, 7
        %v1493 = vsub.s32 %v1490, %v1492
        %v1494 = vrot.slane %v1486, %v1493
        %v1496 = vunpack.c.l.s4 1934713408
        %v1497 = vunpack.c.0.s8 %v1496
        %v1498 = vlaneseq
        %v1499 = vshrl.u32 %v1498, 7
        %v1500 = vsub.s32 %v1497, %v1499
        %v1501 = vrot.slane %v1487, %v1500
        %v1502 = vcombine.high %v1478, 0
        %v1503 = vcombine.high %v1485, 0
        %v1504 = vcombine.high %v1494, 0
        %v1505 = vcombine.high %v1501, 0
        %v1506 = vcombine.high %v1430, %v486
        %v1508 = vunpack.c.l.s4 1983009808
        %v1509 = vunpack.c.0.s8 %v1508
        %v1510 = vlaneseq
        %v1511 = vshrl.u32 %v1510, 7
        %v1512 = vsub.s32 %v1509, %v1511
        %v1513 = vrot.slane %v1430, %v1512
        %v1515 = vunpack.c.l.s4 1983009808
        %v1516 = vunpack.c.0.s8 %v1515
        %v1517 = vlaneseq
        %v1518 = vshrl.u32 %v1517, 7
        %v1519 = vsub.s32 %v1516, %v1518
        %v1520 = vrot.slane %v1506, %v1519
        %v1521 = vcombine.high %v1438, %v486
        %v1523 = vunpack.c.l.s4 1983009808
        %v1524 = vunpack.c.0.s8 %v1523
        %v1525 = vlaneseq
        %v1526 = vshrl.u32 %v1525, 7
        %v1527 = vsub.s32 %v1524, %v1526
        %v1528 = vrot.slane %v1438, %v1527
        %v1530 = vunpack.c.l.s4 1983009808
        %v1531 = vunpack.c.0.s8 %v1530
        %v1532 = vlaneseq
        %v1533 = vshrl.u32 %v1532, 7
        %v1534 = vsub.s32 %v1531, %v1533
        %v1535 = vrot.slane %v1521, %v1534
        %v1536 = vcombine.low %v1513, %v1528
        %v1537 = vcombine.high %v1513, %v1528
        %v1539 = vunpack.c.l.s4 1934713408
        %v1540 = vunpack.c.0.s8 %v1539
        %v1541 = vlaneseq
        %v1542 = vshrl.u32 %v1541, 7
        %v1543 = vsub.s32 %v1540, %v1542
        %v1544 = vrot.slane %v1536, %v1543
        %v1546 = vunpack.c.l.s4 1934713408
        %v1547 = vunpack.c.0.s8 %v1546
        %v1548 = vlaneseq
        %v1549 = vshrl.u32 %v1548, 7
        %v1550 = vsub.s32 %v1547, %v1549
        %v1551 = vrot.slane %v1537, %v1550
        %v1552 = vcombine.low %v1520, %v1535
        %v1553 = vcombine.high %v1520, %v1535
        %v1555 = vunpack.c.l.s4 1934713408
        %v1556 = vunpack.c.0.s8 %v1555
        %v1557 = vlaneseq
        %v1558 = vshrl.u32 %v1557, 7
        %v1559 = vsub.s32 %v1556, %v1558
        %v1560 = vrot.slane %v1552, %v1559
        %v1562 = vunpack.c.l.s4 1934713408
        %v1563 = vunpack.c.0.s8 %v1562
        %v1564 = vlaneseq
        %v1565 = vshrl.u32 %v1564, 7
        %v1566 = vsub.s32 %v1563, %v1565
        %v1567 = vrot.slane %v1553, %v1566
        %v1568 = vcombine.high %v1544, 0
        %v1569 = vcombine.high %v1551, 0
        %v1570 = vcombine.high %v1560, 0
        %v1571 = vcombine.high %v1567, 0
        %1573 = vrot.lane.b32.xlu0 %v1544, 16
        %v1574 = vpop.permute.xlu0 %1573
        %1576 = vrot.lane.b32.xlu0 %v1502, 32
        %v1577 = vpop.permute.xlu0 %1576
        %1579 = vrot.lane.b32.xlu0 %v1568, 48
        %v1580 = vpop.permute.xlu0 %1579
        %1582 = vrot.lane.b32.xlu0 %v1485, 64
        %v1583 = vpop.permute.xlu0 %1582
        %1585 = vrot.lane.b32.xlu0 %v1551, 80
        %v1586 = vpop.permute.xlu0 %1585
        %1588 = vrot.lane.b32.xlu0 %v1503, 96
        %v1589 = vpop.permute.xlu0 %1588
        %1591 = vrot.lane.b32.xlu0 %v1569, 112
        %v1592 = vpop.permute.xlu0 %1591
        %1594 = vrot.lane.b32.xlu0 %v1560, 16
        %v1595 = vpop.permute.xlu0 %1594
        %1597 = vrot.lane.b32.xlu0 %v1504, 32
        %v1598 = vpop.permute.xlu0 %1597
        %1600 = vrot.lane.b32.xlu0 %v1570, 48
        %v1601 = vpop.permute.xlu0 %1600
        %1603 = vrot.lane.b32.xlu0 %v1501, 64
        %v1604 = vpop.permute.xlu0 %1603
        %1606 = vrot.lane.b32.xlu0 %v1567, 80
        %v1607 = vpop.permute.xlu0 %1606
        %1609 = vrot.lane.b32.xlu0 %v1505, 96
        %v1610 = vpop.permute.xlu0 %1609
        %1612 = vrot.lane.b32.xlu0 %v1571, 112
        %v1613 = vpop.permute.xlu0 %1612
        %v1616 = vsel %vm662, %v1478, %v1574
        %v1618 = vsel %vm666, %v1616, %v1577
        %v1620 = vsel %vm669, %v1618, %v1580
        %v1622 = vsel %vm672, %v1620, %v1583
        %v1624 = vsel %vm675, %v1622, %v1586
        %v1626 = vsel %vm678, %v1624, %v1589
        %v1628 = vsel %vm681, %v1626, %v1592
        %v1631 = vsel %vm662, %v1494, %v1595
        %v1633 = vsel %vm666, %v1631, %v1598
        %v1635 = vsel %vm669, %v1633, %v1601
        %v1637 = vsel %vm672, %v1635, %v1604
        %v1639 = vsel %vm675, %v1637, %v1607
        %v1641 = vsel %vm678, %v1639, %v1610
        %v1643 = vsel %vm681, %v1641, %v1613
        %1644 = vrot.lane.b32.xlu0 %v1168, 126
        %v1645 = vpop.permute.xlu0 %1644
        %1646 = vrot.lane.b32.xlu0 %v1177, 126
        %v1647 = vpop.permute.xlu0 %1646
        %1648 = vrot.lane.b32.xlu0 %v1186, 126
        %v1649 = vpop.permute.xlu0 %1648
        %1650 = vrot.lane.b32.xlu0 %v1195, 126
        %v1651 = vpop.permute.xlu0 %1650
        %v1654 = vpack.i.b16 %v1647, %v1645
        %v1656 = vshrl.u32 %v1645, 16
        %v1657 = vshrl.u32 %v1647, 16
        %v1658 = vpack.i.b16 %v1657, %v1656
        %v1662 = vpack.i.b16 %v1651, %v1649
        %v1664 = vshrl.u32 %v1649, 16
        %v1665 = vshrl.u32 %v1651, 16
        %v1666 = vpack.i.b16 %v1665, %v1664
        %v1668 = vcombine.high %v1654, %v483
        %v1670 = vunpack.c.l.s4 1983009808
        %v1671 = vunpack.c.0.s8 %v1670
        %v1672 = vlaneseq
        %v1673 = vshrl.u32 %v1672, 7
        %v1674 = vsub.s32 %v1671, %v1673
        %v1675 = vrot.slane %v1654, %v1674
        %v1677 = vunpack.c.l.s4 1983009808
        %v1678 = vunpack.c.0.s8 %v1677
        %v1679 = vlaneseq
        %v1680 = vshrl.u32 %v1679, 7
        %v1681 = vsub.s32 %v1678, %v1680
        %v1682 = vrot.slane %v1668, %v1681
        %v1683 = vcombine.high %v1662, %v483
        %v1685 = vunpack.c.l.s4 1983009808
        %v1686 = vunpack.c.0.s8 %v1685
        %v1687 = vlaneseq
        %v1688 = vshrl.u32 %v1687, 7
        %v1689 = vsub.s32 %v1686, %v1688
        %v1690 = vrot.slane %v1662, %v1689
        %v1692 = vunpack.c.l.s4 1983009808
        %v1693 = vunpack.c.0.s8 %v1692
        %v1694 = vlaneseq
        %v1695 = vshrl.u32 %v1694, 7
        %v1696 = vsub.s32 %v1693, %v1695
        %v1697 = vrot.slane %v1683, %v1696
        %v1698 = vcombine.low %v1675, %v1690
        %v1699 = vcombine.high %v1675, %v1690
        %v1701 = vunpack.c.l.s4 1934713408
        %v1702 = vunpack.c.0.s8 %v1701
        %v1703 = vlaneseq
        %v1704 = vshrl.u32 %v1703, 7
        %v1705 = vsub.s32 %v1702, %v1704
        %v1706 = vrot.slane %v1698, %v1705
        %v1708 = vunpack.c.l.s4 1934713408
        %v1709 = vunpack.c.0.s8 %v1708
        %v1710 = vlaneseq
        %v1711 = vshrl.u32 %v1710, 7
        %v1712 = vsub.s32 %v1709, %v1711
        %v1713 = vrot.slane %v1699, %v1712
        %v1714 = vcombine.low %v1682, %v1697
        %v1715 = vcombine.high %v1682, %v1697
        %v1717 = vunpack.c.l.s4 1934713408
        %v1718 = vunpack.c.0.s8 %v1717
        %v1719 = vlaneseq
        %v1720 = vshrl.u32 %v1719, 7
        %v1721 = vsub.s32 %v1718, %v1720
        %v1722 = vrot.slane %v1714, %v1721
        %v1724 = vunpack.c.l.s4 1934713408
        %v1725 = vunpack.c.0.s8 %v1724
        %v1726 = vlaneseq
        %v1727 = vshrl.u32 %v1726, 7
        %v1728 = vsub.s32 %v1725, %v1727
        %v1729 = vrot.slane %v1715, %v1728
        %v1730 = vcombine.high %v1706, 0
        %v1731 = vcombine.high %v1713, 0
        %v1732 = vcombine.high %v1722, 0
        %v1733 = vcombine.high %v1729, 0
        %v1734 = vcombine.high %v1658, %v486
        %v1736 = vunpack.c.l.s4 1983009808
        %v1737 = vunpack.c.0.s8 %v1736
        %v1738 = vlaneseq
        %v1739 = vshrl.u32 %v1738, 7
        %v1740 = vsub.s32 %v1737, %v1739
        %v1741 = vrot.slane %v1658, %v1740
        %v1743 = vunpack.c.l.s4 1983009808
        %v1744 = vunpack.c.0.s8 %v1743
        %v1745 = vlaneseq
        %v1746 = vshrl.u32 %v1745, 7
        %v1747 = vsub.s32 %v1744, %v1746
        %v1748 = vrot.slane %v1734, %v1747
        %v1749 = vcombine.high %v1666, %v486
        %v1751 = vunpack.c.l.s4 1983009808
        %v1752 = vunpack.c.0.s8 %v1751
        %v1753 = vlaneseq
        %v1754 = vshrl.u32 %v1753, 7
        %v1755 = vsub.s32 %v1752, %v1754
        %v1756 = vrot.slane %v1666, %v1755
        %v1758 = vunpack.c.l.s4 1983009808
        %v1759 = vunpack.c.0.s8 %v1758
        %v1760 = vlaneseq
        %v1761 = vshrl.u32 %v1760, 7
        %v1762 = vsub.s32 %v1759, %v1761
        %v1763 = vrot.slane %v1749, %v1762
        %v1764 = vcombine.low %v1741, %v1756
        %v1765 = vcombine.high %v1741, %v1756
        %v1767 = vunpack.c.l.s4 1934713408
        %v1768 = vunpack.c.0.s8 %v1767
        %v1769 = vlaneseq
        %v1770 = vshrl.u32 %v1769, 7
        %v1771 = vsub.s32 %v1768, %v1770
        %v1772 = vrot.slane %v1764, %v1771
        %v1774 = vunpack.c.l.s4 1934713408
        %v1775 = vunpack.c.0.s8 %v1774
        %v1776 = vlaneseq
        %v1777 = vshrl.u32 %v1776, 7
        %v1778 = vsub.s32 %v1775, %v1777
        %v1779 = vrot.slane %v1765, %v1778
        %v1780 = vcombine.low %v1748, %v1763
        %v1781 = vcombine.high %v1748, %v1763
        %v1783 = vunpack.c.l.s4 1934713408
        %v1784 = vunpack.c.0.s8 %v1783
        %v1785 = vlaneseq
        %v1786 = vshrl.u32 %v1785, 7
        %v1787 = vsub.s32 %v1784, %v1786
        %v1788 = vrot.slane %v1780, %v1787
        %v1790 = vunpack.c.l.s4 1934713408
        %v1791 = vunpack.c.0.s8 %v1790
        %v1792 = vlaneseq
        %v1793 = vshrl.u32 %v1792, 7
        %v1794 = vsub.s32 %v1791, %v1793
        %v1795 = vrot.slane %v1781, %v1794
        %v1796 = vcombine.high %v1772, 0
        %v1797 = vcombine.high %v1779, 0
        %v1798 = vcombine.high %v1788, 0
        %v1799 = vcombine.high %v1795, 0
        %1801 = vrot.lane.b32.xlu0 %v1772, 16
        %v1802 = vpop.permute.xlu0 %1801
        %1804 = vrot.lane.b32.xlu0 %v1730, 32
        %v1805 = vpop.permute.xlu0 %1804
        %1807 = vrot.lane.b32.xlu0 %v1796, 48
        %v1808 = vpop.permute.xlu0 %1807
        %1810 = vrot.lane.b32.xlu0 %v1713, 64
        %v1811 = vpop.permute.xlu0 %1810
        %1813 = vrot.lane.b32.xlu0 %v1779, 80
        %v1814 = vpop.permute.xlu0 %1813
        %1816 = vrot.lane.b32.xlu0 %v1731, 96
        %v1817 = vpop.permute.xlu0 %1816
        %1819 = vrot.lane.b32.xlu0 %v1797, 112
        %v1820 = vpop.permute.xlu0 %1819
        %1822 = vrot.lane.b32.xlu0 %v1788, 16
        %v1823 = vpop.permute.xlu0 %1822
        %1825 = vrot.lane.b32.xlu0 %v1732, 32
        %v1826 = vpop.permute.xlu0 %1825
        %1828 = vrot.lane.b32.xlu0 %v1798, 48
        %v1829 = vpop.permute.xlu0 %1828
        %1831 = vrot.lane.b32.xlu0 %v1729, 64
        %v1832 = vpop.permute.xlu0 %1831
        %1834 = vrot.lane.b32.xlu0 %v1795, 80
        %v1835 = vpop.permute.xlu0 %1834
        %1837 = vrot.lane.b32.xlu0 %v1733, 96
        %v1838 = vpop.permute.xlu0 %1837
        %1840 = vrot.lane.b32.xlu0 %v1799, 112
        %v1841 = vpop.permute.xlu0 %1840
        %v1844 = vsel %vm662, %v1706, %v1802
        %v1846 = vsel %vm666, %v1844, %v1805
        %v1848 = vsel %vm669, %v1846, %v1808
        %v1850 = vsel %vm672, %v1848, %v1811
        %v1852 = vsel %vm675, %v1850, %v1814
        %v1854 = vsel %vm678, %v1852, %v1817
        %v1856 = vsel %vm681, %v1854, %v1820
        %v1859 = vsel %vm662, %v1722, %v1823
        %v1861 = vsel %vm666, %v1859, %v1826
        %v1863 = vsel %vm669, %v1861, %v1829
        %v1865 = vsel %vm672, %v1863, %v1832
        %v1867 = vsel %vm675, %v1865, %v1835
        %v1869 = vsel %vm678, %v1867, %v1838
        %v1871 = vsel %vm681, %v1869, %v1841
        %vm1876 = vcmask 1046528
        %v1877 = vrot.slane %v454, 1
        %v1878 = vrot.slane %v456, 1
        %v1879 = vsel %vm1876, %v1877, %v1878
        %v1880 = vrot.slane %v458, 1
        %v1881 = vrot.slane %v460, 1
        %v1882 = vsel %vm1876, %v1880, %v1881
        %v1883 = vrot.slane %v462, 1
        %v1884 = vrot.slane %v464, 1
        %v1885 = vsel %vm1876, %v1883, %v1884
        %v1886 = vrot.slane %v466, 1
        %v1887 = vrot.slane %v468, 1
        %v1888 = vsel %vm1876, %v1886, %v1887
        %v1891 = vpack.i.b16 %v1882, %v1879
        %v1893 = vshrl.u32 %v1879, 16
        %v1894 = vshrl.u32 %v1882, 16
        %v1895 = vpack.i.b16 %v1894, %v1893
        %v1899 = vpack.i.b16 %v1888, %v1885
        %v1901 = vshrl.u32 %v1885, 16
        %v1902 = vshrl.u32 %v1888, 16
        %v1903 = vpack.i.b16 %v1902, %v1901
        %v1905 = vcombine.high %v1891, %v483
        %v1907 = vunpack.c.l.s4 1983009808
        %v1908 = vunpack.c.0.s8 %v1907
        %v1909 = vlaneseq
        %v1910 = vshrl.u32 %v1909, 7
        %v1911 = vsub.s32 %v1908, %v1910
        %v1912 = vrot.slane %v1891, %v1911
        %v1914 = vunpack.c.l.s4 1983009808
        %v1915 = vunpack.c.0.s8 %v1914
        %v1916 = vlaneseq
        %v1917 = vshrl.u32 %v1916, 7
        %v1918 = vsub.s32 %v1915, %v1917
        %v1919 = vrot.slane %v1905, %v1918
        %v1920 = vcombine.high %v1899, %v483
        %v1922 = vunpack.c.l.s4 1983009808
        %v1923 = vunpack.c.0.s8 %v1922
        %v1924 = vlaneseq
        %v1925 = vshrl.u32 %v1924, 7
        %v1926 = vsub.s32 %v1923, %v1925
        %v1927 = vrot.slane %v1899, %v1926
        %v1929 = vunpack.c.l.s4 1983009808
        %v1930 = vunpack.c.0.s8 %v1929
        %v1931 = vlaneseq
        %v1932 = vshrl.u32 %v1931, 7
        %v1933 = vsub.s32 %v1930, %v1932
        %v1934 = vrot.slane %v1920, %v1933
        %v1935 = vcombine.low %v1912, %v1927
        %v1936 = vcombine.high %v1912, %v1927
        %v1938 = vunpack.c.l.s4 1934713408
        %v1939 = vunpack.c.0.s8 %v1938
        %v1940 = vlaneseq
        %v1941 = vshrl.u32 %v1940, 7
        %v1942 = vsub.s32 %v1939, %v1941
        %v1943 = vrot.slane %v1935, %v1942
        %v1945 = vunpack.c.l.s4 1934713408
        %v1946 = vunpack.c.0.s8 %v1945
        %v1947 = vlaneseq
        %v1948 = vshrl.u32 %v1947, 7
        %v1949 = vsub.s32 %v1946, %v1948
        %v1950 = vrot.slane %v1936, %v1949
        %v1951 = vcombine.low %v1919, %v1934
        %v1952 = vcombine.high %v1919, %v1934
        %v1954 = vunpack.c.l.s4 1934713408
        %v1955 = vunpack.c.0.s8 %v1954
        %v1956 = vlaneseq
        %v1957 = vshrl.u32 %v1956, 7
        %v1958 = vsub.s32 %v1955, %v1957
        %v1959 = vrot.slane %v1951, %v1958
        %v1961 = vunpack.c.l.s4 1934713408
        %v1962 = vunpack.c.0.s8 %v1961
        %v1963 = vlaneseq
        %v1964 = vshrl.u32 %v1963, 7
        %v1965 = vsub.s32 %v1962, %v1964
        %v1966 = vrot.slane %v1952, %v1965
        %v1967 = vcombine.high %v1943, 0
        %v1968 = vcombine.high %v1950, 0
        %v1969 = vcombine.high %v1959, 0
        %v1970 = vcombine.high %v1966, 0
        %v1971 = vcombine.high %v1895, %v486
        %v1973 = vunpack.c.l.s4 1983009808
        %v1974 = vunpack.c.0.s8 %v1973
        %v1975 = vlaneseq
        %v1976 = vshrl.u32 %v1975, 7
        %v1977 = vsub.s32 %v1974, %v1976
        %v1978 = vrot.slane %v1895, %v1977
        %v1980 = vunpack.c.l.s4 1983009808
        %v1981 = vunpack.c.0.s8 %v1980
        %v1982 = vlaneseq
        %v1983 = vshrl.u32 %v1982, 7
        %v1984 = vsub.s32 %v1981, %v1983
        %v1985 = vrot.slane %v1971, %v1984
        %v1986 = vcombine.high %v1903, %v486
        %v1988 = vunpack.c.l.s4 1983009808
        %v1989 = vunpack.c.0.s8 %v1988
        %v1990 = vlaneseq
        %v1991 = vshrl.u32 %v1990, 7
        %v1992 = vsub.s32 %v1989, %v1991
        %v1993 = vrot.slane %v1903, %v1992
        %v1995 = vunpack.c.l.s4 1983009808
        %v1996 = vunpack.c.0.s8 %v1995
        %v1997 = vlaneseq
        %v1998 = vshrl.u32 %v1997, 7
        %v1999 = vsub.s32 %v1996, %v1998
        %v2000 = vrot.slane %v1986, %v1999
        %v2001 = vcombine.low %v1978, %v1993
        %v2002 = vcombine.high %v1978, %v1993
        %v2004 = vunpack.c.l.s4 1934713408
        %v2005 = vunpack.c.0.s8 %v2004
        %v2006 = vlaneseq
        %v2007 = vshrl.u32 %v2006, 7
        %v2008 = vsub.s32 %v2005, %v2007
        %v2009 = vrot.slane %v2001, %v2008
        %v2011 = vunpack.c.l.s4 1934713408
        %v2012 = vunpack.c.0.s8 %v2011
        %v2013 = vlaneseq
        %v2014 = vshrl.u32 %v2013, 7
        %v2015 = vsub.s32 %v2012, %v2014
        %v2016 = vrot.slane %v2002, %v2015
        %v2017 = vcombine.low %v1985, %v2000
        %v2018 = vcombine.high %v1985, %v2000
        %v2020 = vunpack.c.l.s4 1934713408
        %v2021 = vunpack.c.0.s8 %v2020
        %v2022 = vlaneseq
        %v2023 = vshrl.u32 %v2022, 7
        %v2024 = vsub.s32 %v2021, %v2023
        %v2025 = vrot.slane %v2017, %v2024
        %v2027 = vunpack.c.l.s4 1934713408
        %v2028 = vunpack.c.0.s8 %v2027
        %v2029 = vlaneseq
        %v2030 = vshrl.u32 %v2029, 7
        %v2031 = vsub.s32 %v2028, %v2030
        %v2032 = vrot.slane %v2018, %v2031
        %v2033 = vcombine.high %v2009, 0
        %v2034 = vcombine.high %v2016, 0
        %v2035 = vcombine.high %v2025, 0
        %v2036 = vcombine.high %v2032, 0
        %2038 = vrot.lane.b32.xlu0 %v2009, 16
        %v2039 = vpop.permute.xlu0 %2038
        %2041 = vrot.lane.b32.xlu0 %v1967, 32
        %v2042 = vpop.permute.xlu0 %2041
        %2044 = vrot.lane.b32.xlu0 %v2033, 48
        %v2045 = vpop.permute.xlu0 %2044
        %2047 = vrot.lane.b32.xlu0 %v1950, 64
        %v2048 = vpop.permute.xlu0 %2047
        %2050 = vrot.lane.b32.xlu0 %v2016, 80
        %v2051 = vpop.permute.xlu0 %2050
        %2053 = vrot.lane.b32.xlu0 %v1968, 96
        %v2054 = vpop.permute.xlu0 %2053
        %2056 = vrot.lane.b32.xlu0 %v2034, 112
        %v2057 = vpop.permute.xlu0 %2056
        %2059 = vrot.lane.b32.xlu0 %v2025, 16
        %v2060 = vpop.permute.xlu0 %2059
        %2062 = vrot.lane.b32.xlu0 %v1969, 32
        %v2063 = vpop.permute.xlu0 %2062
        %2065 = vrot.lane.b32.xlu0 %v2035, 48
        %v2066 = vpop.permute.xlu0 %2065
        %2068 = vrot.lane.b32.xlu0 %v1966, 64
        %v2069 = vpop.permute.xlu0 %2068
        %2071 = vrot.lane.b32.xlu0 %v2032, 80
        %v2072 = vpop.permute.xlu0 %2071
        %2074 = vrot.lane.b32.xlu0 %v1970, 96
        %v2075 = vpop.permute.xlu0 %2074
        %2077 = vrot.lane.b32.xlu0 %v2036, 112
        %v2078 = vpop.permute.xlu0 %2077
        %v2081 = vsel %vm662, %v1943, %v2039
        %v2083 = vsel %vm666, %v2081, %v2042
        %v2085 = vsel %vm669, %v2083, %v2045
        %v2087 = vsel %vm672, %v2085, %v2048
        %v2089 = vsel %vm675, %v2087, %v2051
        %v2091 = vsel %vm678, %v2089, %v2054
        %v2093 = vsel %vm681, %v2091, %v2057
        %v2096 = vsel %vm662, %v1959, %v2060
        %v2098 = vsel %vm666, %v2096, %v2063
        %v2100 = vsel %vm669, %v2098, %v2066
        %v2102 = vsel %vm672, %v2100, %v2069
        %v2104 = vsel %vm675, %v2102, %v2072
        %v2106 = vsel %vm678, %v2104, %v2075
        %v2108 = vsel %vm681, %v2106, %v2078
        %2109 = vrot.lane.b32.xlu0 %v1879, 127
        %v2110 = vpop.permute.xlu0 %2109
        %2111 = vrot.lane.b32.xlu0 %v1882, 127
        %v2112 = vpop.permute.xlu0 %2111
        %2113 = vrot.lane.b32.xlu0 %v1885, 127
        %v2114 = vpop.permute.xlu0 %2113
        %2115 = vrot.lane.b32.xlu0 %v1888, 127
        %v2116 = vpop.permute.xlu0 %2115
        %v2119 = vpack.i.b16 %v2112, %v2110
        %v2121 = vshrl.u32 %v2110, 16
        %v2122 = vshrl.u32 %v2112, 16
        %v2123 = vpack.i.b16 %v2122, %v2121
        %v2127 = vpack.i.b16 %v2116, %v2114
        %v2129 = vshrl.u32 %v2114, 16
        %v2130 = vshrl.u32 %v2116, 16
        %v2131 = vpack.i.b16 %v2130, %v2129
        %v2133 = vcombine.high %v2119, %v483
        %v2135 = vunpack.c.l.s4 1983009808
        %v2136 = vunpack.c.0.s8 %v2135
        %v2137 = vlaneseq
        %v2138 = vshrl.u32 %v2137, 7
        %v2139 = vsub.s32 %v2136, %v2138
        %v2140 = vrot.slane %v2119, %v2139
        %v2142 = vunpack.c.l.s4 1983009808
        %v2143 = vunpack.c.0.s8 %v2142
        %v2144 = vlaneseq
        %v2145 = vshrl.u32 %v2144, 7
        %v2146 = vsub.s32 %v2143, %v2145
        %v2147 = vrot.slane %v2133, %v2146
        %v2148 = vcombine.high %v2127, %v483
        %v2150 = vunpack.c.l.s4 1983009808
        %v2151 = vunpack.c.0.s8 %v2150
        %v2152 = vlaneseq
        %v2153 = vshrl.u32 %v2152, 7
        %v2154 = vsub.s32 %v2151, %v2153
        %v2155 = vrot.slane %v2127, %v2154
        %v2157 = vunpack.c.l.s4 1983009808
        %v2158 = vunpack.c.0.s8 %v2157
        %v2159 = vlaneseq
        %v2160 = vshrl.u32 %v2159, 7
        %v2161 = vsub.s32 %v2158, %v2160
        %v2162 = vrot.slane %v2148, %v2161
        %v2163 = vcombine.low %v2140, %v2155
        %v2164 = vcombine.high %v2140, %v2155
        %v2166 = vunpack.c.l.s4 1934713408
        %v2167 = vunpack.c.0.s8 %v2166
        %v2168 = vlaneseq
        %v2169 = vshrl.u32 %v2168, 7
        %v2170 = vsub.s32 %v2167, %v2169
        %v2171 = vrot.slane %v2163, %v2170
        %v2173 = vunpack.c.l.s4 1934713408
        %v2174 = vunpack.c.0.s8 %v2173
        %v2175 = vlaneseq
        %v2176 = vshrl.u32 %v2175, 7
        %v2177 = vsub.s32 %v2174, %v2176
        %v2178 = vrot.slane %v2164, %v2177
        %v2179 = vcombine.low %v2147, %v2162
        %v2180 = vcombine.high %v2147, %v2162
        %v2182 = vunpack.c.l.s4 1934713408
        %v2183 = vunpack.c.0.s8 %v2182
        %v2184 = vlaneseq
        %v2185 = vshrl.u32 %v2184, 7
        %v2186 = vsub.s32 %v2183, %v2185
        %v2187 = vrot.slane %v2179, %v2186
        %v2189 = vunpack.c.l.s4 1934713408
        %v2190 = vunpack.c.0.s8 %v2189
        %v2191 = vlaneseq
        %v2192 = vshrl.u32 %v2191, 7
        %v2193 = vsub.s32 %v2190, %v2192
        %v2194 = vrot.slane %v2180, %v2193
        %v2195 = vcombine.high %v2171, 0
        %v2196 = vcombine.high %v2178, 0
        %v2197 = vcombine.high %v2187, 0
        %v2198 = vcombine.high %v2194, 0
        %v2199 = vcombine.high %v2123, %v486
        %v2201 = vunpack.c.l.s4 1983009808
        %v2202 = vunpack.c.0.s8 %v2201
        %v2203 = vlaneseq
        %v2204 = vshrl.u32 %v2203, 7
        %v2205 = vsub.s32 %v2202, %v2204
        %v2206 = vrot.slane %v2123, %v2205
        %v2208 = vunpack.c.l.s4 1983009808
        %v2209 = vunpack.c.0.s8 %v2208
        %v2210 = vlaneseq
        %v2211 = vshrl.u32 %v2210, 7
        %v2212 = vsub.s32 %v2209, %v2211
        %v2213 = vrot.slane %v2199, %v2212
        %v2214 = vcombine.high %v2131, %v486
        %v2216 = vunpack.c.l.s4 1983009808
        %v2217 = vunpack.c.0.s8 %v2216
        %v2218 = vlaneseq
        %v2219 = vshrl.u32 %v2218, 7
        %v2220 = vsub.s32 %v2217, %v2219
        %v2221 = vrot.slane %v2131, %v2220
        %v2223 = vunpack.c.l.s4 1983009808
        %v2224 = vunpack.c.0.s8 %v2223
        %v2225 = vlaneseq
        %v2226 = vshrl.u32 %v2225, 7
        %v2227 = vsub.s32 %v2224, %v2226
        %v2228 = vrot.slane %v2214, %v2227
        %v2229 = vcombine.low %v2206, %v2221
        %v2230 = vcombine.high %v2206, %v2221
        %v2232 = vunpack.c.l.s4 1934713408
        %v2233 = vunpack.c.0.s8 %v2232
        %v2234 = vlaneseq
        %v2235 = vshrl.u32 %v2234, 7
        %v2236 = vsub.s32 %v2233, %v2235
        %v2237 = vrot.slane %v2229, %v2236
        %v2239 = vunpack.c.l.s4 1934713408
        %v2240 = vunpack.c.0.s8 %v2239
        %v2241 = vlaneseq
        %v2242 = vshrl.u32 %v2241, 7
        %v2243 = vsub.s32 %v2240, %v2242
        %v2244 = vrot.slane %v2230, %v2243
        %v2245 = vcombine.low %v2213, %v2228
        %v2246 = vcombine.high %v2213, %v2228
        %v2248 = vunpack.c.l.s4 1934713408
        %v2249 = vunpack.c.0.s8 %v2248
        %v2250 = vlaneseq
        %v2251 = vshrl.u32 %v2250, 7
        %v2252 = vsub.s32 %v2249, %v2251
        %v2253 = vrot.slane %v2245, %v2252
        %v2255 = vunpack.c.l.s4 1934713408
        %v2256 = vunpack.c.0.s8 %v2255
        %v2257 = vlaneseq
        %v2258 = vshrl.u32 %v2257, 7
        %v2259 = vsub.s32 %v2256, %v2258
        %v2260 = vrot.slane %v2246, %v2259
        %v2261 = vcombine.high %v2237, 0
        %v2262 = vcombine.high %v2244, 0
        %v2263 = vcombine.high %v2253, 0
        %v2264 = vcombine.high %v2260, 0
        %2266 = vrot.lane.b32.xlu0 %v2237, 16
        %v2267 = vpop.permute.xlu0 %2266
        %2269 = vrot.lane.b32.xlu0 %v2195, 32
        %v2270 = vpop.permute.xlu0 %2269
        %2272 = vrot.lane.b32.xlu0 %v2261, 48
        %v2273 = vpop.permute.xlu0 %2272
        %2275 = vrot.lane.b32.xlu0 %v2178, 64
        %v2276 = vpop.permute.xlu0 %2275
        %2278 = vrot.lane.b32.xlu0 %v2244, 80
        %v2279 = vpop.permute.xlu0 %2278
        %2281 = vrot.lane.b32.xlu0 %v2196, 96
        %v2282 = vpop.permute.xlu0 %2281
        %2284 = vrot.lane.b32.xlu0 %v2262, 112
        %v2285 = vpop.permute.xlu0 %2284
        %2287 = vrot.lane.b32.xlu0 %v2253, 16
        %v2288 = vpop.permute.xlu0 %2287
        %2290 = vrot.lane.b32.xlu0 %v2197, 32
        %v2291 = vpop.permute.xlu0 %2290
        %2293 = vrot.lane.b32.xlu0 %v2263, 48
        %v2294 = vpop.permute.xlu0 %2293
        %2296 = vrot.lane.b32.xlu0 %v2194, 64
        %v2297 = vpop.permute.xlu0 %2296
        %2299 = vrot.lane.b32.xlu0 %v2260, 80
        %v2300 = vpop.permute.xlu0 %2299
        %2302 = vrot.lane.b32.xlu0 %v2198, 96
        %v2303 = vpop.permute.xlu0 %2302
        %2305 = vrot.lane.b32.xlu0 %v2264, 112
        %v2306 = vpop.permute.xlu0 %2305
        %v2309 = vsel %vm662, %v2171, %v2267
        %v2311 = vsel %vm666, %v2309, %v2270
        %v2313 = vsel %vm669, %v2311, %v2273
        %v2315 = vsel %vm672, %v2313, %v2276
        %v2317 = vsel %vm675, %v2315, %v2279
        %v2319 = vsel %vm678, %v2317, %v2282
        %v2321 = vsel %vm681, %v2319, %v2285
        %v2324 = vsel %vm662, %v2187, %v2288
        %v2326 = vsel %vm666, %v2324, %v2291
        %v2328 = vsel %vm669, %v2326, %v2294
        %v2330 = vsel %vm672, %v2328, %v2297
        %v2332 = vsel %vm675, %v2330, %v2300
        %v2334 = vsel %vm678, %v2332, %v2303
        %v2336 = vsel %vm681, %v2334, %v2306
        %2337 = vrot.lane.b32.xlu0 %v1879, 126
        %v2338 = vpop.permute.xlu0 %2337
        %2339 = vrot.lane.b32.xlu0 %v1882, 126
        %v2340 = vpop.permute.xlu0 %2339
        %2341 = vrot.lane.b32.xlu0 %v1885, 126
        %v2342 = vpop.permute.xlu0 %2341
        %2343 = vrot.lane.b32.xlu0 %v1888, 126
        %v2344 = vpop.permute.xlu0 %2343
        %v2347 = vpack.i.b16 %v2340, %v2338
        %v2349 = vshrl.u32 %v2338, 16
        %v2350 = vshrl.u32 %v2340, 16
        %v2351 = vpack.i.b16 %v2350, %v2349
        %v2355 = vpack.i.b16 %v2344, %v2342
        %v2357 = vshrl.u32 %v2342, 16
        %v2358 = vshrl.u32 %v2344, 16
        %v2359 = vpack.i.b16 %v2358, %v2357
        %v2361 = vcombine.high %v2347, %v483
        %v2363 = vunpack.c.l.s4 1983009808
        %v2364 = vunpack.c.0.s8 %v2363
        %v2365 = vlaneseq
        %v2366 = vshrl.u32 %v2365, 7
        %v2367 = vsub.s32 %v2364, %v2366
        %v2368 = vrot.slane %v2347, %v2367
        %v2370 = vunpack.c.l.s4 1983009808
        %v2371 = vunpack.c.0.s8 %v2370
        %v2372 = vlaneseq
        %v2373 = vshrl.u32 %v2372, 7
        %v2374 = vsub.s32 %v2371, %v2373
        %v2375 = vrot.slane %v2361, %v2374
        %v2376 = vcombine.high %v2355, %v483
        %v2378 = vunpack.c.l.s4 1983009808
        %v2379 = vunpack.c.0.s8 %v2378
        %v2380 = vlaneseq
        %v2381 = vshrl.u32 %v2380, 7
        %v2382 = vsub.s32 %v2379, %v2381
        %v2383 = vrot.slane %v2355, %v2382
        %v2385 = vunpack.c.l.s4 1983009808
        %v2386 = vunpack.c.0.s8 %v2385
        %v2387 = vlaneseq
        %v2388 = vshrl.u32 %v2387, 7
        %v2389 = vsub.s32 %v2386, %v2388
        %v2390 = vrot.slane %v2376, %v2389
        %v2391 = vcombine.low %v2368, %v2383
        %v2392 = vcombine.high %v2368, %v2383
        %v2394 = vunpack.c.l.s4 1934713408
        %v2395 = vunpack.c.0.s8 %v2394
        %v2396 = vlaneseq
        %v2397 = vshrl.u32 %v2396, 7
        %v2398 = vsub.s32 %v2395, %v2397
        %v2399 = vrot.slane %v2391, %v2398
        %v2401 = vunpack.c.l.s4 1934713408
        %v2402 = vunpack.c.0.s8 %v2401
        %v2403 = vlaneseq
        %v2404 = vshrl.u32 %v2403, 7
        %v2405 = vsub.s32 %v2402, %v2404
        %v2406 = vrot.slane %v2392, %v2405
        %v2407 = vcombine.low %v2375, %v2390
        %v2408 = vcombine.high %v2375, %v2390
        %v2410 = vunpack.c.l.s4 1934713408
        %v2411 = vunpack.c.0.s8 %v2410
        %v2412 = vlaneseq
        %v2413 = vshrl.u32 %v2412, 7
        %v2414 = vsub.s32 %v2411, %v2413
        %v2415 = vrot.slane %v2407, %v2414
        %v2417 = vunpack.c.l.s4 1934713408
        %v2418 = vunpack.c.0.s8 %v2417
        %v2419 = vlaneseq
        %v2420 = vshrl.u32 %v2419, 7
        %v2421 = vsub.s32 %v2418, %v2420
        %v2422 = vrot.slane %v2408, %v2421
        %v2423 = vcombine.high %v2399, 0
        %v2424 = vcombine.high %v2406, 0
        %v2425 = vcombine.high %v2415, 0
        %v2426 = vcombine.high %v2422, 0
        %v2427 = vcombine.high %v2351, %v486
        %v2429 = vunpack.c.l.s4 1983009808
        %v2430 = vunpack.c.0.s8 %v2429
        %v2431 = vlaneseq
        %v2432 = vshrl.u32 %v2431, 7
        %v2433 = vsub.s32 %v2430, %v2432
        %v2434 = vrot.slane %v2351, %v2433
        %v2436 = vunpack.c.l.s4 1983009808
        %v2437 = vunpack.c.0.s8 %v2436
        %v2438 = vlaneseq
        %v2439 = vshrl.u32 %v2438, 7
        %v2440 = vsub.s32 %v2437, %v2439
        %v2441 = vrot.slane %v2427, %v2440
        %v2442 = vcombine.high %v2359, %v486
        %v2444 = vunpack.c.l.s4 1983009808
        %v2445 = vunpack.c.0.s8 %v2444
        %v2446 = vlaneseq
        %v2447 = vshrl.u32 %v2446, 7
        %v2448 = vsub.s32 %v2445, %v2447
        %v2449 = vrot.slane %v2359, %v2448
        %v2451 = vunpack.c.l.s4 1983009808
        %v2452 = vunpack.c.0.s8 %v2451
        %v2453 = vlaneseq
        %v2454 = vshrl.u32 %v2453, 7
        %v2455 = vsub.s32 %v2452, %v2454
        %v2456 = vrot.slane %v2442, %v2455
        %v2457 = vcombine.low %v2434, %v2449
        %v2458 = vcombine.high %v2434, %v2449
        %v2460 = vunpack.c.l.s4 1934713408
        %v2461 = vunpack.c.0.s8 %v2460
        %v2462 = vlaneseq
        %v2463 = vshrl.u32 %v2462, 7
        %v2464 = vsub.s32 %v2461, %v2463
        %v2465 = vrot.slane %v2457, %v2464
        %v2467 = vunpack.c.l.s4 1934713408
        %v2468 = vunpack.c.0.s8 %v2467
        %v2469 = vlaneseq
        %v2470 = vshrl.u32 %v2469, 7
        %v2471 = vsub.s32 %v2468, %v2470
        %v2472 = vrot.slane %v2458, %v2471
        %v2473 = vcombine.low %v2441, %v2456
        %v2474 = vcombine.high %v2441, %v2456
        %v2476 = vunpack.c.l.s4 1934713408
        %v2477 = vunpack.c.0.s8 %v2476
        %v2478 = vlaneseq
        %v2479 = vshrl.u32 %v2478, 7
        %v2480 = vsub.s32 %v2477, %v2479
        %v2481 = vrot.slane %v2473, %v2480
        %v2483 = vunpack.c.l.s4 1934713408
        %v2484 = vunpack.c.0.s8 %v2483
        %v2485 = vlaneseq
        %v2486 = vshrl.u32 %v2485, 7
        %v2487 = vsub.s32 %v2484, %v2486
        %v2488 = vrot.slane %v2474, %v2487
        %v2489 = vcombine.high %v2465, 0
        %v2490 = vcombine.high %v2472, 0
        %v2491 = vcombine.high %v2481, 0
        %v2492 = vcombine.high %v2488, 0
        %2494 = vrot.lane.b32.xlu0 %v2465, 16
        %v2495 = vpop.permute.xlu0 %2494
        %2497 = vrot.lane.b32.xlu0 %v2423, 32
        %v2498 = vpop.permute.xlu0 %2497
        %2500 = vrot.lane.b32.xlu0 %v2489, 48
        %v2501 = vpop.permute.xlu0 %2500
        %2503 = vrot.lane.b32.xlu0 %v2406, 64
        %v2504 = vpop.permute.xlu0 %2503
        %2506 = vrot.lane.b32.xlu0 %v2472, 80
        %v2507 = vpop.permute.xlu0 %2506
        %2509 = vrot.lane.b32.xlu0 %v2424, 96
        %v2510 = vpop.permute.xlu0 %2509
        %2512 = vrot.lane.b32.xlu0 %v2490, 112
        %v2513 = vpop.permute.xlu0 %2512
        %2515 = vrot.lane.b32.xlu0 %v2481, 16
        %v2516 = vpop.permute.xlu0 %2515
        %2518 = vrot.lane.b32.xlu0 %v2425, 32
        %v2519 = vpop.permute.xlu0 %2518
        %2521 = vrot.lane.b32.xlu0 %v2491, 48
        %v2522 = vpop.permute.xlu0 %2521
        %2524 = vrot.lane.b32.xlu0 %v2422, 64
        %v2525 = vpop.permute.xlu0 %2524
        %2527 = vrot.lane.b32.xlu0 %v2488, 80
        %v2528 = vpop.permute.xlu0 %2527
        %2530 = vrot.lane.b32.xlu0 %v2426, 96
        %v2531 = vpop.permute.xlu0 %2530
        %2533 = vrot.lane.b32.xlu0 %v2492, 112
        %v2534 = vpop.permute.xlu0 %2533
        %v2537 = vsel %vm662, %v2399, %v2495
        %v2539 = vsel %vm666, %v2537, %v2498
        %v2541 = vsel %vm669, %v2539, %v2501
        %v2543 = vsel %vm672, %v2541, %v2504
        %v2545 = vsel %vm675, %v2543, %v2507
        %v2547 = vsel %vm678, %v2545, %v2510
        %v2549 = vsel %vm681, %v2547, %v2513
        %v2552 = vsel %vm662, %v2415, %v2516
        %v2554 = vsel %vm666, %v2552, %v2519
        %v2556 = vsel %vm669, %v2554, %v2522
        %v2558 = vsel %vm672, %v2556, %v2525
        %v2560 = vsel %vm675, %v2558, %v2528
        %v2562 = vsel %vm678, %v2560, %v2531
        %v2564 = vsel %vm681, %v2562, %v2534
        %v2567 = vrot.slane %v915, 6
        %v2568 = vrot.slane %v930, 6
        %v2571 = vrot.slane %v1143, 4
        %v2572 = vrot.slane %v1158, 4
        %v2575 = vrot.slane %v1400, 2
        %v2576 = vrot.slane %v1415, 2
        %v2579 = vrot.slane %v1856, 6
        %v2580 = vrot.slane %v1871, 6
        %v2583 = vrot.slane %v2093, 4
        %v2584 = vrot.slane %v2108, 4
        %v2587 = vrot.slane %v2321, 2
        %v2588 = vrot.slane %v2336, 2
        %vm2589 = vcmask 1041408
        %v2591 = vsel %vm2589, %v683, %v2567
        %v2593 = vsel %vm2589, %v698, %v2568
        %vm2594 = vcmask 1043456
        %v2596 = vsel %vm2594, %v2591, %v2571
        %v2598 = vsel %vm2594, %v2593, %v2572
        %vm2599 = vcmask 1045504
        %v2601 = vsel %vm2599, %v2596, %v2575
        %v2604 = vsel %vm2599, %v2598, %v2576
        %v2607 = vsel %vm2589, %v1628, %v2579
        %v2609 = vsel %vm2589, %v1643, %v2580
        %v2611 = vsel %vm2594, %v2607, %v2583
        %v2613 = vsel %vm2594, %v2609, %v2584
        %v2615 = vsel %vm2599, %v2611, %v2587
        %v2618 = vsel %vm2599, %v2613, %v2588
        %vm2620 = vcmask 293888
        %v2622 = vsel %vm2620, %v469, 0
        %v2624 = vsel %vm2589, %v2549, 0
        %v2626 = vsel %vm2589, %v2564, 0
        %2628 = vmatprep.subr.bf16.mxu0 0
        %2629 = vmatpush1.bf16.msra.mxu0 0
        %2630 = vmatprep.subr.bf16.mxu0 0
        %2631 = vmatpush1.bf16.msra.mxu0 0
        %2632 = vmatprep.subr.bf16.mxu0 0
        %2633 = vmatpush1.bf16.msra.mxu0 0
        %2634 = vmatprep.subr.bf16.mxu0 0
        %2635 = vmatpush1.bf16.msra.mxu0 0
        %2636 = vmatprep.subr.bf16.mxu0 0
        %2637 = vmatpush1.bf16.msra.mxu0 0
        %2638 = vmatprep.subr.bf16.mxu0 %v2626
        %2639 = vmatpush1.bf16.msra.mxu0 %v2624
        %2640 = vmatprep.subr.bf16.mxu0 %v2618
        %2641 = vmatpush1.bf16.msra.mxu0 %v2615
        %2642 = vmatprep.subr.bf16.mxu0 %v2604
        %2643 = vmatpush1.bf16.msra.mxu0 %v2601
        %2644 = vmatprep.subr.bf16.mxu0 0
        %2645 = vmatpush2.bf16.msra.mxu0 0
        %2646 = vmatprep.subr.bf16.mxu0 0
        %2647 = vmatpush2.bf16.msra.mxu0 0
        %2648 = vmatprep.subr.bf16.mxu0 0
        %2649 = vmatpush2.bf16.msra.mxu0 0
        %2650 = vmatprep.subr.bf16.mxu0 0
        %2651 = vmatpush2.bf16.msra.mxu0 0
        %2652 = vmatprep.subr.bf16.mxu0 0
        %2653 = vmatpush2.bf16.msra.mxu0 0
        %2654 = vmatprep.subr.bf16.mxu0 0
        %2655 = vmatpush2.bf16.msra.mxu0 0
        %2656 = vmatprep.subr.bf16.mxu0 0
        %2657 = vmatpush2.bf16.msra.mxu0 0
        %2658 = vmatprep.subr.bf16.mxu0 0
        %2659 = vmatpush2.bf16.msra.mxu0 0
        %2660 = vmatprep.mubr.bf16.mxu0 0
        %2661 = vmatmul.mubr.bf16.gmra.mxu0 %v2622
        %v2662 = vpop.f32.mrf.mxu0
        %v2663 = vadd.f32 0.0, %v2662
        %v2664 = vpop.f32.mrf.mxu0
        %v2665 = vadd.f32 0.0, %v2664
        %v2666 = vpop.f32.mrf.mxu0
        %v2667 = vpop.f32.mrf.mxu0
        %2668 = vdwg.mxu0
        %v2669 = vld [vmem:[%s2] sm:$0xf]
        %2671 = vset.pattern.permute.xlu0 0
        %2672 = vperm.xlu0 %2671, %v2669
        %v2673 = vpop.permute.xlu0 %2672
        %v2675 = vmul.f32 %v2663, %v2673
        %v2676 = vmul.f32 %v2665, %v2673
        %v2677 = vld [vmem:[%s3] sm:$0xf]
        %2679 = vset.pattern.permute.xlu0 0
        %2680 = vperm.xlu0 %2679, %v2677
        %v2681 = vpop.permute.xlu0 %2680
        %v2683 = vadd.f32 %v2675, %v2681
        %v2684 = vadd.f32 %v2676, %v2681
        %vm2685 = vcmp.gt.f32.partialorder %v2683, 0.0
        %vm2686 = vcmp.gt.f32.partialorder %v2684, 0.0
        %v2687 = vmul.f32 %v2683, 0.2
        %v2688 = vmul.f32 %v2684, 0.2
        %v2689 = vsel %vm2685, %v2683, %v2687
        %v2690 = vsel %vm2686, %v2684, %v2688
        %v2691 = vpack.c.bf16 %v2689, %v2689
        %v2692 = vpack.c.bf16 %v2690, %v2690
        %2694 = vrot.lane.b32.xlu0 %v2691, 112
        %v2695 = vpop.permute.xlu0 %2694
        %2697 = vrot.lane.b32.xlu0 %v2691, 96
        %v2698 = vpop.permute.xlu0 %2697
        %2700 = vrot.lane.b32.xlu0 %v2691, 80
        %v2701 = vpop.permute.xlu0 %2700
        %2703 = vrot.lane.b32.xlu0 %v2691, 64
        %v2704 = vpop.permute.xlu0 %2703
        %2706 = vrot.lane.b32.xlu0 %v2691, 48
        %v2707 = vpop.permute.xlu0 %2706
        %2709 = vrot.lane.b32.xlu0 %v2691, 32
        %v2710 = vpop.permute.xlu0 %2709
        %2712 = vrot.lane.b32.xlu0 %v2691, 16
        %v2713 = vpop.permute.xlu0 %2712
        %2716 = vrot.lane.b32.xlu0 %v2692, 112
        %v2717 = vpop.permute.xlu0 %2716
        %2719 = vrot.lane.b32.xlu0 %v2692, 96
        %v2720 = vpop.permute.xlu0 %2719
        %2722 = vrot.lane.b32.xlu0 %v2692, 80
        %v2723 = vpop.permute.xlu0 %2722
        %2725 = vrot.lane.b32.xlu0 %v2692, 64
        %v2726 = vpop.permute.xlu0 %2725
        %2728 = vrot.lane.b32.xlu0 %v2692, 48
        %v2729 = vpop.permute.xlu0 %2728
        %2731 = vrot.lane.b32.xlu0 %v2692, 32
        %v2732 = vpop.permute.xlu0 %2731
        %2734 = vrot.lane.b32.xlu0 %v2692, 16
        %v2735 = vpop.permute.xlu0 %2734
        %v2737 = vcombine.low %v2691, %v2704
        %v2739 = vunpack.c.l.s4 1983009808
        %v2740 = vunpack.c.0.s8 %v2739
        %v2741 = vlaneseq
        %v2742 = vshrl.u32 %v2741, 7
        %v2743 = vsub.s32 %v2740, %v2742
        %v2744 = vrot.slane %v2737, %v2743
        %v2745 = vcombine.low %v2698, %v2710
        %v2747 = vunpack.c.l.s4 1983009808
        %v2748 = vunpack.c.0.s8 %v2747
        %v2749 = vlaneseq
        %v2750 = vshrl.u32 %v2749, 7
        %v2751 = vsub.s32 %v2748, %v2750
        %v2752 = vrot.slane %v2745, %v2751
        %v2753 = vcombine.low %v2692, %v2726
        %v2755 = vunpack.c.l.s4 1983009808
        %v2756 = vunpack.c.0.s8 %v2755
        %v2757 = vlaneseq
        %v2758 = vshrl.u32 %v2757, 7
        %v2759 = vsub.s32 %v2756, %v2758
        %v2760 = vrot.slane %v2753, %v2759
        %v2761 = vcombine.low %v2720, %v2732
        %v2763 = vunpack.c.l.s4 1983009808
        %v2764 = vunpack.c.0.s8 %v2763
        %v2765 = vlaneseq
        %v2766 = vshrl.u32 %v2765, 7
        %v2767 = vsub.s32 %v2764, %v2766
        %v2768 = vrot.slane %v2761, %v2767
        %v2769 = vcombine.low %v2744, %v2752
        %v2771 = vunpack.c.l.s4 1934713408
        %v2772 = vunpack.c.0.s8 %v2771
        %v2773 = vlaneseq
        %v2774 = vshrl.u32 %v2773, 7
        %v2775 = vsub.s32 %v2772, %v2774
        %v2776 = vrot.slane %v2769, %v2775
        %v2777 = vcombine.low %v2760, %v2768
        %v2779 = vunpack.c.l.s4 1934713408
        %v2780 = vunpack.c.0.s8 %v2779
        %v2781 = vlaneseq
        %v2782 = vshrl.u32 %v2781, 7
        %v2783 = vsub.s32 %v2780, %v2782
        %v2784 = vrot.slane %v2777, %v2783
        %v2785 = vcombine.low %v2776, %v2784
        %v2786 = vcombine.high %v2776, %v2784
        %v2787 = vcombine.low %v2695, %v2707
        %v2789 = vunpack.c.l.s4 1983009808
        %v2790 = vunpack.c.0.s8 %v2789
        %v2791 = vlaneseq
        %v2792 = vshrl.u32 %v2791, 7
        %v2793 = vsub.s32 %v2790, %v2792
        %v2794 = vrot.slane %v2787, %v2793
        %v2795 = vcombine.low %v2701, %v2713
        %v2797 = vunpack.c.l.s4 1983009808
        %v2798 = vunpack.c.0.s8 %v2797
        %v2799 = vlaneseq
        %v2800 = vshrl.u32 %v2799, 7
        %v2801 = vsub.s32 %v2798, %v2800
        %v2802 = vrot.slane %v2795, %v2801
        %v2803 = vcombine.low %v2717, %v2729
        %v2805 = vunpack.c.l.s4 1983009808
        %v2806 = vunpack.c.0.s8 %v2805
        %v2807 = vlaneseq
        %v2808 = vshrl.u32 %v2807, 7
        %v2809 = vsub.s32 %v2806, %v2808
        %v2810 = vrot.slane %v2803, %v2809
        %v2811 = vcombine.low %v2723, %v2735
        %v2813 = vunpack.c.l.s4 1983009808
        %v2814 = vunpack.c.0.s8 %v2813
        %v2815 = vlaneseq
        %v2816 = vshrl.u32 %v2815, 7
        %v2817 = vsub.s32 %v2814, %v2816
        %v2818 = vrot.slane %v2811, %v2817
        %v2819 = vcombine.low %v2794, %v2802
        %v2821 = vunpack.c.l.s4 1934713408
        %v2822 = vunpack.c.0.s8 %v2821
        %v2823 = vlaneseq
        %v2824 = vshrl.u32 %v2823, 7
        %v2825 = vsub.s32 %v2822, %v2824
        %v2826 = vrot.slane %v2819, %v2825
        %v2827 = vcombine.low %v2810, %v2818
        %v2829 = vunpack.c.l.s4 1934713408
        %v2830 = vunpack.c.0.s8 %v2829
        %v2831 = vlaneseq
        %v2832 = vshrl.u32 %v2831, 7
        %v2833 = vsub.s32 %v2830, %v2832
        %v2834 = vrot.slane %v2827, %v2833
        %v2835 = vcombine.low %v2826, %v2834
        %v2836 = vcombine.high %v2826, %v2834
        %v2839 = vpack.i.b16 %v2835, %v2785
        %v2840 = vshrl.u32 %v2785, 16
        %v2841 = vshrl.u32 %v2835, 16
        %v2842 = vpack.i.b16 %v2841, %v2840
        %v2845 = vpack.i.b16 %v2836, %v2786
        %v2846 = vshrl.u32 %v2786, 16
        %v2847 = vshrl.u32 %v2836, 16
        %v2848 = vpack.i.b16 %v2847, %v2846
        %v2850 = vshrl.u32 %v2839, 16
        %v2853 = vshrl.u32 %v2842, 16
        %v2856 = vshrl.u32 %v2845, 16
        %v2859 = vshrl.u32 %v2848, 16
        %v2865 = vrot.slane %v2850, 7
        %v2866 = vshll.u32 %v2839, 16
        %v2868 = vor.u32 %v2865, %v2866
        %v2869 = vrot.slane %v2853, 7
        %v2870 = vshll.u32 %v2842, 16
        %v2872 = vor.u32 %v2869, %v2870
        %v2873 = vrot.slane %v2856, 7
        %v2874 = vshll.u32 %v2845, 16
        %v2876 = vor.u32 %v2873, %v2874
        %v2877 = vrot.slane %v2859, 7
        %v2878 = vshll.u32 %v2848, 16
        %v2880 = vor.u32 %v2877, %v2878
        %v2889 = vrot.slane %v2866, 7
        %v2890 = vrot.slane %v2870, 7
        %v2891 = vrot.slane %v2874, 7
        %v2892 = vrot.slane %v2878, 7
        %v2897 = vsel %vm362, %v2850, %v2868
        %v2898 = vsel %vm362, %v2853, %v2872
        %v2899 = vsel %vm362, %v2856, %v2876
        %v2900 = vsel %vm362, %v2859, %v2880
        %v2901 = vsel %vm362, %v2865, %v2889
        %v2902 = vsel %vm362, %v2869, %v2890
        %v2903 = vsel %vm362, %v2873, %v2891
        %v2904 = vsel %vm362, %v2877, %v2892
        %2913 = vrot.lane.b32.xlu0 %v2897, 127
        %v2914 = vpop.permute.xlu0 %2913
        %2915 = vrot.lane.b32.xlu0 %v2901, 127
        %v2916 = vpop.permute.xlu0 %2915
        %2917 = vrot.lane.b32.xlu0 %v2898, 127
        %v2918 = vpop.permute.xlu0 %2917
        %2919 = vrot.lane.b32.xlu0 %v2902, 127
        %v2920 = vpop.permute.xlu0 %2919
        %2921 = vrot.lane.b32.xlu0 %v2899, 127
        %v2922 = vpop.permute.xlu0 %2921
        %2923 = vrot.lane.b32.xlu0 %v2903, 127
        %v2924 = vpop.permute.xlu0 %2923
        %2925 = vrot.lane.b32.xlu0 %v2900, 127
        %v2926 = vpop.permute.xlu0 %2925
        %2927 = vrot.lane.b32.xlu0 %v2904, 127
        %v2928 = vpop.permute.xlu0 %2927
        %2929 = vrot.lane.b32.xlu0 %v2897, 1
        %v2930 = vpop.permute.xlu0 %2929
        %2931 = vrot.lane.b32.xlu0 %v2901, 1
        %v2932 = vpop.permute.xlu0 %2931
        %2933 = vrot.lane.b32.xlu0 %v2898, 1
        %v2934 = vpop.permute.xlu0 %2933
        %2935 = vrot.lane.b32.xlu0 %v2902, 1
        %v2936 = vpop.permute.xlu0 %2935
        %2937 = vrot.lane.b32.xlu0 %v2899, 1
        %v2938 = vpop.permute.xlu0 %2937
        %2939 = vrot.lane.b32.xlu0 %v2903, 1
        %v2940 = vpop.permute.xlu0 %2939
        %2941 = vrot.lane.b32.xlu0 %v2900, 1
        %v2942 = vpop.permute.xlu0 %2941
        %2943 = vrot.lane.b32.xlu0 %v2904, 1
        %v2944 = vpop.permute.xlu0 %2943
        %2945 = vrot.lane.b32.xlu0 %v2897, 3
        %v2946 = vpop.permute.xlu0 %2945
        %2947 = vrot.lane.b32.xlu0 %v2901, 3
        %v2948 = vpop.permute.xlu0 %2947
        %2949 = vrot.lane.b32.xlu0 %v2898, 3
        %v2950 = vpop.permute.xlu0 %2949
        %2951 = vrot.lane.b32.xlu0 %v2902, 3
        %v2952 = vpop.permute.xlu0 %2951
        %2953 = vrot.lane.b32.xlu0 %v2899, 3
        %v2954 = vpop.permute.xlu0 %2953
        %2955 = vrot.lane.b32.xlu0 %v2903, 3
        %v2956 = vpop.permute.xlu0 %2955
        %2957 = vrot.lane.b32.xlu0 %v2900, 3
        %v2958 = vpop.permute.xlu0 %2957
        %2959 = vrot.lane.b32.xlu0 %v2904, 3
        %v2960 = vpop.permute.xlu0 %2959
        %v2963 = vsel %vm427, %v2914, %v2930
        %v2966 = vsel %vm427, %v2916, %v2932
        %v2969 = vsel %vm427, %v2918, %v2934
        %v2972 = vsel %vm427, %v2920, %v2936
        %v2975 = vsel %vm427, %v2922, %v2938
        %v2978 = vsel %vm427, %v2924, %v2940
        %v2981 = vsel %vm427, %v2926, %v2942
        %v2984 = vsel %vm427, %v2928, %v2944
        %v2986 = vsel %vm452, %v2963, %v2946
        %v2988 = vsel %vm452, %v2966, %v2948
        %v2990 = vsel %vm452, %v2969, %v2950
        %v2992 = vsel %vm452, %v2972, %v2952
        %v2994 = vsel %vm452, %v2975, %v2954
        %v2996 = vsel %vm452, %v2978, %v2956
        %v2998 = vsel %vm452, %v2981, %v2958
        %v3000 = vsel %vm452, %v2984, %v2960
        %v3001 = vld [vmem:[%s4] sm:$0x3]
        %v3002 = vpack.i.b16 %v2990, %v2986
        %v3004 = vshrl.u32 %v2986, 16
        %v3005 = vshrl.u32 %v2990, 16
        %v3006 = vpack.i.b16 %v3005, %v3004
        %v3008 = vpack.i.b16 %v2998, %v2994
        %v3010 = vshrl.u32 %v2994, 16
        %v3011 = vshrl.u32 %v2998, 16
        %v3012 = vpack.i.b16 %v3011, %v3010
        %v3014 = vcombine.high %v3002, %v483
        %v3016 = vunpack.c.l.s4 1983009808
        %v3017 = vunpack.c.0.s8 %v3016
        %v3018 = vlaneseq
        %v3019 = vshrl.u32 %v3018, 7
        %v3020 = vsub.s32 %v3017, %v3019
        %v3021 = vrot.slane %v3002, %v3020
        %v3023 = vunpack.c.l.s4 1983009808
        %v3024 = vunpack.c.0.s8 %v3023
        %v3025 = vlaneseq
        %v3026 = vshrl.u32 %v3025, 7
        %v3027 = vsub.s32 %v3024, %v3026
        %v3028 = vrot.slane %v3014, %v3027
        %v3029 = vcombine.high %v3008, %v483
        %v3031 = vunpack.c.l.s4 1983009808
        %v3032 = vunpack.c.0.s8 %v3031
        %v3033 = vlaneseq
        %v3034 = vshrl.u32 %v3033, 7
        %v3035 = vsub.s32 %v3032, %v3034
        %v3036 = vrot.slane %v3008, %v3035
        %v3038 = vunpack.c.l.s4 1983009808
        %v3039 = vunpack.c.0.s8 %v3038
        %v3040 = vlaneseq
        %v3041 = vshrl.u32 %v3040, 7
        %v3042 = vsub.s32 %v3039, %v3041
        %v3043 = vrot.slane %v3029, %v3042
        %v3044 = vcombine.low %v3021, %v3036
        %v3045 = vcombine.high %v3021, %v3036
        %v3047 = vunpack.c.l.s4 1934713408
        %v3048 = vunpack.c.0.s8 %v3047
        %v3049 = vlaneseq
        %v3050 = vshrl.u32 %v3049, 7
        %v3051 = vsub.s32 %v3048, %v3050
        %v3052 = vrot.slane %v3044, %v3051
        %v3054 = vunpack.c.l.s4 1934713408
        %v3055 = vunpack.c.0.s8 %v3054
        %v3056 = vlaneseq
        %v3057 = vshrl.u32 %v3056, 7
        %v3058 = vsub.s32 %v3055, %v3057
        %v3059 = vrot.slane %v3045, %v3058
        %v3060 = vcombine.low %v3028, %v3043
        %v3061 = vcombine.high %v3028, %v3043
        %v3063 = vunpack.c.l.s4 1934713408
        %v3064 = vunpack.c.0.s8 %v3063
        %v3065 = vlaneseq
        %v3066 = vshrl.u32 %v3065, 7
        %v3067 = vsub.s32 %v3064, %v3066
        %v3068 = vrot.slane %v3060, %v3067
        %v3070 = vunpack.c.l.s4 1934713408
        %v3071 = vunpack.c.0.s8 %v3070
        %v3072 = vlaneseq
        %v3073 = vshrl.u32 %v3072, 7
        %v3074 = vsub.s32 %v3071, %v3073
        %v3075 = vrot.slane %v3061, %v3074
        %v3076 = vcombine.high %v3052, 0
        %v3077 = vcombine.high %v3059, 0
        %v3078 = vcombine.high %v3068, 0
        %v3079 = vcombine.high %v3075, 0
        %v3080 = vcombine.high %v3006, %v486
        %v3082 = vunpack.c.l.s4 1983009808
        %v3083 = vunpack.c.0.s8 %v3082
        %v3084 = vlaneseq
        %v3085 = vshrl.u32 %v3084, 7
        %v3086 = vsub.s32 %v3083, %v3085
        %v3087 = vrot.slane %v3006, %v3086
        %v3089 = vunpack.c.l.s4 1983009808
        %v3090 = vunpack.c.0.s8 %v3089
        %v3091 = vlaneseq
        %v3092 = vshrl.u32 %v3091, 7
        %v3093 = vsub.s32 %v3090, %v3092
        %v3094 = vrot.slane %v3080, %v3093
        %v3095 = vcombine.high %v3012, %v486
        %v3097 = vunpack.c.l.s4 1983009808
        %v3098 = vunpack.c.0.s8 %v3097
        %v3099 = vlaneseq
        %v3100 = vshrl.u32 %v3099, 7
        %v3101 = vsub.s32 %v3098, %v3100
        %v3102 = vrot.slane %v3012, %v3101
        %v3104 = vunpack.c.l.s4 1983009808
        %v3105 = vunpack.c.0.s8 %v3104
        %v3106 = vlaneseq
        %v3107 = vshrl.u32 %v3106, 7
        %v3108 = vsub.s32 %v3105, %v3107
        %v3109 = vrot.slane %v3095, %v3108
        %v3110 = vcombine.low %v3087, %v3102
        %v3111 = vcombine.high %v3087, %v3102
        %v3113 = vunpack.c.l.s4 1934713408
        %v3114 = vunpack.c.0.s8 %v3113
        %v3115 = vlaneseq
        %v3116 = vshrl.u32 %v3115, 7
        %v3117 = vsub.s32 %v3114, %v3116
        %v3118 = vrot.slane %v3110, %v3117
        %v3120 = vunpack.c.l.s4 1934713408
        %v3121 = vunpack.c.0.s8 %v3120
        %v3122 = vlaneseq
        %v3123 = vshrl.u32 %v3122, 7
        %v3124 = vsub.s32 %v3121, %v3123
        %v3125 = vrot.slane %v3111, %v3124
        %v3126 = vcombine.low %v3094, %v3109
        %v3127 = vcombine.high %v3094, %v3109
        %v3129 = vunpack.c.l.s4 1934713408
        %v3130 = vunpack.c.0.s8 %v3129
        %v3131 = vlaneseq
        %v3132 = vshrl.u32 %v3131, 7
        %v3133 = vsub.s32 %v3130, %v3132
        %v3134 = vrot.slane %v3126, %v3133
        %v3136 = vunpack.c.l.s4 1934713408
        %v3137 = vunpack.c.0.s8 %v3136
        %v3138 = vlaneseq
        %v3139 = vshrl.u32 %v3138, 7
        %v3140 = vsub.s32 %v3137, %v3139
        %v3141 = vrot.slane %v3127, %v3140
        %v3142 = vcombine.high %v3118, 0
        %v3143 = vcombine.high %v3125, 0
        %v3144 = vcombine.high %v3134, 0
        %v3145 = vcombine.high %v3141, 0
        %3147 = vrot.lane.b32.xlu0 %v3118, 16
        %v3148 = vpop.permute.xlu0 %3147
        %3150 = vrot.lane.b32.xlu0 %v3076, 32
        %v3151 = vpop.permute.xlu0 %3150
        %3153 = vrot.lane.b32.xlu0 %v3142, 48
        %v3154 = vpop.permute.xlu0 %3153
        %3156 = vrot.lane.b32.xlu0 %v3059, 64
        %v3157 = vpop.permute.xlu0 %3156
        %3159 = vrot.lane.b32.xlu0 %v3125, 80
        %v3160 = vpop.permute.xlu0 %3159
        %3162 = vrot.lane.b32.xlu0 %v3077, 96
        %v3163 = vpop.permute.xlu0 %3162
        %3165 = vrot.lane.b32.xlu0 %v3143, 112
        %v3166 = vpop.permute.xlu0 %3165
        %3168 = vrot.lane.b32.xlu0 %v3134, 16
        %v3169 = vpop.permute.xlu0 %3168
        %3171 = vrot.lane.b32.xlu0 %v3078, 32
        %v3172 = vpop.permute.xlu0 %3171
        %3174 = vrot.lane.b32.xlu0 %v3144, 48
        %v3175 = vpop.permute.xlu0 %3174
        %3177 = vrot.lane.b32.xlu0 %v3075, 64
        %v3178 = vpop.permute.xlu0 %3177
        %3180 = vrot.lane.b32.xlu0 %v3141, 80
        %v3181 = vpop.permute.xlu0 %3180
        %3183 = vrot.lane.b32.xlu0 %v3079, 96
        %v3184 = vpop.permute.xlu0 %3183
        %3186 = vrot.lane.b32.xlu0 %v3145, 112
        %v3187 = vpop.permute.xlu0 %3186
        %v3190 = vsel %vm662, %v3052, %v3148
        %v3192 = vsel %vm666, %v3190, %v3151
        %v3194 = vsel %vm669, %v3192, %v3154
        %v3196 = vsel %vm672, %v3194, %v3157
        %v3198 = vsel %vm675, %v3196, %v3160
        %v3200 = vsel %vm678, %v3198, %v3163
        %v3202 = vsel %vm681, %v3200, %v3166
        %v3205 = vsel %vm662, %v3068, %v3169
        %v3207 = vsel %vm666, %v3205, %v3172
        %v3209 = vsel %vm669, %v3207, %v3175
        %v3211 = vsel %vm672, %v3209, %v3178
        %v3213 = vsel %vm675, %v3211, %v3181
        %v3215 = vsel %vm678, %v3213, %v3184
        %v3217 = vsel %vm681, %v3215, %v3187
        %3222 = vrot.lane.b32.xlu0 %v2986, 127
        %v3223 = vpop.permute.xlu0 %3222
        %3224 = vrot.lane.b32.xlu0 %v2990, 127
        %v3225 = vpop.permute.xlu0 %3224
        %3226 = vrot.lane.b32.xlu0 %v2994, 127
        %v3227 = vpop.permute.xlu0 %3226
        %3228 = vrot.lane.b32.xlu0 %v2998, 127
        %v3229 = vpop.permute.xlu0 %3228
        %v3232 = vpack.i.b16 %v3225, %v3223
        %v3234 = vshrl.u32 %v3223, 16
        %v3235 = vshrl.u32 %v3225, 16
        %v3236 = vpack.i.b16 %v3235, %v3234
        %v3240 = vpack.i.b16 %v3229, %v3227
        %v3242 = vshrl.u32 %v3227, 16
        %v3243 = vshrl.u32 %v3229, 16
        %v3244 = vpack.i.b16 %v3243, %v3242
        %v3246 = vcombine.high %v3232, %v483
        %v3248 = vunpack.c.l.s4 1983009808
        %v3249 = vunpack.c.0.s8 %v3248
        %v3250 = vlaneseq
        %v3251 = vshrl.u32 %v3250, 7
        %v3252 = vsub.s32 %v3249, %v3251
        %v3253 = vrot.slane %v3232, %v3252
        %v3255 = vunpack.c.l.s4 1983009808
        %v3256 = vunpack.c.0.s8 %v3255
        %v3257 = vlaneseq
        %v3258 = vshrl.u32 %v3257, 7
        %v3259 = vsub.s32 %v3256, %v3258
        %v3260 = vrot.slane %v3246, %v3259
        %v3261 = vcombine.high %v3240, %v483
        %v3263 = vunpack.c.l.s4 1983009808
        %v3264 = vunpack.c.0.s8 %v3263
        %v3265 = vlaneseq
        %v3266 = vshrl.u32 %v3265, 7
        %v3267 = vsub.s32 %v3264, %v3266
        %v3268 = vrot.slane %v3240, %v3267
        %v3270 = vunpack.c.l.s4 1983009808
        %v3271 = vunpack.c.0.s8 %v3270
        %v3272 = vlaneseq
        %v3273 = vshrl.u32 %v3272, 7
        %v3274 = vsub.s32 %v3271, %v3273
        %v3275 = vrot.slane %v3261, %v3274
        %v3276 = vcombine.low %v3253, %v3268
        %v3277 = vcombine.high %v3253, %v3268
        %v3279 = vunpack.c.l.s4 1934713408
        %v3280 = vunpack.c.0.s8 %v3279
        %v3281 = vlaneseq
        %v3282 = vshrl.u32 %v3281, 7
        %v3283 = vsub.s32 %v3280, %v3282
        %v3284 = vrot.slane %v3276, %v3283
        %v3286 = vunpack.c.l.s4 1934713408
        %v3287 = vunpack.c.0.s8 %v3286
        %v3288 = vlaneseq
        %v3289 = vshrl.u32 %v3288, 7
        %v3290 = vsub.s32 %v3287, %v3289
        %v3291 = vrot.slane %v3277, %v3290
        %v3292 = vcombine.low %v3260, %v3275
        %v3293 = vcombine.high %v3260, %v3275
        %v3295 = vunpack.c.l.s4 1934713408
        %v3296 = vunpack.c.0.s8 %v3295
        %v3297 = vlaneseq
        %v3298 = vshrl.u32 %v3297, 7
        %v3299 = vsub.s32 %v3296, %v3298
        %v3300 = vrot.slane %v3292, %v3299
        %v3302 = vunpack.c.l.s4 1934713408
        %v3303 = vunpack.c.0.s8 %v3302
        %v3304 = vlaneseq
        %v3305 = vshrl.u32 %v3304, 7
        %v3306 = vsub.s32 %v3303, %v3305
        %v3307 = vrot.slane %v3293, %v3306
        %v3308 = vcombine.high %v3284, 0
        %v3309 = vcombine.high %v3291, 0
        %v3310 = vcombine.high %v3300, 0
        %v3311 = vcombine.high %v3307, 0
        %v3312 = vcombine.high %v3236, %v486
        %v3314 = vunpack.c.l.s4 1983009808
        %v3315 = vunpack.c.0.s8 %v3314
        %v3316 = vlaneseq
        %v3317 = vshrl.u32 %v3316, 7
        %v3318 = vsub.s32 %v3315, %v3317
        %v3319 = vrot.slane %v3236, %v3318
        %v3321 = vunpack.c.l.s4 1983009808
        %v3322 = vunpack.c.0.s8 %v3321
        %v3323 = vlaneseq
        %v3324 = vshrl.u32 %v3323, 7
        %v3325 = vsub.s32 %v3322, %v3324
        %v3326 = vrot.slane %v3312, %v3325
        %v3327 = vcombine.high %v3244, %v486
        %v3329 = vunpack.c.l.s4 1983009808
        %v3330 = vunpack.c.0.s8 %v3329
        %v3331 = vlaneseq
        %v3332 = vshrl.u32 %v3331, 7
        %v3333 = vsub.s32 %v3330, %v3332
        %v3334 = vrot.slane %v3244, %v3333
        %v3336 = vunpack.c.l.s4 1983009808
        %v3337 = vunpack.c.0.s8 %v3336
        %v3338 = vlaneseq
        %v3339 = vshrl.u32 %v3338, 7
        %v3340 = vsub.s32 %v3337, %v3339
        %v3341 = vrot.slane %v3327, %v3340
        %v3342 = vcombine.low %v3319, %v3334
        %v3343 = vcombine.high %v3319, %v3334
        %v3345 = vunpack.c.l.s4 1934713408
        %v3346 = vunpack.c.0.s8 %v3345
        %v3347 = vlaneseq
        %v3348 = vshrl.u32 %v3347, 7
        %v3349 = vsub.s32 %v3346, %v3348
        %v3350 = vrot.slane %v3342, %v3349
        %v3352 = vunpack.c.l.s4 1934713408
        %v3353 = vunpack.c.0.s8 %v3352
        %v3354 = vlaneseq
        %v3355 = vshrl.u32 %v3354, 7
        %v3356 = vsub.s32 %v3353, %v3355
        %v3357 = vrot.slane %v3343, %v3356
        %v3358 = vcombine.low %v3326, %v3341
        %v3359 = vcombine.high %v3326, %v3341
        %v3361 = vunpack.c.l.s4 1934713408
        %v3362 = vunpack.c.0.s8 %v3361
        %v3363 = vlaneseq
        %v3364 = vshrl.u32 %v3363, 7
        %v3365 = vsub.s32 %v3362, %v3364
        %v3366 = vrot.slane %v3358, %v3365
        %v3368 = vunpack.c.l.s4 1934713408
        %v3369 = vunpack.c.0.s8 %v3368
        %v3370 = vlaneseq
        %v3371 = vshrl.u32 %v3370, 7
        %v3372 = vsub.s32 %v3369, %v3371
        %v3373 = vrot.slane %v3359, %v3372
        %v3374 = vcombine.high %v3350, 0
        %v3375 = vcombine.high %v3357, 0
        %v3376 = vcombine.high %v3366, 0
        %v3377 = vcombine.high %v3373, 0
        %3379 = vrot.lane.b32.xlu0 %v3350, 16
        %v3380 = vpop.permute.xlu0 %3379
        %3382 = vrot.lane.b32.xlu0 %v3308, 32
        %v3383 = vpop.permute.xlu0 %3382
        %3385 = vrot.lane.b32.xlu0 %v3374, 48
        %v3386 = vpop.permute.xlu0 %3385
        %3388 = vrot.lane.b32.xlu0 %v3291, 64
        %v3389 = vpop.permute.xlu0 %3388
        %3391 = vrot.lane.b32.xlu0 %v3357, 80
        %v3392 = vpop.permute.xlu0 %3391
        %3394 = vrot.lane.b32.xlu0 %v3309, 96
        %v3395 = vpop.permute.xlu0 %3394
        %3397 = vrot.lane.b32.xlu0 %v3375, 112
        %v3398 = vpop.permute.xlu0 %3397
        %3400 = vrot.lane.b32.xlu0 %v3366, 16
        %v3401 = vpop.permute.xlu0 %3400
        %3403 = vrot.lane.b32.xlu0 %v3310, 32
        %v3404 = vpop.permute.xlu0 %3403
        %3406 = vrot.lane.b32.xlu0 %v3376, 48
        %v3407 = vpop.permute.xlu0 %3406
        %3409 = vrot.lane.b32.xlu0 %v3307, 64
        %v3410 = vpop.permute.xlu0 %3409
        %3412 = vrot.lane.b32.xlu0 %v3373, 80
        %v3413 = vpop.permute.xlu0 %3412
        %3415 = vrot.lane.b32.xlu0 %v3311, 96
        %v3416 = vpop.permute.xlu0 %3415
        %3418 = vrot.lane.b32.xlu0 %v3377, 112
        %v3419 = vpop.permute.xlu0 %3418
        %v3422 = vsel %vm662, %v3284, %v3380
        %v3424 = vsel %vm666, %v3422, %v3383
        %v3426 = vsel %vm669, %v3424, %v3386
        %v3428 = vsel %vm672, %v3426, %v3389
        %v3430 = vsel %vm675, %v3428, %v3392
        %v3432 = vsel %vm678, %v3430, %v3395
        %v3434 = vsel %vm681, %v3432, %v3398
        %v3437 = vsel %vm662, %v3300, %v3401
        %v3439 = vsel %vm666, %v3437, %v3404
        %v3441 = vsel %vm669, %v3439, %v3407
        %v3443 = vsel %vm672, %v3441, %v3410
        %v3445 = vsel %vm675, %v3443, %v3413
        %v3447 = vsel %vm678, %v3445, %v3416
        %v3449 = vsel %vm681, %v3447, %v3419
        %3450 = vrot.lane.b32.xlu0 %v2986, 126
        %v3451 = vpop.permute.xlu0 %3450
        %3452 = vrot.lane.b32.xlu0 %v2990, 126
        %v3453 = vpop.permute.xlu0 %3452
        %3454 = vrot.lane.b32.xlu0 %v2994, 126
        %v3455 = vpop.permute.xlu0 %3454
        %3456 = vrot.lane.b32.xlu0 %v2998, 126
        %v3457 = vpop.permute.xlu0 %3456
        %v3460 = vpack.i.b16 %v3453, %v3451
        %v3462 = vshrl.u32 %v3451, 16
        %v3463 = vshrl.u32 %v3453, 16
        %v3464 = vpack.i.b16 %v3463, %v3462
        %v3468 = vpack.i.b16 %v3457, %v3455
        %v3470 = vshrl.u32 %v3455, 16
        %v3471 = vshrl.u32 %v3457, 16
        %v3472 = vpack.i.b16 %v3471, %v3470
        %v3474 = vcombine.high %v3460, %v483
        %v3476 = vunpack.c.l.s4 1983009808
        %v3477 = vunpack.c.0.s8 %v3476
        %v3478 = vlaneseq
        %v3479 = vshrl.u32 %v3478, 7
        %v3480 = vsub.s32 %v3477, %v3479
        %v3481 = vrot.slane %v3460, %v3480
        %v3483 = vunpack.c.l.s4 1983009808
        %v3484 = vunpack.c.0.s8 %v3483
        %v3485 = vlaneseq
        %v3486 = vshrl.u32 %v3485, 7
        %v3487 = vsub.s32 %v3484, %v3486
        %v3488 = vrot.slane %v3474, %v3487
        %v3489 = vcombine.high %v3468, %v483
        %v3491 = vunpack.c.l.s4 1983009808
        %v3492 = vunpack.c.0.s8 %v3491
        %v3493 = vlaneseq
        %v3494 = vshrl.u32 %v3493, 7
        %v3495 = vsub.s32 %v3492, %v3494
        %v3496 = vrot.slane %v3468, %v3495
        %v3498 = vunpack.c.l.s4 1983009808
        %v3499 = vunpack.c.0.s8 %v3498
        %v3500 = vlaneseq
        %v3501 = vshrl.u32 %v3500, 7
        %v3502 = vsub.s32 %v3499, %v3501
        %v3503 = vrot.slane %v3489, %v3502
        %v3504 = vcombine.low %v3481, %v3496
        %v3505 = vcombine.high %v3481, %v3496
        %v3507 = vunpack.c.l.s4 1934713408
        %v3508 = vunpack.c.0.s8 %v3507
        %v3509 = vlaneseq
        %v3510 = vshrl.u32 %v3509, 7
        %v3511 = vsub.s32 %v3508, %v3510
        %v3512 = vrot.slane %v3504, %v3511
        %v3514 = vunpack.c.l.s4 1934713408
        %v3515 = vunpack.c.0.s8 %v3514
        %v3516 = vlaneseq
        %v3517 = vshrl.u32 %v3516, 7
        %v3518 = vsub.s32 %v3515, %v3517
        %v3519 = vrot.slane %v3505, %v3518
        %v3520 = vcombine.low %v3488, %v3503
        %v3521 = vcombine.high %v3488, %v3503
        %v3523 = vunpack.c.l.s4 1934713408
        %v3524 = vunpack.c.0.s8 %v3523
        %v3525 = vlaneseq
        %v3526 = vshrl.u32 %v3525, 7
        %v3527 = vsub.s32 %v3524, %v3526
        %v3528 = vrot.slane %v3520, %v3527
        %v3530 = vunpack.c.l.s4 1934713408
        %v3531 = vunpack.c.0.s8 %v3530
        %v3532 = vlaneseq
        %v3533 = vshrl.u32 %v3532, 7
        %v3534 = vsub.s32 %v3531, %v3533
        %v3535 = vrot.slane %v3521, %v3534
        %v3536 = vcombine.high %v3512, 0
        %v3537 = vcombine.high %v3519, 0
        %v3538 = vcombine.high %v3528, 0
        %v3539 = vcombine.high %v3535, 0
        %v3540 = vcombine.high %v3464, %v486
        %v3542 = vunpack.c.l.s4 1983009808
        %v3543 = vunpack.c.0.s8 %v3542
        %v3544 = vlaneseq
        %v3545 = vshrl.u32 %v3544, 7
        %v3546 = vsub.s32 %v3543, %v3545
        %v3547 = vrot.slane %v3464, %v3546
        %v3549 = vunpack.c.l.s4 1983009808
        %v3550 = vunpack.c.0.s8 %v3549
        %v3551 = vlaneseq
        %v3552 = vshrl.u32 %v3551, 7
        %v3553 = vsub.s32 %v3550, %v3552
        %v3554 = vrot.slane %v3540, %v3553
        %v3555 = vcombine.high %v3472, %v486
        %v3557 = vunpack.c.l.s4 1983009808
        %v3558 = vunpack.c.0.s8 %v3557
        %v3559 = vlaneseq
        %v3560 = vshrl.u32 %v3559, 7
        %v3561 = vsub.s32 %v3558, %v3560
        %v3562 = vrot.slane %v3472, %v3561
        %v3564 = vunpack.c.l.s4 1983009808
        %v3565 = vunpack.c.0.s8 %v3564
        %v3566 = vlaneseq
        %v3567 = vshrl.u32 %v3566, 7
        %v3568 = vsub.s32 %v3565, %v3567
        %v3569 = vrot.slane %v3555, %v3568
        %v3570 = vcombine.low %v3547, %v3562
        %v3571 = vcombine.high %v3547, %v3562
        %v3573 = vunpack.c.l.s4 1934713408
        %v3574 = vunpack.c.0.s8 %v3573
        %v3575 = vlaneseq
        %v3576 = vshrl.u32 %v3575, 7
        %v3577 = vsub.s32 %v3574, %v3576
        %v3578 = vrot.slane %v3570, %v3577
        %v3580 = vunpack.c.l.s4 1934713408
        %v3581 = vunpack.c.0.s8 %v3580
        %v3582 = vlaneseq
        %v3583 = vshrl.u32 %v3582, 7
        %v3584 = vsub.s32 %v3581, %v3583
        %v3585 = vrot.slane %v3571, %v3584
        %v3586 = vcombine.low %v3554, %v3569
        %v3587 = vcombine.high %v3554, %v3569
        %v3589 = vunpack.c.l.s4 1934713408
        %v3590 = vunpack.c.0.s8 %v3589
        %v3591 = vlaneseq
        %v3592 = vshrl.u32 %v3591, 7
        %v3593 = vsub.s32 %v3590, %v3592
        %v3594 = vrot.slane %v3586, %v3593
        %v3596 = vunpack.c.l.s4 1934713408
        %v3597 = vunpack.c.0.s8 %v3596
        %v3598 = vlaneseq
        %v3599 = vshrl.u32 %v3598, 7
        %v3600 = vsub.s32 %v3597, %v3599
        %v3601 = vrot.slane %v3587, %v3600
        %v3602 = vcombine.high %v3578, 0
        %v3603 = vcombine.high %v3585, 0
        %v3604 = vcombine.high %v3594, 0
        %v3605 = vcombine.high %v3601, 0
        %3607 = vrot.lane.b32.xlu0 %v3578, 16
        %v3608 = vpop.permute.xlu0 %3607
        %3610 = vrot.lane.b32.xlu0 %v3536, 32
        %v3611 = vpop.permute.xlu0 %3610
        %3613 = vrot.lane.b32.xlu0 %v3602, 48
        %v3614 = vpop.permute.xlu0 %3613
        %3616 = vrot.lane.b32.xlu0 %v3519, 64
        %v3617 = vpop.permute.xlu0 %3616
        %3619 = vrot.lane.b32.xlu0 %v3585, 80
        %v3620 = vpop.permute.xlu0 %3619
        %3622 = vrot.lane.b32.xlu0 %v3537, 96
        %v3623 = vpop.permute.xlu0 %3622
        %3625 = vrot.lane.b32.xlu0 %v3603, 112
        %v3626 = vpop.permute.xlu0 %3625
        %3628 = vrot.lane.b32.xlu0 %v3594, 16
        %v3629 = vpop.permute.xlu0 %3628
        %3631 = vrot.lane.b32.xlu0 %v3538, 32
        %v3632 = vpop.permute.xlu0 %3631
        %3634 = vrot.lane.b32.xlu0 %v3604, 48
        %v3635 = vpop.permute.xlu0 %3634
        %3637 = vrot.lane.b32.xlu0 %v3535, 64
        %v3638 = vpop.permute.xlu0 %3637
        %3640 = vrot.lane.b32.xlu0 %v3601, 80
        %v3641 = vpop.permute.xlu0 %3640
        %3643 = vrot.lane.b32.xlu0 %v3539, 96
        %v3644 = vpop.permute.xlu0 %3643
        %3646 = vrot.lane.b32.xlu0 %v3605, 112
        %v3647 = vpop.permute.xlu0 %3646
        %v3650 = vsel %vm662, %v3512, %v3608
        %v3652 = vsel %vm666, %v3650, %v3611
        %v3654 = vsel %vm669, %v3652, %v3614
        %v3656 = vsel %vm672, %v3654, %v3617
        %v3658 = vsel %vm675, %v3656, %v3620
        %v3660 = vsel %vm678, %v3658, %v3623
        %v3662 = vsel %vm681, %v3660, %v3626
        %v3665 = vsel %vm662, %v3528, %v3629
        %v3667 = vsel %vm666, %v3665, %v3632
        %v3669 = vsel %vm669, %v3667, %v3635
        %v3671 = vsel %vm672, %v3669, %v3638
        %v3673 = vsel %vm675, %v3671, %v3641
        %v3675 = vsel %vm678, %v3673, %v3644
        %v3677 = vsel %vm681, %v3675, %v3647
        %v3679 = vshll.u32 %v2986, 16
        %v3681 = vrot.slane %v3679, 1
        %v3682 = vor.u32 %v3004, %v3681
        %v3683 = vshll.u32 %v2988, 16
        %v3685 = vrot.slane %v3683, 1
        %v3686 = vsel %vm1159, %v3682, %v3685
        %v3688 = vshll.u32 %v2990, 16
        %v3690 = vrot.slane %v3688, 1
        %v3691 = vor.u32 %v3005, %v3690
        %v3692 = vshll.u32 %v2992, 16
        %v3694 = vrot.slane %v3692, 1
        %v3695 = vsel %vm1159, %v3691, %v3694
        %v3697 = vshll.u32 %v2994, 16
        %v3699 = vrot.slane %v3697, 1
        %v3700 = vor.u32 %v3010, %v3699
        %v3701 = vshll.u32 %v2996, 16
        %v3703 = vrot.slane %v3701, 1
        %v3704 = vsel %vm1159, %v3700, %v3703
        %v3706 = vshll.u32 %v2998, 16
        %v3708 = vrot.slane %v3706, 1
        %v3709 = vor.u32 %v3011, %v3708
        %v3710 = vshll.u32 %v3000, 16
        %v3712 = vrot.slane %v3710, 1
        %v3713 = vsel %vm1159, %v3709, %v3712
        %v3716 = vpack.i.b16 %v3695, %v3686
        %v3718 = vshrl.u32 %v3686, 16
        %v3719 = vshrl.u32 %v3695, 16
        %v3720 = vpack.i.b16 %v3719, %v3718
        %v3724 = vpack.i.b16 %v3713, %v3704
        %v3726 = vshrl.u32 %v3704, 16
        %v3727 = vshrl.u32 %v3713, 16
        %v3728 = vpack.i.b16 %v3727, %v3726
        %v3730 = vcombine.high %v3716, %v483
        %v3732 = vunpack.c.l.s4 1983009808
        %v3733 = vunpack.c.0.s8 %v3732
        %v3734 = vlaneseq
        %v3735 = vshrl.u32 %v3734, 7
        %v3736 = vsub.s32 %v3733, %v3735
        %v3737 = vrot.slane %v3716, %v3736
        %v3739 = vunpack.c.l.s4 1983009808
        %v3740 = vunpack.c.0.s8 %v3739
        %v3741 = vlaneseq
        %v3742 = vshrl.u32 %v3741, 7
        %v3743 = vsub.s32 %v3740, %v3742
        %v3744 = vrot.slane %v3730, %v3743
        %v3745 = vcombine.high %v3724, %v483
        %v3747 = vunpack.c.l.s4 1983009808
        %v3748 = vunpack.c.0.s8 %v3747
        %v3749 = vlaneseq
        %v3750 = vshrl.u32 %v3749, 7
        %v3751 = vsub.s32 %v3748, %v3750
        %v3752 = vrot.slane %v3724, %v3751
        %v3754 = vunpack.c.l.s4 1983009808
        %v3755 = vunpack.c.0.s8 %v3754
        %v3756 = vlaneseq
        %v3757 = vshrl.u32 %v3756, 7
        %v3758 = vsub.s32 %v3755, %v3757
        %v3759 = vrot.slane %v3745, %v3758
        %v3760 = vcombine.low %v3737, %v3752
        %v3761 = vcombine.high %v3737, %v3752
        %v3763 = vunpack.c.l.s4 1934713408
        %v3764 = vunpack.c.0.s8 %v3763
        %v3765 = vlaneseq
        %v3766 = vshrl.u32 %v3765, 7
        %v3767 = vsub.s32 %v3764, %v3766
        %v3768 = vrot.slane %v3760, %v3767
        %v3770 = vunpack.c.l.s4 1934713408
        %v3771 = vunpack.c.0.s8 %v3770
        %v3772 = vlaneseq
        %v3773 = vshrl.u32 %v3772, 7
        %v3774 = vsub.s32 %v3771, %v3773
        %v3775 = vrot.slane %v3761, %v3774
        %v3776 = vcombine.low %v3744, %v3759
        %v3777 = vcombine.high %v3744, %v3759
        %v3779 = vunpack.c.l.s4 1934713408
        %v3780 = vunpack.c.0.s8 %v3779
        %v3781 = vlaneseq
        %v3782 = vshrl.u32 %v3781, 7
        %v3783 = vsub.s32 %v3780, %v3782
        %v3784 = vrot.slane %v3776, %v3783
        %v3786 = vunpack.c.l.s4 1934713408
        %v3787 = vunpack.c.0.s8 %v3786
        %v3788 = vlaneseq
        %v3789 = vshrl.u32 %v3788, 7
        %v3790 = vsub.s32 %v3787, %v3789
        %v3791 = vrot.slane %v3777, %v3790
        %v3792 = vcombine.high %v3768, 0
        %v3793 = vcombine.high %v3775, 0
        %v3794 = vcombine.high %v3784, 0
        %v3795 = vcombine.high %v3791, 0
        %v3796 = vcombine.high %v3720, %v486
        %v3798 = vunpack.c.l.s4 1983009808
        %v3799 = vunpack.c.0.s8 %v3798
        %v3800 = vlaneseq
        %v3801 = vshrl.u32 %v3800, 7
        %v3802 = vsub.s32 %v3799, %v3801
        %v3803 = vrot.slane %v3720, %v3802
        %v3805 = vunpack.c.l.s4 1983009808
        %v3806 = vunpack.c.0.s8 %v3805
        %v3807 = vlaneseq
        %v3808 = vshrl.u32 %v3807, 7
        %v3809 = vsub.s32 %v3806, %v3808
        %v3810 = vrot.slane %v3796, %v3809
        %v3811 = vcombine.high %v3728, %v486
        %v3813 = vunpack.c.l.s4 1983009808
        %v3814 = vunpack.c.0.s8 %v3813
        %v3815 = vlaneseq
        %v3816 = vshrl.u32 %v3815, 7
        %v3817 = vsub.s32 %v3814, %v3816
        %v3818 = vrot.slane %v3728, %v3817
        %v3820 = vunpack.c.l.s4 1983009808
        %v3821 = vunpack.c.0.s8 %v3820
        %v3822 = vlaneseq
        %v3823 = vshrl.u32 %v3822, 7
        %v3824 = vsub.s32 %v3821, %v3823
        %v3825 = vrot.slane %v3811, %v3824
        %v3826 = vcombine.low %v3803, %v3818
        %v3827 = vcombine.high %v3803, %v3818
        %v3829 = vunpack.c.l.s4 1934713408
        %v3830 = vunpack.c.0.s8 %v3829
        %v3831 = vlaneseq
        %v3832 = vshrl.u32 %v3831, 7
        %v3833 = vsub.s32 %v3830, %v3832
        %v3834 = vrot.slane %v3826, %v3833
        %v3836 = vunpack.c.l.s4 1934713408
        %v3837 = vunpack.c.0.s8 %v3836
        %v3838 = vlaneseq
        %v3839 = vshrl.u32 %v3838, 7
        %v3840 = vsub.s32 %v3837, %v3839
        %v3841 = vrot.slane %v3827, %v3840
        %v3842 = vcombine.low %v3810, %v3825
        %v3843 = vcombine.high %v3810, %v3825
        %v3845 = vunpack.c.l.s4 1934713408
        %v3846 = vunpack.c.0.s8 %v3845
        %v3847 = vlaneseq
        %v3848 = vshrl.u32 %v3847, 7
        %v3849 = vsub.s32 %v3846, %v3848
        %v3850 = vrot.slane %v3842, %v3849
        %v3852 = vunpack.c.l.s4 1934713408
        %v3853 = vunpack.c.0.s8 %v3852
        %v3854 = vlaneseq
        %v3855 = vshrl.u32 %v3854, 7
        %v3856 = vsub.s32 %v3853, %v3855
        %v3857 = vrot.slane %v3843, %v3856
        %v3858 = vcombine.high %v3834, 0
        %v3859 = vcombine.high %v3841, 0
        %v3860 = vcombine.high %v3850, 0
        %v3861 = vcombine.high %v3857, 0
        %3863 = vrot.lane.b32.xlu0 %v3834, 16
        %v3864 = vpop.permute.xlu0 %3863
        %3866 = vrot.lane.b32.xlu0 %v3792, 32
        %v3867 = vpop.permute.xlu0 %3866
        %3869 = vrot.lane.b32.xlu0 %v3858, 48
        %v3870 = vpop.permute.xlu0 %3869
        %3872 = vrot.lane.b32.xlu0 %v3775, 64
        %v3873 = vpop.permute.xlu0 %3872
        %3875 = vrot.lane.b32.xlu0 %v3841, 80
        %v3876 = vpop.permute.xlu0 %3875
        %3878 = vrot.lane.b32.xlu0 %v3793, 96
        %v3879 = vpop.permute.xlu0 %3878
        %3881 = vrot.lane.b32.xlu0 %v3859, 112
        %v3882 = vpop.permute.xlu0 %3881
        %3884 = vrot.lane.b32.xlu0 %v3850, 16
        %v3885 = vpop.permute.xlu0 %3884
        %3887 = vrot.lane.b32.xlu0 %v3794, 32
        %v3888 = vpop.permute.xlu0 %3887
        %3890 = vrot.lane.b32.xlu0 %v3860, 48
        %v3891 = vpop.permute.xlu0 %3890
        %3893 = vrot.lane.b32.xlu0 %v3791, 64
        %v3894 = vpop.permute.xlu0 %3893
        %3896 = vrot.lane.b32.xlu0 %v3857, 80
        %v3897 = vpop.permute.xlu0 %3896
        %3899 = vrot.lane.b32.xlu0 %v3795, 96
        %v3900 = vpop.permute.xlu0 %3899
        %3902 = vrot.lane.b32.xlu0 %v3861, 112
        %v3903 = vpop.permute.xlu0 %3902
        %v3906 = vsel %vm662, %v3768, %v3864
        %v3908 = vsel %vm666, %v3906, %v3867
        %v3910 = vsel %vm669, %v3908, %v3870
        %v3912 = vsel %vm672, %v3910, %v3873
        %v3914 = vsel %vm675, %v3912, %v3876
        %v3916 = vsel %vm678, %v3914, %v3879
        %v3918 = vsel %vm681, %v3916, %v3882
        %v3921 = vsel %vm662, %v3784, %v3885
        %v3923 = vsel %vm666, %v3921, %v3888
        %v3925 = vsel %vm669, %v3923, %v3891
        %v3927 = vsel %vm672, %v3925, %v3894
        %v3929 = vsel %vm675, %v3927, %v3897
        %v3931 = vsel %vm678, %v3929, %v3900
        %v3933 = vsel %vm681, %v3931, %v3903
        %3934 = vrot.lane.b32.xlu0 %v3686, 127
        %v3935 = vpop.permute.xlu0 %3934
        %3936 = vrot.lane.b32.xlu0 %v3695, 127
        %v3937 = vpop.permute.xlu0 %3936
        %3938 = vrot.lane.b32.xlu0 %v3704, 127
        %v3939 = vpop.permute.xlu0 %3938
        %3940 = vrot.lane.b32.xlu0 %v3713, 127
        %v3941 = vpop.permute.xlu0 %3940
        %v3944 = vpack.i.b16 %v3937, %v3935
        %v3946 = vshrl.u32 %v3935, 16
        %v3947 = vshrl.u32 %v3937, 16
        %v3948 = vpack.i.b16 %v3947, %v3946
        %v3952 = vpack.i.b16 %v3941, %v3939
        %v3954 = vshrl.u32 %v3939, 16
        %v3955 = vshrl.u32 %v3941, 16
        %v3956 = vpack.i.b16 %v3955, %v3954
        %v3958 = vcombine.high %v3944, %v483
        %v3960 = vunpack.c.l.s4 1983009808
        %v3961 = vunpack.c.0.s8 %v3960
        %v3962 = vlaneseq
        %v3963 = vshrl.u32 %v3962, 7
        %v3964 = vsub.s32 %v3961, %v3963
        %v3965 = vrot.slane %v3944, %v3964
        %v3967 = vunpack.c.l.s4 1983009808
        %v3968 = vunpack.c.0.s8 %v3967
        %v3969 = vlaneseq
        %v3970 = vshrl.u32 %v3969, 7
        %v3971 = vsub.s32 %v3968, %v3970
        %v3972 = vrot.slane %v3958, %v3971
        %v3973 = vcombine.high %v3952, %v483
        %v3975 = vunpack.c.l.s4 1983009808
        %v3976 = vunpack.c.0.s8 %v3975
        %v3977 = vlaneseq
        %v3978 = vshrl.u32 %v3977, 7
        %v3979 = vsub.s32 %v3976, %v3978
        %v3980 = vrot.slane %v3952, %v3979
        %v3982 = vunpack.c.l.s4 1983009808
        %v3983 = vunpack.c.0.s8 %v3982
        %v3984 = vlaneseq
        %v3985 = vshrl.u32 %v3984, 7
        %v3986 = vsub.s32 %v3983, %v3985
        %v3987 = vrot.slane %v3973, %v3986
        %v3988 = vcombine.low %v3965, %v3980
        %v3989 = vcombine.high %v3965, %v3980
        %v3991 = vunpack.c.l.s4 1934713408
        %v3992 = vunpack.c.0.s8 %v3991
        %v3993 = vlaneseq
        %v3994 = vshrl.u32 %v3993, 7
        %v3995 = vsub.s32 %v3992, %v3994
        %v3996 = vrot.slane %v3988, %v3995
        %v3998 = vunpack.c.l.s4 1934713408
        %v3999 = vunpack.c.0.s8 %v3998
        %v4000 = vlaneseq
        %v4001 = vshrl.u32 %v4000, 7
        %v4002 = vsub.s32 %v3999, %v4001
        %v4003 = vrot.slane %v3989, %v4002
        %v4004 = vcombine.low %v3972, %v3987
        %v4005 = vcombine.high %v3972, %v3987
        %v4007 = vunpack.c.l.s4 1934713408
        %v4008 = vunpack.c.0.s8 %v4007
        %v4009 = vlaneseq
        %v4010 = vshrl.u32 %v4009, 7
        %v4011 = vsub.s32 %v4008, %v4010
        %v4012 = vrot.slane %v4004, %v4011
        %v4014 = vunpack.c.l.s4 1934713408
        %v4015 = vunpack.c.0.s8 %v4014
        %v4016 = vlaneseq
        %v4017 = vshrl.u32 %v4016, 7
        %v4018 = vsub.s32 %v4015, %v4017
        %v4019 = vrot.slane %v4005, %v4018
        %v4020 = vcombine.high %v3996, 0
        %v4021 = vcombine.high %v4003, 0
        %v4022 = vcombine.high %v4012, 0
        %v4023 = vcombine.high %v4019, 0
        %v4024 = vcombine.high %v3948, %v486
        %v4026 = vunpack.c.l.s4 1983009808
        %v4027 = vunpack.c.0.s8 %v4026
        %v4028 = vlaneseq
        %v4029 = vshrl.u32 %v4028, 7
        %v4030 = vsub.s32 %v4027, %v4029
        %v4031 = vrot.slane %v3948, %v4030
        %v4033 = vunpack.c.l.s4 1983009808
        %v4034 = vunpack.c.0.s8 %v4033
        %v4035 = vlaneseq
        %v4036 = vshrl.u32 %v4035, 7
        %v4037 = vsub.s32 %v4034, %v4036
        %v4038 = vrot.slane %v4024, %v4037
        %v4039 = vcombine.high %v3956, %v486
        %v4041 = vunpack.c.l.s4 1983009808
        %v4042 = vunpack.c.0.s8 %v4041
        %v4043 = vlaneseq
        %v4044 = vshrl.u32 %v4043, 7
        %v4045 = vsub.s32 %v4042, %v4044
        %v4046 = vrot.slane %v3956, %v4045
        %v4048 = vunpack.c.l.s4 1983009808
        %v4049 = vunpack.c.0.s8 %v4048
        %v4050 = vlaneseq
        %v4051 = vshrl.u32 %v4050, 7
        %v4052 = vsub.s32 %v4049, %v4051
        %v4053 = vrot.slane %v4039, %v4052
        %v4054 = vcombine.low %v4031, %v4046
        %v4055 = vcombine.high %v4031, %v4046
        %v4057 = vunpack.c.l.s4 1934713408
        %v4058 = vunpack.c.0.s8 %v4057
        %v4059 = vlaneseq
        %v4060 = vshrl.u32 %v4059, 7
        %v4061 = vsub.s32 %v4058, %v4060
        %v4062 = vrot.slane %v4054, %v4061
        %v4064 = vunpack.c.l.s4 1934713408
        %v4065 = vunpack.c.0.s8 %v4064
        %v4066 = vlaneseq
        %v4067 = vshrl.u32 %v4066, 7
        %v4068 = vsub.s32 %v4065, %v4067
        %v4069 = vrot.slane %v4055, %v4068
        %v4070 = vcombine.low %v4038, %v4053
        %v4071 = vcombine.high %v4038, %v4053
        %v4073 = vunpack.c.l.s4 1934713408
        %v4074 = vunpack.c.0.s8 %v4073
        %v4075 = vlaneseq
        %v4076 = vshrl.u32 %v4075, 7
        %v4077 = vsub.s32 %v4074, %v4076
        %v4078 = vrot.slane %v4070, %v4077
        %v4080 = vunpack.c.l.s4 1934713408
        %v4081 = vunpack.c.0.s8 %v4080
        %v4082 = vlaneseq
        %v4083 = vshrl.u32 %v4082, 7
        %v4084 = vsub.s32 %v4081, %v4083
        %v4085 = vrot.slane %v4071, %v4084
        %v4086 = vcombine.high %v4062, 0
        %v4087 = vcombine.high %v4069, 0
        %v4088 = vcombine.high %v4078, 0
        %v4089 = vcombine.high %v4085, 0
        %4091 = vrot.lane.b32.xlu0 %v4062, 16
        %v4092 = vpop.permute.xlu0 %4091
        %4094 = vrot.lane.b32.xlu0 %v4020, 32
        %v4095 = vpop.permute.xlu0 %4094
        %4097 = vrot.lane.b32.xlu0 %v4086, 48
        %v4098 = vpop.permute.xlu0 %4097
        %4100 = vrot.lane.b32.xlu0 %v4003, 64
        %v4101 = vpop.permute.xlu0 %4100
        %4103 = vrot.lane.b32.xlu0 %v4069, 80
        %v4104 = vpop.permute.xlu0 %4103
        %4106 = vrot.lane.b32.xlu0 %v4021, 96
        %v4107 = vpop.permute.xlu0 %4106
        %4109 = vrot.lane.b32.xlu0 %v4087, 112
        %v4110 = vpop.permute.xlu0 %4109
        %4112 = vrot.lane.b32.xlu0 %v4078, 16
        %v4113 = vpop.permute.xlu0 %4112
        %4115 = vrot.lane.b32.xlu0 %v4022, 32
        %v4116 = vpop.permute.xlu0 %4115
        %4118 = vrot.lane.b32.xlu0 %v4088, 48
        %v4119 = vpop.permute.xlu0 %4118
        %4121 = vrot.lane.b32.xlu0 %v4019, 64
        %v4122 = vpop.permute.xlu0 %4121
        %4124 = vrot.lane.b32.xlu0 %v4085, 80
        %v4125 = vpop.permute.xlu0 %4124
        %4127 = vrot.lane.b32.xlu0 %v4023, 96
        %v4128 = vpop.permute.xlu0 %4127
        %4130 = vrot.lane.b32.xlu0 %v4089, 112
        %v4131 = vpop.permute.xlu0 %4130
        %v4134 = vsel %vm662, %v3996, %v4092
        %v4136 = vsel %vm666, %v4134, %v4095
        %v4138 = vsel %vm669, %v4136, %v4098
        %v4140 = vsel %vm672, %v4138, %v4101
        %v4142 = vsel %vm675, %v4140, %v4104
        %v4144 = vsel %vm678, %v4142, %v4107
        %v4146 = vsel %vm681, %v4144, %v4110
        %v4149 = vsel %vm662, %v4012, %v4113
        %v4151 = vsel %vm666, %v4149, %v4116
        %v4153 = vsel %vm669, %v4151, %v4119
        %v4155 = vsel %vm672, %v4153, %v4122
        %v4157 = vsel %vm675, %v4155, %v4125
        %v4159 = vsel %vm678, %v4157, %v4128
        %v4161 = vsel %vm681, %v4159, %v4131
        %4162 = vrot.lane.b32.xlu0 %v3686, 126
        %v4163 = vpop.permute.xlu0 %4162
        %4164 = vrot.lane.b32.xlu0 %v3695, 126
        %v4165 = vpop.permute.xlu0 %4164
        %4166 = vrot.lane.b32.xlu0 %v3704, 126
        %v4167 = vpop.permute.xlu0 %4166
        %4168 = vrot.lane.b32.xlu0 %v3713, 126
        %v4169 = vpop.permute.xlu0 %4168
        %v4172 = vpack.i.b16 %v4165, %v4163
        %v4174 = vshrl.u32 %v4163, 16
        %v4175 = vshrl.u32 %v4165, 16
        %v4176 = vpack.i.b16 %v4175, %v4174
        %v4180 = vpack.i.b16 %v4169, %v4167
        %v4182 = vshrl.u32 %v4167, 16
        %v4183 = vshrl.u32 %v4169, 16
        %v4184 = vpack.i.b16 %v4183, %v4182
        %v4186 = vcombine.high %v4172, %v483
        %v4188 = vunpack.c.l.s4 1983009808
        %v4189 = vunpack.c.0.s8 %v4188
        %v4190 = vlaneseq
        %v4191 = vshrl.u32 %v4190, 7
        %v4192 = vsub.s32 %v4189, %v4191
        %v4193 = vrot.slane %v4172, %v4192
        %v4195 = vunpack.c.l.s4 1983009808
        %v4196 = vunpack.c.0.s8 %v4195
        %v4197 = vlaneseq
        %v4198 = vshrl.u32 %v4197, 7
        %v4199 = vsub.s32 %v4196, %v4198
        %v4200 = vrot.slane %v4186, %v4199
        %v4201 = vcombine.high %v4180, %v483
        %v4203 = vunpack.c.l.s4 1983009808
        %v4204 = vunpack.c.0.s8 %v4203
        %v4205 = vlaneseq
        %v4206 = vshrl.u32 %v4205, 7
        %v4207 = vsub.s32 %v4204, %v4206
        %v4208 = vrot.slane %v4180, %v4207
        %v4210 = vunpack.c.l.s4 1983009808
        %v4211 = vunpack.c.0.s8 %v4210
        %v4212 = vlaneseq
        %v4213 = vshrl.u32 %v4212, 7
        %v4214 = vsub.s32 %v4211, %v4213
        %v4215 = vrot.slane %v4201, %v4214
        %v4216 = vcombine.low %v4193, %v4208
        %v4217 = vcombine.high %v4193, %v4208
        %v4219 = vunpack.c.l.s4 1934713408
        %v4220 = vunpack.c.0.s8 %v4219
        %v4221 = vlaneseq
        %v4222 = vshrl.u32 %v4221, 7
        %v4223 = vsub.s32 %v4220, %v4222
        %v4224 = vrot.slane %v4216, %v4223
        %v4226 = vunpack.c.l.s4 1934713408
        %v4227 = vunpack.c.0.s8 %v4226
        %v4228 = vlaneseq
        %v4229 = vshrl.u32 %v4228, 7
        %v4230 = vsub.s32 %v4227, %v4229
        %v4231 = vrot.slane %v4217, %v4230
        %v4232 = vcombine.low %v4200, %v4215
        %v4233 = vcombine.high %v4200, %v4215
        %v4235 = vunpack.c.l.s4 1934713408
        %v4236 = vunpack.c.0.s8 %v4235
        %v4237 = vlaneseq
        %v4238 = vshrl.u32 %v4237, 7
        %v4239 = vsub.s32 %v4236, %v4238
        %v4240 = vrot.slane %v4232, %v4239
        %v4242 = vunpack.c.l.s4 1934713408
        %v4243 = vunpack.c.0.s8 %v4242
        %v4244 = vlaneseq
        %v4245 = vshrl.u32 %v4244, 7
        %v4246 = vsub.s32 %v4243, %v4245
        %v4247 = vrot.slane %v4233, %v4246
        %v4248 = vcombine.high %v4224, 0
        %v4249 = vcombine.high %v4231, 0
        %v4250 = vcombine.high %v4240, 0
        %v4251 = vcombine.high %v4247, 0
        %v4252 = vcombine.high %v4176, %v486
        %v4254 = vunpack.c.l.s4 1983009808
        %v4255 = vunpack.c.0.s8 %v4254
        %v4256 = vlaneseq
        %v4257 = vshrl.u32 %v4256, 7
        %v4258 = vsub.s32 %v4255, %v4257
        %v4259 = vrot.slane %v4176, %v4258
        %v4261 = vunpack.c.l.s4 1983009808
        %v4262 = vunpack.c.0.s8 %v4261
        %v4263 = vlaneseq
        %v4264 = vshrl.u32 %v4263, 7
        %v4265 = vsub.s32 %v4262, %v4264
        %v4266 = vrot.slane %v4252, %v4265
        %v4267 = vcombine.high %v4184, %v486
        %v4269 = vunpack.c.l.s4 1983009808
        %v4270 = vunpack.c.0.s8 %v4269
        %v4271 = vlaneseq
        %v4272 = vshrl.u32 %v4271, 7
        %v4273 = vsub.s32 %v4270, %v4272
        %v4274 = vrot.slane %v4184, %v4273
        %v4276 = vunpack.c.l.s4 1983009808
        %v4277 = vunpack.c.0.s8 %v4276
        %v4278 = vlaneseq
        %v4279 = vshrl.u32 %v4278, 7
        %v4280 = vsub.s32 %v4277, %v4279
        %v4281 = vrot.slane %v4267, %v4280
        %v4282 = vcombine.low %v4259, %v4274
        %v4283 = vcombine.high %v4259, %v4274
        %v4285 = vunpack.c.l.s4 1934713408
        %v4286 = vunpack.c.0.s8 %v4285
        %v4287 = vlaneseq
        %v4288 = vshrl.u32 %v4287, 7
        %v4289 = vsub.s32 %v4286, %v4288
        %v4290 = vrot.slane %v4282, %v4289
        %v4292 = vunpack.c.l.s4 1934713408
        %v4293 = vunpack.c.0.s8 %v4292
        %v4294 = vlaneseq
        %v4295 = vshrl.u32 %v4294, 7
        %v4296 = vsub.s32 %v4293, %v4295
        %v4297 = vrot.slane %v4283, %v4296
        %v4298 = vcombine.low %v4266, %v4281
        %v4299 = vcombine.high %v4266, %v4281
        %v4301 = vunpack.c.l.s4 1934713408
        %v4302 = vunpack.c.0.s8 %v4301
        %v4303 = vlaneseq
        %v4304 = vshrl.u32 %v4303, 7
        %v4305 = vsub.s32 %v4302, %v4304
        %v4306 = vrot.slane %v4298, %v4305
        %v4308 = vunpack.c.l.s4 1934713408
        %v4309 = vunpack.c.0.s8 %v4308
        %v4310 = vlaneseq
        %v4311 = vshrl.u32 %v4310, 7
        %v4312 = vsub.s32 %v4309, %v4311
        %v4313 = vrot.slane %v4299, %v4312
        %v4314 = vcombine.high %v4290, 0
        %v4315 = vcombine.high %v4297, 0
        %v4316 = vcombine.high %v4306, 0
        %v4317 = vcombine.high %v4313, 0
        %4319 = vrot.lane.b32.xlu0 %v4290, 16
        %v4320 = vpop.permute.xlu0 %4319
        %4322 = vrot.lane.b32.xlu0 %v4248, 32
        %v4323 = vpop.permute.xlu0 %4322
        %4325 = vrot.lane.b32.xlu0 %v4314, 48
        %v4326 = vpop.permute.xlu0 %4325
        %4328 = vrot.lane.b32.xlu0 %v4231, 64
        %v4329 = vpop.permute.xlu0 %4328
        %4331 = vrot.lane.b32.xlu0 %v4297, 80
        %v4332 = vpop.permute.xlu0 %4331
        %4334 = vrot.lane.b32.xlu0 %v4249, 96
        %v4335 = vpop.permute.xlu0 %4334
        %4337 = vrot.lane.b32.xlu0 %v4315, 112
        %v4338 = vpop.permute.xlu0 %4337
        %4340 = vrot.lane.b32.xlu0 %v4306, 16
        %v4341 = vpop.permute.xlu0 %4340
        %4343 = vrot.lane.b32.xlu0 %v4250, 32
        %v4344 = vpop.permute.xlu0 %4343
        %4346 = vrot.lane.b32.xlu0 %v4316, 48
        %v4347 = vpop.permute.xlu0 %4346
        %4349 = vrot.lane.b32.xlu0 %v4247, 64
        %v4350 = vpop.permute.xlu0 %4349
        %4352 = vrot.lane.b32.xlu0 %v4313, 80
        %v4353 = vpop.permute.xlu0 %4352
        %4355 = vrot.lane.b32.xlu0 %v4251, 96
        %v4356 = vpop.permute.xlu0 %4355
        %4358 = vrot.lane.b32.xlu0 %v4317, 112
        %v4359 = vpop.permute.xlu0 %4358
        %v4362 = vsel %vm662, %v4224, %v4320
        %v4364 = vsel %vm666, %v4362, %v4323
        %v4366 = vsel %vm669, %v4364, %v4326
        %v4368 = vsel %vm672, %v4366, %v4329
        %v4370 = vsel %vm675, %v4368, %v4332
        %v4372 = vsel %vm678, %v4370, %v4335
        %v4374 = vsel %vm681, %v4372, %v4338
        %v4377 = vsel %vm662, %v4240, %v4341
        %v4379 = vsel %vm666, %v4377, %v4344
        %v4381 = vsel %vm669, %v4379, %v4347
        %v4383 = vsel %vm672, %v4381, %v4350
        %v4385 = vsel %vm675, %v4383, %v4353
        %v4387 = vsel %vm678, %v4385, %v4356
        %v4389 = vsel %vm681, %v4387, %v4359
        %v4394 = vrot.slane %v2986, 1
        %v4395 = vrot.slane %v2988, 1
        %v4396 = vsel %vm1876, %v4394, %v4395
        %v4397 = vrot.slane %v2990, 1
        %v4398 = vrot.slane %v2992, 1
        %v4399 = vsel %vm1876, %v4397, %v4398
        %v4400 = vrot.slane %v2994, 1
        %v4401 = vrot.slane %v2996, 1
        %v4402 = vsel %vm1876, %v4400, %v4401
        %v4403 = vrot.slane %v2998, 1
        %v4404 = vrot.slane %v3000, 1
        %v4405 = vsel %vm1876, %v4403, %v4404
        %v4408 = vpack.i.b16 %v4399, %v4396
        %v4410 = vshrl.u32 %v4396, 16
        %v4411 = vshrl.u32 %v4399, 16
        %v4412 = vpack.i.b16 %v4411, %v4410
        %v4416 = vpack.i.b16 %v4405, %v4402
        %v4418 = vshrl.u32 %v4402, 16
        %v4419 = vshrl.u32 %v4405, 16
        %v4420 = vpack.i.b16 %v4419, %v4418
        %v4422 = vcombine.high %v4408, %v483
        %v4424 = vunpack.c.l.s4 1983009808
        %v4425 = vunpack.c.0.s8 %v4424
        %v4426 = vlaneseq
        %v4427 = vshrl.u32 %v4426, 7
        %v4428 = vsub.s32 %v4425, %v4427
        %v4429 = vrot.slane %v4408, %v4428
        %v4431 = vunpack.c.l.s4 1983009808
        %v4432 = vunpack.c.0.s8 %v4431
        %v4433 = vlaneseq
        %v4434 = vshrl.u32 %v4433, 7
        %v4435 = vsub.s32 %v4432, %v4434
        %v4436 = vrot.slane %v4422, %v4435
        %v4437 = vcombine.high %v4416, %v483
        %v4439 = vunpack.c.l.s4 1983009808
        %v4440 = vunpack.c.0.s8 %v4439
        %v4441 = vlaneseq
        %v4442 = vshrl.u32 %v4441, 7
        %v4443 = vsub.s32 %v4440, %v4442
        %v4444 = vrot.slane %v4416, %v4443
        %v4446 = vunpack.c.l.s4 1983009808
        %v4447 = vunpack.c.0.s8 %v4446
        %v4448 = vlaneseq
        %v4449 = vshrl.u32 %v4448, 7
        %v4450 = vsub.s32 %v4447, %v4449
        %v4451 = vrot.slane %v4437, %v4450
        %v4452 = vcombine.low %v4429, %v4444
        %v4453 = vcombine.high %v4429, %v4444
        %v4455 = vunpack.c.l.s4 1934713408
        %v4456 = vunpack.c.0.s8 %v4455
        %v4457 = vlaneseq
        %v4458 = vshrl.u32 %v4457, 7
        %v4459 = vsub.s32 %v4456, %v4458
        %v4460 = vrot.slane %v4452, %v4459
        %v4462 = vunpack.c.l.s4 1934713408
        %v4463 = vunpack.c.0.s8 %v4462
        %v4464 = vlaneseq
        %v4465 = vshrl.u32 %v4464, 7
        %v4466 = vsub.s32 %v4463, %v4465
        %v4467 = vrot.slane %v4453, %v4466
        %v4468 = vcombine.low %v4436, %v4451
        %v4469 = vcombine.high %v4436, %v4451
        %v4471 = vunpack.c.l.s4 1934713408
        %v4472 = vunpack.c.0.s8 %v4471
        %v4473 = vlaneseq
        %v4474 = vshrl.u32 %v4473, 7
        %v4475 = vsub.s32 %v4472, %v4474
        %v4476 = vrot.slane %v4468, %v4475
        %v4478 = vunpack.c.l.s4 1934713408
        %v4479 = vunpack.c.0.s8 %v4478
        %v4480 = vlaneseq
        %v4481 = vshrl.u32 %v4480, 7
        %v4482 = vsub.s32 %v4479, %v4481
        %v4483 = vrot.slane %v4469, %v4482
        %v4484 = vcombine.high %v4460, 0
        %v4485 = vcombine.high %v4467, 0
        %v4486 = vcombine.high %v4476, 0
        %v4487 = vcombine.high %v4483, 0
        %v4488 = vcombine.high %v4412, %v486
        %v4490 = vunpack.c.l.s4 1983009808
        %v4491 = vunpack.c.0.s8 %v4490
        %v4492 = vlaneseq
        %v4493 = vshrl.u32 %v4492, 7
        %v4494 = vsub.s32 %v4491, %v4493
        %v4495 = vrot.slane %v4412, %v4494
        %v4497 = vunpack.c.l.s4 1983009808
        %v4498 = vunpack.c.0.s8 %v4497
        %v4499 = vlaneseq
        %v4500 = vshrl.u32 %v4499, 7
        %v4501 = vsub.s32 %v4498, %v4500
        %v4502 = vrot.slane %v4488, %v4501
        %v4503 = vcombine.high %v4420, %v486
        %v4505 = vunpack.c.l.s4 1983009808
        %v4506 = vunpack.c.0.s8 %v4505
        %v4507 = vlaneseq
        %v4508 = vshrl.u32 %v4507, 7
        %v4509 = vsub.s32 %v4506, %v4508
        %v4510 = vrot.slane %v4420, %v4509
        %v4512 = vunpack.c.l.s4 1983009808
        %v4513 = vunpack.c.0.s8 %v4512
        %v4514 = vlaneseq
        %v4515 = vshrl.u32 %v4514, 7
        %v4516 = vsub.s32 %v4513, %v4515
        %v4517 = vrot.slane %v4503, %v4516
        %v4518 = vcombine.low %v4495, %v4510
        %v4519 = vcombine.high %v4495, %v4510
        %v4521 = vunpack.c.l.s4 1934713408
        %v4522 = vunpack.c.0.s8 %v4521
        %v4523 = vlaneseq
        %v4524 = vshrl.u32 %v4523, 7
        %v4525 = vsub.s32 %v4522, %v4524
        %v4526 = vrot.slane %v4518, %v4525
        %v4528 = vunpack.c.l.s4 1934713408
        %v4529 = vunpack.c.0.s8 %v4528
        %v4530 = vlaneseq
        %v4531 = vshrl.u32 %v4530, 7
        %v4532 = vsub.s32 %v4529, %v4531
        %v4533 = vrot.slane %v4519, %v4532
        %v4534 = vcombine.low %v4502, %v4517
        %v4535 = vcombine.high %v4502, %v4517
        %v4537 = vunpack.c.l.s4 1934713408
        %v4538 = vunpack.c.0.s8 %v4537
        %v4539 = vlaneseq
        %v4540 = vshrl.u32 %v4539, 7
        %v4541 = vsub.s32 %v4538, %v4540
        %v4542 = vrot.slane %v4534, %v4541
        %v4544 = vunpack.c.l.s4 1934713408
        %v4545 = vunpack.c.0.s8 %v4544
        %v4546 = vlaneseq
        %v4547 = vshrl.u32 %v4546, 7
        %v4548 = vsub.s32 %v4545, %v4547
        %v4549 = vrot.slane %v4535, %v4548
        %v4550 = vcombine.high %v4526, 0
        %v4551 = vcombine.high %v4533, 0
        %v4552 = vcombine.high %v4542, 0
        %v4553 = vcombine.high %v4549, 0
        %4555 = vrot.lane.b32.xlu0 %v4526, 16
        %v4556 = vpop.permute.xlu0 %4555
        %4558 = vrot.lane.b32.xlu0 %v4484, 32
        %v4559 = vpop.permute.xlu0 %4558
        %4561 = vrot.lane.b32.xlu0 %v4550, 48
        %v4562 = vpop.permute.xlu0 %4561
        %4564 = vrot.lane.b32.xlu0 %v4467, 64
        %v4565 = vpop.permute.xlu0 %4564
        %4567 = vrot.lane.b32.xlu0 %v4533, 80
        %v4568 = vpop.permute.xlu0 %4567
        %4570 = vrot.lane.b32.xlu0 %v4485, 96
        %v4571 = vpop.permute.xlu0 %4570
        %4573 = vrot.lane.b32.xlu0 %v4551, 112
        %v4574 = vpop.permute.xlu0 %4573
        %4576 = vrot.lane.b32.xlu0 %v4542, 16
        %v4577 = vpop.permute.xlu0 %4576
        %4579 = vrot.lane.b32.xlu0 %v4486, 32
        %v4580 = vpop.permute.xlu0 %4579
        %4582 = vrot.lane.b32.xlu0 %v4552, 48
        %v4583 = vpop.permute.xlu0 %4582
        %4585 = vrot.lane.b32.xlu0 %v4483, 64
        %v4586 = vpop.permute.xlu0 %4585
        %4588 = vrot.lane.b32.xlu0 %v4549, 80
        %v4589 = vpop.permute.xlu0 %4588
        %4591 = vrot.lane.b32.xlu0 %v4487, 96
        %v4592 = vpop.permute.xlu0 %4591
        %4594 = vrot.lane.b32.xlu0 %v4553, 112
        %v4595 = vpop.permute.xlu0 %4594
        %v4598 = vsel %vm662, %v4460, %v4556
        %v4600 = vsel %vm666, %v4598, %v4559
        %v4602 = vsel %vm669, %v4600, %v4562
        %v4604 = vsel %vm672, %v4602, %v4565
        %v4606 = vsel %vm675, %v4604, %v4568
        %v4608 = vsel %vm678, %v4606, %v4571
        %v4610 = vsel %vm681, %v4608, %v4574
        %v4613 = vsel %vm662, %v4476, %v4577
        %v4615 = vsel %vm666, %v4613, %v4580
        %v4617 = vsel %vm669, %v4615, %v4583
        %v4619 = vsel %vm672, %v4617, %v4586
        %v4621 = vsel %vm675, %v4619, %v4589
        %v4623 = vsel %vm678, %v4621, %v4592
        %v4625 = vsel %vm681, %v4623, %v4595
        %4626 = vrot.lane.b32.xlu0 %v4396, 127
        %v4627 = vpop.permute.xlu0 %4626
        %4628 = vrot.lane.b32.xlu0 %v4399, 127
        %v4629 = vpop.permute.xlu0 %4628
        %4630 = vrot.lane.b32.xlu0 %v4402, 127
        %v4631 = vpop.permute.xlu0 %4630
        %4632 = vrot.lane.b32.xlu0 %v4405, 127
        %v4633 = vpop.permute.xlu0 %4632
        %v4636 = vpack.i.b16 %v4629, %v4627
        %v4638 = vshrl.u32 %v4627, 16
        %v4639 = vshrl.u32 %v4629, 16
        %v4640 = vpack.i.b16 %v4639, %v4638
        %v4644 = vpack.i.b16 %v4633, %v4631
        %v4646 = vshrl.u32 %v4631, 16
        %v4647 = vshrl.u32 %v4633, 16
        %v4648 = vpack.i.b16 %v4647, %v4646
        %v4650 = vcombine.high %v4636, %v483
        %v4652 = vunpack.c.l.s4 1983009808
        %v4653 = vunpack.c.0.s8 %v4652
        %v4654 = vlaneseq
        %v4655 = vshrl.u32 %v4654, 7
        %v4656 = vsub.s32 %v4653, %v4655
        %v4657 = vrot.slane %v4636, %v4656
        %v4659 = vunpack.c.l.s4 1983009808
        %v4660 = vunpack.c.0.s8 %v4659
        %v4661 = vlaneseq
        %v4662 = vshrl.u32 %v4661, 7
        %v4663 = vsub.s32 %v4660, %v4662
        %v4664 = vrot.slane %v4650, %v4663
        %v4665 = vcombine.high %v4644, %v483
        %v4667 = vunpack.c.l.s4 1983009808
        %v4668 = vunpack.c.0.s8 %v4667
        %v4669 = vlaneseq
        %v4670 = vshrl.u32 %v4669, 7
        %v4671 = vsub.s32 %v4668, %v4670
        %v4672 = vrot.slane %v4644, %v4671
        %v4674 = vunpack.c.l.s4 1983009808
        %v4675 = vunpack.c.0.s8 %v4674
        %v4676 = vlaneseq
        %v4677 = vshrl.u32 %v4676, 7
        %v4678 = vsub.s32 %v4675, %v4677
        %v4679 = vrot.slane %v4665, %v4678
        %v4680 = vcombine.low %v4657, %v4672
        %v4681 = vcombine.high %v4657, %v4672
        %v4683 = vunpack.c.l.s4 1934713408
        %v4684 = vunpack.c.0.s8 %v4683
        %v4685 = vlaneseq
        %v4686 = vshrl.u32 %v4685, 7
        %v4687 = vsub.s32 %v4684, %v4686
        %v4688 = vrot.slane %v4680, %v4687
        %v4690 = vunpack.c.l.s4 1934713408
        %v4691 = vunpack.c.0.s8 %v4690
        %v4692 = vlaneseq
        %v4693 = vshrl.u32 %v4692, 7
        %v4694 = vsub.s32 %v4691, %v4693
        %v4695 = vrot.slane %v4681, %v4694
        %v4696 = vcombine.low %v4664, %v4679
        %v4697 = vcombine.high %v4664, %v4679
        %v4699 = vunpack.c.l.s4 1934713408
        %v4700 = vunpack.c.0.s8 %v4699
        %v4701 = vlaneseq
        %v4702 = vshrl.u32 %v4701, 7
        %v4703 = vsub.s32 %v4700, %v4702
        %v4704 = vrot.slane %v4696, %v4703
        %v4706 = vunpack.c.l.s4 1934713408
        %v4707 = vunpack.c.0.s8 %v4706
        %v4708 = vlaneseq
        %v4709 = vshrl.u32 %v4708, 7
        %v4710 = vsub.s32 %v4707, %v4709
        %v4711 = vrot.slane %v4697, %v4710
        %v4712 = vcombine.high %v4688, 0
        %v4713 = vcombine.high %v4695, 0
        %v4714 = vcombine.high %v4704, 0
        %v4715 = vcombine.high %v4711, 0
        %v4716 = vcombine.high %v4640, %v486
        %v4718 = vunpack.c.l.s4 1983009808
        %v4719 = vunpack.c.0.s8 %v4718
        %v4720 = vlaneseq
        %v4721 = vshrl.u32 %v4720, 7
        %v4722 = vsub.s32 %v4719, %v4721
        %v4723 = vrot.slane %v4640, %v4722
        %v4725 = vunpack.c.l.s4 1983009808
        %v4726 = vunpack.c.0.s8 %v4725
        %v4727 = vlaneseq
        %v4728 = vshrl.u32 %v4727, 7
        %v4729 = vsub.s32 %v4726, %v4728
        %v4730 = vrot.slane %v4716, %v4729
        %v4731 = vcombine.high %v4648, %v486
        %v4733 = vunpack.c.l.s4 1983009808
        %v4734 = vunpack.c.0.s8 %v4733
        %v4735 = vlaneseq
        %v4736 = vshrl.u32 %v4735, 7
        %v4737 = vsub.s32 %v4734, %v4736
        %v4738 = vrot.slane %v4648, %v4737
        %v4740 = vunpack.c.l.s4 1983009808
        %v4741 = vunpack.c.0.s8 %v4740
        %v4742 = vlaneseq
        %v4743 = vshrl.u32 %v4742, 7
        %v4744 = vsub.s32 %v4741, %v4743
        %v4745 = vrot.slane %v4731, %v4744
        %v4746 = vcombine.low %v4723, %v4738
        %v4747 = vcombine.high %v4723, %v4738
        %v4749 = vunpack.c.l.s4 1934713408
        %v4750 = vunpack.c.0.s8 %v4749
        %v4751 = vlaneseq
        %v4752 = vshrl.u32 %v4751, 7
        %v4753 = vsub.s32 %v4750, %v4752
        %v4754 = vrot.slane %v4746, %v4753
        %v4756 = vunpack.c.l.s4 1934713408
        %v4757 = vunpack.c.0.s8 %v4756
        %v4758 = vlaneseq
        %v4759 = vshrl.u32 %v4758, 7
        %v4760 = vsub.s32 %v4757, %v4759
        %v4761 = vrot.slane %v4747, %v4760
        %v4762 = vcombine.low %v4730, %v4745
        %v4763 = vcombine.high %v4730, %v4745
        %v4765 = vunpack.c.l.s4 1934713408
        %v4766 = vunpack.c.0.s8 %v4765
        %v4767 = vlaneseq
        %v4768 = vshrl.u32 %v4767, 7
        %v4769 = vsub.s32 %v4766, %v4768
        %v4770 = vrot.slane %v4762, %v4769
        %v4772 = vunpack.c.l.s4 1934713408
        %v4773 = vunpack.c.0.s8 %v4772
        %v4774 = vlaneseq
        %v4775 = vshrl.u32 %v4774, 7
        %v4776 = vsub.s32 %v4773, %v4775
        %v4777 = vrot.slane %v4763, %v4776
        %v4778 = vcombine.high %v4754, 0
        %v4779 = vcombine.high %v4761, 0
        %v4780 = vcombine.high %v4770, 0
        %v4781 = vcombine.high %v4777, 0
        %4783 = vrot.lane.b32.xlu0 %v4754, 16
        %v4784 = vpop.permute.xlu0 %4783
        %4786 = vrot.lane.b32.xlu0 %v4712, 32
        %v4787 = vpop.permute.xlu0 %4786
        %4789 = vrot.lane.b32.xlu0 %v4778, 48
        %v4790 = vpop.permute.xlu0 %4789
        %4792 = vrot.lane.b32.xlu0 %v4695, 64
        %v4793 = vpop.permute.xlu0 %4792
        %4795 = vrot.lane.b32.xlu0 %v4761, 80
        %v4796 = vpop.permute.xlu0 %4795
        %4798 = vrot.lane.b32.xlu0 %v4713, 96
        %v4799 = vpop.permute.xlu0 %4798
        %4801 = vrot.lane.b32.xlu0 %v4779, 112
        %v4802 = vpop.permute.xlu0 %4801
        %4804 = vrot.lane.b32.xlu0 %v4770, 16
        %v4805 = vpop.permute.xlu0 %4804
        %4807 = vrot.lane.b32.xlu0 %v4714, 32
        %v4808 = vpop.permute.xlu0 %4807
        %4810 = vrot.lane.b32.xlu0 %v4780, 48
        %v4811 = vpop.permute.xlu0 %4810
        %4813 = vrot.lane.b32.xlu0 %v4711, 64
        %v4814 = vpop.permute.xlu0 %4813
        %4816 = vrot.lane.b32.xlu0 %v4777, 80
        %v4817 = vpop.permute.xlu0 %4816
        %4819 = vrot.lane.b32.xlu0 %v4715, 96
        %v4820 = vpop.permute.xlu0 %4819
        %4822 = vrot.lane.b32.xlu0 %v4781, 112
        %v4823 = vpop.permute.xlu0 %4822
        %v4826 = vsel %vm662, %v4688, %v4784
        %v4828 = vsel %vm666, %v4826, %v4787
        %v4830 = vsel %vm669, %v4828, %v4790
        %v4832 = vsel %vm672, %v4830, %v4793
        %v4834 = vsel %vm675, %v4832, %v4796
        %v4836 = vsel %vm678, %v4834, %v4799
        %v4838 = vsel %vm681, %v4836, %v4802
        %v4841 = vsel %vm662, %v4704, %v4805
        %v4843 = vsel %vm666, %v4841, %v4808
        %v4845 = vsel %vm669, %v4843, %v4811
        %v4847 = vsel %vm672, %v4845, %v4814
        %v4849 = vsel %vm675, %v4847, %v4817
        %v4851 = vsel %vm678, %v4849, %v4820
        %v4853 = vsel %vm681, %v4851, %v4823
        %4854 = vrot.lane.b32.xlu0 %v4396, 126
        %v4855 = vpop.permute.xlu0 %4854
        %4856 = vrot.lane.b32.xlu0 %v4399, 126
        %v4857 = vpop.permute.xlu0 %4856
        %4858 = vrot.lane.b32.xlu0 %v4402, 126
        %v4859 = vpop.permute.xlu0 %4858
        %4860 = vrot.lane.b32.xlu0 %v4405, 126
        %v4861 = vpop.permute.xlu0 %4860
        %v4864 = vpack.i.b16 %v4857, %v4855
        %v4866 = vshrl.u32 %v4855, 16
        %v4867 = vshrl.u32 %v4857, 16
        %v4868 = vpack.i.b16 %v4867, %v4866
        %v4872 = vpack.i.b16 %v4861, %v4859
        %v4874 = vshrl.u32 %v4859, 16
        %v4875 = vshrl.u32 %v4861, 16
        %v4876 = vpack.i.b16 %v4875, %v4874
        %v4878 = vcombine.high %v4864, %v483
        %v4880 = vunpack.c.l.s4 1983009808
        %v4881 = vunpack.c.0.s8 %v4880
        %v4882 = vlaneseq
        %v4883 = vshrl.u32 %v4882, 7
        %v4884 = vsub.s32 %v4881, %v4883
        %v4885 = vrot.slane %v4864, %v4884
        %v4887 = vunpack.c.l.s4 1983009808
        %v4888 = vunpack.c.0.s8 %v4887
        %v4889 = vlaneseq
        %v4890 = vshrl.u32 %v4889, 7
        %v4891 = vsub.s32 %v4888, %v4890
        %v4892 = vrot.slane %v4878, %v4891
        %v4893 = vcombine.high %v4872, %v483
        %v4895 = vunpack.c.l.s4 1983009808
        %v4896 = vunpack.c.0.s8 %v4895
        %v4897 = vlaneseq
        %v4898 = vshrl.u32 %v4897, 7
        %v4899 = vsub.s32 %v4896, %v4898
        %v4900 = vrot.slane %v4872, %v4899
        %v4902 = vunpack.c.l.s4 1983009808
        %v4903 = vunpack.c.0.s8 %v4902
        %v4904 = vlaneseq
        %v4905 = vshrl.u32 %v4904, 7
        %v4906 = vsub.s32 %v4903, %v4905
        %v4907 = vrot.slane %v4893, %v4906
        %v4908 = vcombine.low %v4885, %v4900
        %v4909 = vcombine.high %v4885, %v4900
        %v4911 = vunpack.c.l.s4 1934713408
        %v4912 = vunpack.c.0.s8 %v4911
        %v4913 = vlaneseq
        %v4914 = vshrl.u32 %v4913, 7
        %v4915 = vsub.s32 %v4912, %v4914
        %v4916 = vrot.slane %v4908, %v4915
        %v4918 = vunpack.c.l.s4 1934713408
        %v4919 = vunpack.c.0.s8 %v4918
        %v4920 = vlaneseq
        %v4921 = vshrl.u32 %v4920, 7
        %v4922 = vsub.s32 %v4919, %v4921
        %v4923 = vrot.slane %v4909, %v4922
        %v4924 = vcombine.low %v4892, %v4907
        %v4925 = vcombine.high %v4892, %v4907
        %v4927 = vunpack.c.l.s4 1934713408
        %v4928 = vunpack.c.0.s8 %v4927
        %v4929 = vlaneseq
        %v4930 = vshrl.u32 %v4929, 7
        %v4931 = vsub.s32 %v4928, %v4930
        %v4932 = vrot.slane %v4924, %v4931
        %v4934 = vunpack.c.l.s4 1934713408
        %v4935 = vunpack.c.0.s8 %v4934
        %v4936 = vlaneseq
        %v4937 = vshrl.u32 %v4936, 7
        %v4938 = vsub.s32 %v4935, %v4937
        %v4939 = vrot.slane %v4925, %v4938
        %v4940 = vcombine.high %v4916, 0
        %v4941 = vcombine.high %v4923, 0
        %v4942 = vcombine.high %v4932, 0
        %v4943 = vcombine.high %v4939, 0
        %v4944 = vcombine.high %v4868, %v486
        %v4946 = vunpack.c.l.s4 1983009808
        %v4947 = vunpack.c.0.s8 %v4946
        %v4948 = vlaneseq
        %v4949 = vshrl.u32 %v4948, 7
        %v4950 = vsub.s32 %v4947, %v4949
        %v4951 = vrot.slane %v4868, %v4950
        %v4953 = vunpack.c.l.s4 1983009808
        %v4954 = vunpack.c.0.s8 %v4953
        %v4955 = vlaneseq
        %v4956 = vshrl.u32 %v4955, 7
        %v4957 = vsub.s32 %v4954, %v4956
        %v4958 = vrot.slane %v4944, %v4957
        %v4959 = vcombine.high %v4876, %v486
        %v4961 = vunpack.c.l.s4 1983009808
        %v4962 = vunpack.c.0.s8 %v4961
        %v4963 = vlaneseq
        %v4964 = vshrl.u32 %v4963, 7
        %v4965 = vsub.s32 %v4962, %v4964
        %v4966 = vrot.slane %v4876, %v4965
        %v4968 = vunpack.c.l.s4 1983009808
        %v4969 = vunpack.c.0.s8 %v4968
        %v4970 = vlaneseq
        %v4971 = vshrl.u32 %v4970, 7
        %v4972 = vsub.s32 %v4969, %v4971
        %v4973 = vrot.slane %v4959, %v4972
        %v4974 = vcombine.low %v4951, %v4966
        %v4975 = vcombine.high %v4951, %v4966
        %v4977 = vunpack.c.l.s4 1934713408
        %v4978 = vunpack.c.0.s8 %v4977
        %v4979 = vlaneseq
        %v4980 = vshrl.u32 %v4979, 7
        %v4981 = vsub.s32 %v4978, %v4980
        %v4982 = vrot.slane %v4974, %v4981
        %v4984 = vunpack.c.l.s4 1934713408
        %v4985 = vunpack.c.0.s8 %v4984
        %v4986 = vlaneseq
        %v4987 = vshrl.u32 %v4986, 7
        %v4988 = vsub.s32 %v4985, %v4987
        %v4989 = vrot.slane %v4975, %v4988
        %v4990 = vcombine.low %v4958, %v4973
        %v4991 = vcombine.high %v4958, %v4973
        %v4993 = vunpack.c.l.s4 1934713408
        %v4994 = vunpack.c.0.s8 %v4993
        %v4995 = vlaneseq
        %v4996 = vshrl.u32 %v4995, 7
        %v4997 = vsub.s32 %v4994, %v4996
        %v4998 = vrot.slane %v4990, %v4997
        %v5000 = vunpack.c.l.s4 1934713408
        %v5001 = vunpack.c.0.s8 %v5000
        %v5002 = vlaneseq
        %v5003 = vshrl.u32 %v5002, 7
        %v5004 = vsub.s32 %v5001, %v5003
        %v5005 = vrot.slane %v4991, %v5004
        %v5006 = vcombine.high %v4982, 0
        %v5007 = vcombine.high %v4989, 0
        %v5008 = vcombine.high %v4998, 0
        %v5009 = vcombine.high %v5005, 0
        %5011 = vrot.lane.b32.xlu0 %v4982, 16
        %v5012 = vpop.permute.xlu0 %5011
        %5014 = vrot.lane.b32.xlu0 %v4940, 32
        %v5015 = vpop.permute.xlu0 %5014
        %5017 = vrot.lane.b32.xlu0 %v5006, 48
        %v5018 = vpop.permute.xlu0 %5017
        %5020 = vrot.lane.b32.xlu0 %v4923, 64
        %v5021 = vpop.permute.xlu0 %5020
        %5023 = vrot.lane.b32.xlu0 %v4989, 80
        %v5024 = vpop.permute.xlu0 %5023
        %5026 = vrot.lane.b32.xlu0 %v4941, 96
        %v5027 = vpop.permute.xlu0 %5026
        %5029 = vrot.lane.b32.xlu0 %v5007, 112
        %v5030 = vpop.permute.xlu0 %5029
        %5032 = vrot.lane.b32.xlu0 %v4998, 16
        %v5033 = vpop.permute.xlu0 %5032
        %5035 = vrot.lane.b32.xlu0 %v4942, 32
        %v5036 = vpop.permute.xlu0 %5035
        %5038 = vrot.lane.b32.xlu0 %v5008, 48
        %v5039 = vpop.permute.xlu0 %5038
        %5041 = vrot.lane.b32.xlu0 %v4939, 64
        %v5042 = vpop.permute.xlu0 %5041
        %5044 = vrot.lane.b32.xlu0 %v5005, 80
        %v5045 = vpop.permute.xlu0 %5044
        %5047 = vrot.lane.b32.xlu0 %v4943, 96
        %v5048 = vpop.permute.xlu0 %5047
        %5050 = vrot.lane.b32.xlu0 %v5009, 112
        %v5051 = vpop.permute.xlu0 %5050
        %v5054 = vsel %vm662, %v4916, %v5012
        %v5056 = vsel %vm666, %v5054, %v5015
        %v5058 = vsel %vm669, %v5056, %v5018
        %v5060 = vsel %vm672, %v5058, %v5021
        %v5062 = vsel %vm675, %v5060, %v5024
        %v5064 = vsel %vm678, %v5062, %v5027
        %v5066 = vsel %vm681, %v5064, %v5030
        %v5069 = vsel %vm662, %v4932, %v5033
        %v5071 = vsel %vm666, %v5069, %v5036
        %v5073 = vsel %vm669, %v5071, %v5039
        %v5075 = vsel %vm672, %v5073, %v5042
        %v5077 = vsel %vm675, %v5075, %v5045
        %v5079 = vsel %vm678, %v5077, %v5048
        %v5081 = vsel %vm681, %v5079, %v5051
        %v5084 = vrot.slane %v3434, 6
        %v5085 = vrot.slane %v3449, 6
        %v5088 = vrot.slane %v3662, 4
        %v5089 = vrot.slane %v3677, 4
        %v5092 = vrot.slane %v3918, 2
        %v5093 = vrot.slane %v3933, 2
        %v5096 = vrot.slane %v4374, 6
        %v5097 = vrot.slane %v4389, 6
        %v5100 = vrot.slane %v4610, 4
        %v5101 = vrot.slane %v4625, 4
        %v5104 = vrot.slane %v4838, 2
        %v5105 = vrot.slane %v4853, 2
        %v5107 = vsel %vm2589, %v3202, %v5084
        %v5109 = vsel %vm2589, %v3217, %v5085
        %v5111 = vsel %vm2594, %v5107, %v5088
        %v5113 = vsel %vm2594, %v5109, %v5089
        %v5115 = vsel %vm2599, %v5111, %v5092
        %v5118 = vsel %vm2599, %v5113, %v5093
        %v5121 = vsel %vm2589, %v4146, %v5096
        %v5123 = vsel %vm2589, %v4161, %v5097
        %v5125 = vsel %vm2594, %v5121, %v5100
        %v5127 = vsel %vm2594, %v5123, %v5101
        %v5129 = vsel %vm2599, %v5125, %v5104
        %v5132 = vsel %vm2599, %v5127, %v5105
        %v5135 = vsel %vm2620, %v3001, 0
        %v5137 = vsel %vm2589, %v5066, 0
        %v5139 = vsel %vm2589, %v5081, 0
        %5141 = vmatprep.subr.bf16.mxu0 0
        %5142 = vmatpush1.bf16.msra.mxu0 0
        %5143 = vmatprep.subr.bf16.mxu0 0
        %5144 = vmatpush1.bf16.msra.mxu0 0
        %5145 = vmatprep.subr.bf16.mxu0 0
        %5146 = vmatpush1.bf16.msra.mxu0 0
        %5147 = vmatprep.subr.bf16.mxu0 0
        %5148 = vmatpush1.bf16.msra.mxu0 0
        %5149 = vmatprep.subr.bf16.mxu0 0
        %5150 = vmatpush1.bf16.msra.mxu0 0
        %5151 = vmatprep.subr.bf16.mxu0 %v5139
        %5152 = vmatpush1.bf16.msra.mxu0 %v5137
        %5153 = vmatprep.subr.bf16.mxu0 %v5132
        %5154 = vmatpush1.bf16.msra.mxu0 %v5129
        %5155 = vmatprep.subr.bf16.mxu0 %v5118
        %5156 = vmatpush1.bf16.msra.mxu0 %v5115
        %5157 = vmatprep.subr.bf16.mxu0 0
        %5158 = vmatpush2.bf16.msra.mxu0 0
        %5159 = vmatprep.subr.bf16.mxu0 0
        %5160 = vmatpush2.bf16.msra.mxu0 0
        %5161 = vmatprep.subr.bf16.mxu0 0
        %5162 = vmatpush2.bf16.msra.mxu0 0
        %5163 = vmatprep.subr.bf16.mxu0 0
        %5164 = vmatpush2.bf16.msra.mxu0 0
        %5165 = vmatprep.subr.bf16.mxu0 0
        %5166 = vmatpush2.bf16.msra.mxu0 0
        %5167 = vmatprep.subr.bf16.mxu0 0
        %5168 = vmatpush2.bf16.msra.mxu0 0
        %5169 = vmatprep.subr.bf16.mxu0 0
        %5170 = vmatpush2.bf16.msra.mxu0 0
        %5171 = vmatprep.subr.bf16.mxu0 0
        %5172 = vmatpush2.bf16.msra.mxu0 0
        %5173 = vmatprep.mubr.bf16.mxu0 0
        %5174 = vmatmul.mubr.bf16.gmra.mxu0 %v5135
        %v5175 = vpop.f32.mrf.mxu0
        %v5176 = vadd.f32 0.0, %v5175
        %v5177 = vpop.f32.mrf.mxu0
        %v5178 = vadd.f32 0.0, %v5177
        %v5179 = vpop.f32.mrf.mxu0
        %v5180 = vpop.f32.mrf.mxu0
        %5181 = vdwg.mxu0
        %v5182 = vld [vmem:[%s5] sm:$0xf]
        %5184 = vset.pattern.permute.xlu0 0
        %5185 = vperm.xlu0 %5184, %v5182
        %v5186 = vpop.permute.xlu0 %5185
        %v5188 = vmul.f32 %v5176, %v5186
        %v5189 = vmul.f32 %v5178, %v5186
        %v5190 = vld [vmem:[%s6] sm:$0xf]
        %5192 = vset.pattern.permute.xlu0 0
        %5193 = vperm.xlu0 %5192, %v5190
        %v5194 = vpop.permute.xlu0 %5193
        %v5196 = vadd.f32 %v5188, %v5194
        %v5197 = vadd.f32 %v5189, %v5194
        %v5198 = vcombine.low %v300, %v304
        %v5199 = vcombine.high %v300, %v304
        %v5201 = vunpack.c.l.s4 1983009808
        %v5202 = vunpack.c.0.s8 %v5201
        %v5203 = vlaneseq
        %v5204 = vshrl.u32 %v5203, 7
        %v5205 = vsub.s32 %v5202, %v5204
        %v5206 = vrot.slane %v5198, %v5205
        %v5208 = vunpack.c.l.s4 1983009808
        %v5209 = vunpack.c.0.s8 %v5208
        %v5210 = vlaneseq
        %v5211 = vshrl.u32 %v5210, 7
        %v5212 = vsub.s32 %v5209, %v5211
        %v5213 = vrot.slane %v5199, %v5212
        %v5214 = vcombine.low %v302, %v306
        %v5215 = vcombine.high %v302, %v306
        %v5217 = vunpack.c.l.s4 1983009808
        %v5218 = vunpack.c.0.s8 %v5217
        %v5219 = vlaneseq
        %v5220 = vshrl.u32 %v5219, 7
        %v5221 = vsub.s32 %v5218, %v5220
        %v5222 = vrot.slane %v5214, %v5221
        %v5224 = vunpack.c.l.s4 1983009808
        %v5225 = vunpack.c.0.s8 %v5224
        %v5226 = vlaneseq
        %v5227 = vshrl.u32 %v5226, 7
        %v5228 = vsub.s32 %v5225, %v5227
        %v5229 = vrot.slane %v5215, %v5228
        %v5230 = vcombine.low %v5206, %v5222
        %v5231 = vcombine.high %v5206, %v5222
        %v5233 = vunpack.c.l.s4 1934713408
        %v5234 = vunpack.c.0.s8 %v5233
        %v5235 = vlaneseq
        %v5236 = vshrl.u32 %v5235, 7
        %v5237 = vsub.s32 %v5234, %v5236
        %v5238 = vrot.slane %v5230, %v5237
        %v5240 = vunpack.c.l.s4 1934713408
        %v5241 = vunpack.c.0.s8 %v5240
        %v5242 = vlaneseq
        %v5243 = vshrl.u32 %v5242, 7
        %v5244 = vsub.s32 %v5241, %v5243
        %v5245 = vrot.slane %v5231, %v5244
        %v5246 = vcombine.low %v5213, %v5229
        %v5247 = vcombine.high %v5213, %v5229
        %v5249 = vunpack.c.l.s4 1934713408
        %v5250 = vunpack.c.0.s8 %v5249
        %v5251 = vlaneseq
        %v5252 = vshrl.u32 %v5251, 7
        %v5253 = vsub.s32 %v5250, %v5252
        %v5254 = vrot.slane %v5246, %v5253
        %v5256 = vunpack.c.l.s4 1934713408
        %v5257 = vunpack.c.0.s8 %v5256
        %v5258 = vlaneseq
        %v5259 = vshrl.u32 %v5258, 7
        %v5260 = vsub.s32 %v5257, %v5259
        %v5261 = vrot.slane %v5247, %v5260
        %v5262 = vcombine.high %v5238, 0.0
        %v5263 = vcombine.high %v5245, 0.0
        %v5264 = vcombine.high %v5254, 0.0
        %v5265 = vcombine.high %v5261, 0.0
        %v5266 = vcombine.low %v301, %v305
        %v5267 = vcombine.high %v301, %v305
        %v5269 = vunpack.c.l.s4 1983009808
        %v5270 = vunpack.c.0.s8 %v5269
        %v5271 = vlaneseq
        %v5272 = vshrl.u32 %v5271, 7
        %v5273 = vsub.s32 %v5270, %v5272
        %v5274 = vrot.slane %v5266, %v5273
        %v5276 = vunpack.c.l.s4 1983009808
        %v5277 = vunpack.c.0.s8 %v5276
        %v5278 = vlaneseq
        %v5279 = vshrl.u32 %v5278, 7
        %v5280 = vsub.s32 %v5277, %v5279
        %v5281 = vrot.slane %v5267, %v5280
        %v5282 = vcombine.low %v303, %v307
        %v5283 = vcombine.high %v303, %v307
        %v5285 = vunpack.c.l.s4 1983009808
        %v5286 = vunpack.c.0.s8 %v5285
        %v5287 = vlaneseq
        %v5288 = vshrl.u32 %v5287, 7
        %v5289 = vsub.s32 %v5286, %v5288
        %v5290 = vrot.slane %v5282, %v5289
        %v5292 = vunpack.c.l.s4 1983009808
        %v5293 = vunpack.c.0.s8 %v5292
        %v5294 = vlaneseq
        %v5295 = vshrl.u32 %v5294, 7
        %v5296 = vsub.s32 %v5293, %v5295
        %v5297 = vrot.slane %v5283, %v5296
        %v5298 = vcombine.low %v5274, %v5290
        %v5299 = vcombine.high %v5274, %v5290
        %v5301 = vunpack.c.l.s4 1934713408
        %v5302 = vunpack.c.0.s8 %v5301
        %v5303 = vlaneseq
        %v5304 = vshrl.u32 %v5303, 7
        %v5305 = vsub.s32 %v5302, %v5304
        %v5306 = vrot.slane %v5298, %v5305
        %v5308 = vunpack.c.l.s4 1934713408
        %v5309 = vunpack.c.0.s8 %v5308
        %v5310 = vlaneseq
        %v5311 = vshrl.u32 %v5310, 7
        %v5312 = vsub.s32 %v5309, %v5311
        %v5313 = vrot.slane %v5299, %v5312
        %v5314 = vcombine.low %v5281, %v5297
        %v5315 = vcombine.high %v5281, %v5297
        %v5317 = vunpack.c.l.s4 1934713408
        %v5318 = vunpack.c.0.s8 %v5317
        %v5319 = vlaneseq
        %v5320 = vshrl.u32 %v5319, 7
        %v5321 = vsub.s32 %v5318, %v5320
        %v5322 = vrot.slane %v5314, %v5321
        %v5324 = vunpack.c.l.s4 1934713408
        %v5325 = vunpack.c.0.s8 %v5324
        %v5326 = vlaneseq
        %v5327 = vshrl.u32 %v5326, 7
        %v5328 = vsub.s32 %v5325, %v5327
        %v5329 = vrot.slane %v5315, %v5328
        %v5330 = vcombine.high %v5306, 0.0
        %v5331 = vcombine.high %v5313, 0.0
        %v5332 = vcombine.high %v5322, 0.0
        %v5333 = vcombine.high %v5329, 0.0
        %5335 = vrot.lane.b32.xlu0 %v5262, 16
        %v5336 = vpop.permute.xlu0 %5335
        %5339 = vrot.lane.b32.xlu0 %v5245, 32
        %v5340 = vpop.permute.xlu0 %5339
        %5343 = vrot.lane.b32.xlu0 %v5263, 48
        %v5344 = vpop.permute.xlu0 %5343
        %5347 = vrot.lane.b32.xlu0 %v5254, 64
        %v5348 = vpop.permute.xlu0 %5347
        %5351 = vrot.lane.b32.xlu0 %v5264, 80
        %v5352 = vpop.permute.xlu0 %5351
        %5355 = vrot.lane.b32.xlu0 %v5261, 96
        %v5356 = vpop.permute.xlu0 %5355
        %5359 = vrot.lane.b32.xlu0 %v5265, 112
        %v5360 = vpop.permute.xlu0 %5359
        %5363 = vrot.lane.b32.xlu0 %v5330, 16
        %v5364 = vpop.permute.xlu0 %5363
        %5367 = vrot.lane.b32.xlu0 %v5313, 32
        %v5368 = vpop.permute.xlu0 %5367
        %5371 = vrot.lane.b32.xlu0 %v5331, 48
        %v5372 = vpop.permute.xlu0 %5371
        %5375 = vrot.lane.b32.xlu0 %v5322, 64
        %v5376 = vpop.permute.xlu0 %5375
        %5379 = vrot.lane.b32.xlu0 %v5332, 80
        %v5380 = vpop.permute.xlu0 %5379
        %5383 = vrot.lane.b32.xlu0 %v5329, 96
        %v5384 = vpop.permute.xlu0 %5383
        %5387 = vrot.lane.b32.xlu0 %v5333, 112
        %v5388 = vpop.permute.xlu0 %5387
        %v5390 = vsel %vm662, %v5238, %v5336
        %v5391 = vsel %vm666, %v5390, %v5340
        %v5392 = vsel %vm669, %v5391, %v5344
        %v5393 = vsel %vm672, %v5392, %v5348
        %v5394 = vsel %vm675, %v5393, %v5352
        %v5395 = vsel %vm678, %v5394, %v5356
        %v5396 = vsel %vm681, %v5395, %v5360
        %v5397 = vsel %vm662, %v5306, %v5364
        %v5398 = vsel %vm666, %v5397, %v5368
        %v5399 = vsel %vm669, %v5398, %v5372
        %v5400 = vsel %vm672, %v5399, %v5376
        %v5401 = vsel %vm675, %v5400, %v5380
        %v5402 = vsel %vm678, %v5401, %v5384
        %v5403 = vsel %vm681, %v5402, %v5388
        %v5404 = vadd.f32 %v5196, %v5396
        %v5405 = vadd.f32 %v5197, %v5403
        %v5408 = vcombine.low %v5404, %v5405
        %5410 = vst [vmem:[%s298] sm:$0xff] %v5408
        %p5411 = scmp.lt.s32.totalorder %s21, 1
        %s5412 = scalar_select %p5411, %s21, 1
        %s5413 = smul.addr %s5412, 2
        %s5414 = smul.addr %s5413, 4
        %s5415 = scalar_lea.vmem %s7, %s5414
        // Predicated region
        $region53: #{resnet_block_nchw.1} parent=47 // pred_check
          %p5416 = pneg %p191
        $region54: #{resnet_block_nchw.1} parent=47 // pred_check_branch
          %5418 = sbr.rel (%p5416) target = $region56
        $region55: #{resnet_block_nchw.1} parent=47 // pred_region
          _
        $region56: #{resnet_block_nchw.1} parent=47 // pred_fallthru
          _
      $region48: #{resnet_block_nchw.1} parent=5 // pred_fallthru
        _
      %p5419 = scmp.le.s32.totalorder 2, %s16
      // Predicated region
      $region57: #{resnet_block_nchw.1} parent=5 // pred_check
        %p5420 = pneg %p5419
      $region58: #{resnet_block_nchw.1} parent=5 // pred_check_branch
        %5422 = sbr.rel (%p5420) target = $region60
      $region59: #{resnet_block_nchw.1} parent=5 // pred_region
        %s5423 = ssub.s32 %s16, 2
        // Predicated region
        $region61: #{resnet_block_nchw.1} parent=59 // pred_check
          %p5424 = pneg %p197
        $region62: #{resnet_block_nchw.1} parent=59 // pred_check_branch
          %5426 = sbr.rel (%p5424) target = $region64
        $region63: #{resnet_block_nchw.1} parent=59 // pred_region
          %p5427 = scmp.lt.s32.totalorder %s22, 1
          %s5428 = scalar_select %p5427, %s22, 1
          %s5429 = smul.addr %s5428, 2
          %s5430 = smul.addr %s5429, 4
          %s5431 = scalar_lea.vmem %s7, %s5430
        $region64: #{resnet_block_nchw.1} parent=59 // pred_fallthru
          _
      $region60: #{resnet_block_nchw.1} parent=5 // pred_fallthru
        _
    $region6: #{resnet_block_nchw.1} parent=1 // loop_footer
      %s20 = sadd.s32 1, %s16
    $region7: #{resnet_block_nchw.1} parent=1 // loop_footer_branch
      %15 = sbr.rel target = $region3
    $region8: #{resnet_block_nchw.1} parent=1 // loop_exit
      _
    %5432 = vsyncpa [#allocation3], 1
    %s5433 = scalar_lea.sflag [#allocation3], 1
    %5434 = vsyncpa %s5433, 1

</llo_original>
